<compile_context>
chip_gen: v7x
topology: tpu7x:2x2x1
jax: 0.10.0
libtpu: 0.0.40
codegen_flags: <defaults>
</compile_context>

<pallas_src>
import functools

import jax
import jax.numpy as jnp
from jax import lax
from jax.experimental import pallas as pl
from jax.experimental.pallas import tpu as pltpu


def _mixconv_kernel(x_ref, w_ref, b_ref, o_ref, *,
                    c1, k3, k5, s3, s5, d3, hout, wout):
    """Fused MixConv2d (both sub-convs + bias + concat) for one batch element.

    x_ref: (1, C, Hp, Wp)        input padded to the 5x5 branch's padding (VMEM)
    w_ref: (Cout, R3+R5)         block-diagonal [W3 0; 0 W5] flattened weights
    b_ref: (Cout, 1)             concatenated biases
    o_ref: (1, Cout, hout*wout)  channel-major, lane-dense output
    """
    hw = hout * wout
    x = x_ref[0]                        # (C, Hp, Wp)
    x1 = x[:c1]                         # channels for the 3x3 branch
    x2 = x[c1:]                         # channels for the 5x5 branch

    def taps(xb, K, stride, off):
        # im2col: one strided window per kernel tap; row order (ky, kx, ci)
        # matches the wrapper-side weight flattening.
        t = []
        for ky in range(K):
            for kx in range(K):
                ys = slice(off + ky, off + ky + stride * (hout - 1) + 1, stride)
                xs = slice(off + kx, off + kx + stride * (wout - 1) + 1, stride)
                t.append(xb[:, ys, xs])          # (Cin_b, hout, wout)
        return t

    # Stack both branches' im2col rows into one (R3+R5, hw) matrix so both
    # convolutions and the channel concat collapse into a single MXU matmul.
    col = jnp.concatenate(taps(x1, k3, s3, d3) + taps(x2, k5, s5, 0), axis=0)
    col = col.reshape(col.shape[0], hw)           # lane-dense (last dim = hw)

    acc = jnp.dot(w_ref[...], col, preferred_element_type=jnp.float32)
    acc = acc + b_ref[...]                        # broadcast bias add (VPU)
    o_ref[0] = acc.astype(o_ref.dtype)            # single unmasked lane-dense store


def init_mixconv_params(key, in_channels, out_channels, kernel_size=3):
    """Deterministic parameter init (OIHW weights, shapes as in MixConv2d.__init__)."""
    c_in1 = in_channels // 2
    c_in2 = in_channels - in_channels // 2
    c_out1 = out_channels // 2
    c_out2 = out_channels - out_channels // 2
    k3 = kernel_size
    k5 = kernel_size + 2
    k0, k1, k2, k3k = jax.random.split(key, 4)
    return {
        "w3": jax.random.normal(k0, (c_out1, c_in1, k3, k3), jnp.float32) * 0.1,
        "b3": jax.random.normal(k1, (c_out1,), jnp.float32) * 0.1,
        "w5": jax.random.normal(k2, (c_out2, c_in2, k5, k5), jnp.float32) * 0.1,
        "b5": jax.random.normal(k3k, (c_out2,), jnp.float32) * 0.1,
    }


def mix_conv2d(x_nchw, params, *, stride=1, padding=0):
    """Forward pass equivalent to MixConv2d.forward (NCHW in, NCHW out)."""
    N, C, H, W = x_nchw.shape
    c1 = C // 2
    c2 = C - c1
    w3, b3, w5, b5 = params["w3"], params["b3"], params["w5"], params["b5"]
    c_out1, c_in1, k3, _ = w3.shape
    c_out2, c_in2, k5, _ = w5.shape
    assert c_in1 == c1 and c_in2 == c2
    c_out = c_out1 + c_out2

    p3, s3 = padding, 1                    # conv_3: stride hard-coded to 1
    p5, s5 = padding + 1, stride           # conv_5: kernel_size+2, padding+1

    hout3 = (H + 2 * p3 - k3) // s3 + 1
    wout3 = (W + 2 * p3 - k3) // s3 + 1
    hout5 = (H + 2 * p5 - k5) // s5 + 1
    wout5 = (W + 2 * p5 - k5) // s5 + 1
    assert (hout3, wout3) == (hout5, wout5), "sub-conv output sizes must match for concat"
    hout, wout = hout3, wout3

    # Pad ONCE at the larger (5x5-branch) padding; the 3x3 branch's taps are
    # offset by d3 = p5 - p3 inside the kernel.
    d3 = p5 - p3
    xp = jnp.pad(x_nchw, ((0, 0), (0, 0), (p5, p5), (p5, p5)))
    Hp, Wp = H + 2 * p5, W + 2 * p5

    # Block-diagonal flattened weight; column order (ky, kx, ci) per block
    # matches the in-kernel im2col row order.  Row order (conv_3 then conv_5)
    # matches the channel concat of the reference module.
    R3 = k3 * k3 * c_in1
    R5 = k5 * k5 * c_in2
    w3_2d = jnp.transpose(w3, (0, 2, 3, 1)).reshape(c_out1, R3)
    w5_2d = jnp.transpose(w5, (0, 2, 3, 1)).reshape(c_out2, R5)
    w_bd = jnp.block([
        [w3_2d, jnp.zeros((c_out1, R5), w3_2d.dtype)],
        [jnp.zeros((c_out2, R3), w5_2d.dtype), w5_2d],
    ])
    b_all = jnp.concatenate([b3, b5]).reshape(c_out, 1)

    kernel = functools.partial(_mixconv_kernel, c1=c1, k3=k3, k5=k5,
                               s3=s3, s5=s5, d3=d3, hout=hout, wout=wout)

    flops = 2 * N * c_out * (R3 + R5) * hout * wout
    bytes_accessed = 4 * (xp.size + w_bd.size + b_all.size +
                          N * c_out * hout * wout)

    out_flat = pl.pallas_call(
        kernel,
        out_shape=jax.ShapeDtypeStruct((N, c_out, hout * wout), x_nchw.dtype),
        grid=(N,),
        in_specs=[
            pl.BlockSpec((1, C, Hp, Wp), lambda n: (n, 0, 0, 0)),
            pl.BlockSpec((c_out, R3 + R5), lambda n: (0, 0)),
            pl.BlockSpec((c_out, 1), lambda n: (0, 0)),
        ],
        out_specs=pl.BlockSpec((1, c_out, hout * wout), lambda n: (n, 0, 0)),
        compiler_params=pltpu.CompilerParams(
            dimension_semantics=("parallel",)),
        cost_estimate=pl.CostEstimate(flops=flops, transcendentals=0,
                                      bytes_accessed=bytes_accessed),
    )(xp, w_bd, b_all)

    # Row-major contiguous reshape (free bitcast) to NCHW.
    return out_flat.reshape(N, c_out, hout, wout)


def _reference_mix_conv2d(x_nchw, params, *, stride=1, padding=0):
    """Pure-JAX reference using lax.conv_general_dilated (NCHW/OIHW)."""
    C = x_nchw.shape[1]
    c1 = C // 2

    def conv(x, w_oihw, b, s, p):
        y = lax.conv_general_dilated(
            x, w_oihw, window_strides=(s, s), padding=((p, p), (p, p)),
            dimension_numbers=("NCHW", "OIHW", "NCHW"))
        return y + b[None, :, None, None]

    y1 = conv(x_nchw[:, :c1], params["w3"], params["b3"], 1, padding)
    y2 = conv(x_nchw[:, c1:], params["w5"], params["b5"], stride, padding + 1)
    return jnp.concatenate([y1, y2], axis=1)


if __name__ == "__main__":
    key = jax.random.PRNGKey(0)
    k_x, k_p = jax.random.split(key)

    # Small shapes consistent with the module: batch=2, in_channels=4,
    # out_channels=8, spatial=16, kernel_size=3, stride=1, padding=1, groups=2.
    N, C_in, C_out, H, W = 2, 4, 8, 16, 16
    stride, padding = 1, 1

    x = jax.random.normal(k_x, (N, C_in, H, W), jnp.float32)
    params = init_mixconv_params(k_p, C_in, C_out, kernel_size=3)

    out = mix_conv2d(x, params, stride=stride, padding=padding)
    out = jax.block_until_ready(out)

    ref = _reference_mix_conv2d(x, params, stride=stride, padding=padding)
    assert out.shape == (N, C_out, H, W), out.shape
    assert jnp.allclose(out, ref, atol=1e-4, rtol=1e-4), "mismatch vs reference"

    print("KERNEL_OK")
</pallas_src>

<mosaic_0001>
module attributes {stable_mosaic.version = 11 : i64} {
  func.func @_mixconv_kernel(%arg0: i32, %arg1: memref<1x4x20x20xf32, #tpu.memory_space<vmem>>, %arg2: memref<8x68xf32, #tpu.memory_space<vmem>>, %arg3: memref<8x1xf32, #tpu.memory_space<vmem>>, %arg4: memref<1x8x256xf32, #tpu.memory_space<vmem>>) attributes {dimension_semantics = [#tpu.dimension_semantics<parallel>], iteration_bounds = array<i64: 2>, scalar_prefetch = 0 : i64, scratch_operands = 0 : i64, tpu.core_type = #tpu.core_type<tc>, window_params = [{transform_indices = @transform_0, window_bounds = array<i64: 1, 4, 20, 20>}, {pipeline_mode = #tpu.pipeline_mode<synchronous>, transform_indices = @transform_1, window_bounds = array<i64: 8, 68>}, {pipeline_mode = #tpu.pipeline_mode<synchronous>, transform_indices = @transform_2, window_bounds = array<i64: 8, 1>}, {transform_indices = @transform_3, window_bounds = array<i64: 1, 8, 256>}]} {
    %c0 = arith.constant 0 : index
    %c0_0 = arith.constant 0 : index
    %c0_1 = arith.constant 0 : index
    %c0_2 = arith.constant 0 : index
    %0 = vector.load %arg1[%c0, %c0_0, %c0_1, %c0_2] : memref<1x4x20x20xf32, #tpu.memory_space<vmem>>, vector<1x4x20x20xf32>
    %1 = vector.shape_cast %0 : vector<1x4x20x20xf32> to vector<4x20x20xf32>
    %2 = vector.extract_strided_slice %1 {offsets = [0, 0, 0], sizes = [2, 20, 20], strides = [1, 1, 1]} : vector<4x20x20xf32> to vector<2x20x20xf32>
    %3 = vector.extract_strided_slice %1 {offsets = [2, 0, 0], sizes = [2, 20, 20], strides = [1, 1, 1]} : vector<4x20x20xf32> to vector<2x20x20xf32>
    %4 = vector.extract_strided_slice %2 {offsets = [0, 1, 1], sizes = [2, 16, 16], strides = [1, 1, 1]} : vector<2x20x20xf32> to vector<2x16x16xf32>
    %5 = vector.extract_strided_slice %2 {offsets = [0, 1, 2], sizes = [2, 16, 16], strides = [1, 1, 1]} : vector<2x20x20xf32> to vector<2x16x16xf32>
    %6 = vector.extract_strided_slice %2 {offsets = [0, 1, 3], sizes = [2, 16, 16], strides = [1, 1, 1]} : vector<2x20x20xf32> to vector<2x16x16xf32>
    %7 = vector.extract_strided_slice %2 {offsets = [0, 2, 1], sizes = [2, 16, 16], strides = [1, 1, 1]} : vector<2x20x20xf32> to vector<2x16x16xf32>
    %8 = vector.extract_strided_slice %2 {offsets = [0, 2, 2], sizes = [2, 16, 16], strides = [1, 1, 1]} : vector<2x20x20xf32> to vector<2x16x16xf32>
    %9 = vector.extract_strided_slice %2 {offsets = [0, 2, 3], sizes = [2, 16, 16], strides = [1, 1, 1]} : vector<2x20x20xf32> to vector<2x16x16xf32>
    %10 = vector.extract_strided_slice %2 {offsets = [0, 3, 1], sizes = [2, 16, 16], strides = [1, 1, 1]} : vector<2x20x20xf32> to vector<2x16x16xf32>
    %11 = vector.extract_strided_slice %2 {offsets = [0, 3, 2], sizes = [2, 16, 16], strides = [1, 1, 1]} : vector<2x20x20xf32> to vector<2x16x16xf32>
    %12 = vector.extract_strided_slice %2 {offsets = [0, 3, 3], sizes = [2, 16, 16], strides = [1, 1, 1]} : vector<2x20x20xf32> to vector<2x16x16xf32>
    %13 = vector.extract_strided_slice %3 {offsets = [0, 0, 0], sizes = [2, 16, 16], strides = [1, 1, 1]} : vector<2x20x20xf32> to vector<2x16x16xf32>
    %14 = vector.extract_strided_slice %3 {offsets = [0, 0, 1], sizes = [2, 16, 16], strides = [1, 1, 1]} : vector<2x20x20xf32> to vector<2x16x16xf32>
    %15 = vector.extract_strided_slice %3 {offsets = [0, 0, 2], sizes = [2, 16, 16], strides = [1, 1, 1]} : vector<2x20x20xf32> to vector<2x16x16xf32>
    %16 = vector.extract_strided_slice %3 {offsets = [0, 0, 3], sizes = [2, 16, 16], strides = [1, 1, 1]} : vector<2x20x20xf32> to vector<2x16x16xf32>
    %17 = vector.extract_strided_slice %3 {offsets = [0, 0, 4], sizes = [2, 16, 16], strides = [1, 1, 1]} : vector<2x20x20xf32> to vector<2x16x16xf32>
    %18 = vector.extract_strided_slice %3 {offsets = [0, 1, 0], sizes = [2, 16, 16], strides = [1, 1, 1]} : vector<2x20x20xf32> to vector<2x16x16xf32>
    %19 = vector.extract_strided_slice %3 {offsets = [0, 1, 1], sizes = [2, 16, 16], strides = [1, 1, 1]} : vector<2x20x20xf32> to vector<2x16x16xf32>
    %20 = vector.extract_strided_slice %3 {offsets = [0, 1, 2], sizes = [2, 16, 16], strides = [1, 1, 1]} : vector<2x20x20xf32> to vector<2x16x16xf32>
    %21 = vector.extract_strided_slice %3 {offsets = [0, 1, 3], sizes = [2, 16, 16], strides = [1, 1, 1]} : vector<2x20x20xf32> to vector<2x16x16xf32>
    %22 = vector.extract_strided_slice %3 {offsets = [0, 1, 4], sizes = [2, 16, 16], strides = [1, 1, 1]} : vector<2x20x20xf32> to vector<2x16x16xf32>
    %23 = vector.extract_strided_slice %3 {offsets = [0, 2, 0], sizes = [2, 16, 16], strides = [1, 1, 1]} : vector<2x20x20xf32> to vector<2x16x16xf32>
    %24 = vector.extract_strided_slice %3 {offsets = [0, 2, 1], sizes = [2, 16, 16], strides = [1, 1, 1]} : vector<2x20x20xf32> to vector<2x16x16xf32>
    %25 = vector.extract_strided_slice %3 {offsets = [0, 2, 2], sizes = [2, 16, 16], strides = [1, 1, 1]} : vector<2x20x20xf32> to vector<2x16x16xf32>
    %26 = vector.extract_strided_slice %3 {offsets = [0, 2, 3], sizes = [2, 16, 16], strides = [1, 1, 1]} : vector<2x20x20xf32> to vector<2x16x16xf32>
    %27 = vector.extract_strided_slice %3 {offsets = [0, 2, 4], sizes = [2, 16, 16], strides = [1, 1, 1]} : vector<2x20x20xf32> to vector<2x16x16xf32>
    %28 = vector.extract_strided_slice %3 {offsets = [0, 3, 0], sizes = [2, 16, 16], strides = [1, 1, 1]} : vector<2x20x20xf32> to vector<2x16x16xf32>
    %29 = vector.extract_strided_slice %3 {offsets = [0, 3, 1], sizes = [2, 16, 16], strides = [1, 1, 1]} : vector<2x20x20xf32> to vector<2x16x16xf32>
    %30 = vector.extract_strided_slice %3 {offsets = [0, 3, 2], sizes = [2, 16, 16], strides = [1, 1, 1]} : vector<2x20x20xf32> to vector<2x16x16xf32>
    %31 = vector.extract_strided_slice %3 {offsets = [0, 3, 3], sizes = [2, 16, 16], strides = [1, 1, 1]} : vector<2x20x20xf32> to vector<2x16x16xf32>
    %32 = vector.extract_strided_slice %3 {offsets = [0, 3, 4], sizes = [2, 16, 16], strides = [1, 1, 1]} : vector<2x20x20xf32> to vector<2x16x16xf32>
    %33 = vector.extract_strided_slice %3 {offsets = [0, 4, 0], sizes = [2, 16, 16], strides = [1, 1, 1]} : vector<2x20x20xf32> to vector<2x16x16xf32>
    %34 = vector.extract_strided_slice %3 {offsets = [0, 4, 1], sizes = [2, 16, 16], strides = [1, 1, 1]} : vector<2x20x20xf32> to vector<2x16x16xf32>
    %35 = vector.extract_strided_slice %3 {offsets = [0, 4, 2], sizes = [2, 16, 16], strides = [1, 1, 1]} : vector<2x20x20xf32> to vector<2x16x16xf32>
    %36 = vector.extract_strided_slice %3 {offsets = [0, 4, 3], sizes = [2, 16, 16], strides = [1, 1, 1]} : vector<2x20x20xf32> to vector<2x16x16xf32>
    %37 = vector.extract_strided_slice %3 {offsets = [0, 4, 4], sizes = [2, 16, 16], strides = [1, 1, 1]} : vector<2x20x20xf32> to vector<2x16x16xf32>
    %38 = tpu.concatenate %4, %5, %6, %7, %8, %9, %10, %11, %12, %13, %14, %15, %16, %17, %18, %19 in 0 : vector<2x16x16xf32>, vector<2x16x16xf32>, vector<2x16x16xf32>, vector<2x16x16xf32>, vector<2x16x16xf32>, vector<2x16x16xf32>, vector<2x16x16xf32>, vector<2x16x16xf32>, vector<2x16x16xf32>, vector<2x16x16xf32>, vector<2x16x16xf32>, vector<2x16x16xf32>, vector<2x16x16xf32>, vector<2x16x16xf32>, vector<2x16x16xf32>, vector<2x16x16xf32> -> vector<32x16x16xf32>
    %39 = tpu.concatenate %20, %21, %22, %23, %24, %25, %26, %27, %28, %29, %30, %31, %32, %33, %34, %35 in 0 : vector<2x16x16xf32>, vector<2x16x16xf32>, vector<2x16x16xf32>, vector<2x16x16xf32>, vector<2x16x16xf32>, vector<2x16x16xf32>, vector<2x16x16xf32>, vector<2x16x16xf32>, vector<2x16x16xf32>, vector<2x16x16xf32>, vector<2x16x16xf32>, vector<2x16x16xf32>, vector<2x16x16xf32>, vector<2x16x16xf32>, vector<2x16x16xf32>, vector<2x16x16xf32> -> vector<32x16x16xf32>
    %40 = tpu.concatenate %36, %37 in 0 : vector<2x16x16xf32>, vector<2x16x16xf32> -> vector<4x16x16xf32>
    %41 = tpu.concatenate %38, %39, %40 in 0 : vector<32x16x16xf32>, vector<32x16x16xf32>, vector<4x16x16xf32> -> vector<68x16x16xf32>
    %42 = vector.shape_cast %41 : vector<68x16x16xf32> to vector<68x256xf32>
    %c0_3 = arith.constant 0 : index
    %c0_4 = arith.constant 0 : index
    %43 = vector.load %arg2[%c0_3, %c0_4] : memref<8x68xf32, #tpu.memory_space<vmem>>, vector<8x68xf32>
    %cst = arith.constant dense<0.000000e+00> : vector<8x256xf32>
    %44 = tpu.matmul %43, %42, %cst {dimension_numbers = #tpu.dot_dimension_numbers<[1], [0], [0], [1], [0, 0, 1, 1], [], []>} : vector<8x68xf32>, vector<68x256xf32>, vector<8x256xf32> -> vector<8x256xf32>
    %c0_5 = arith.constant 0 : index
    %c0_6 = arith.constant 0 : index
    %45 = vector.load %arg3[%c0_5, %c0_6] : memref<8x1xf32, #tpu.memory_space<vmem>>, vector<8x1xf32>
    %46 = vector.broadcast %45 : vector<8x1xf32> to vector<8x256xf32>
    %47 = arith.addf %44, %46 : vector<8x256xf32>
    %c0_7 = arith.constant 0 : index
    %c0_8 = arith.constant 0 : index
    %c0_9 = arith.constant 0 : index
    %48 = vector.load %arg4[%c0_7, %c0_8, %c0_9] : memref<1x8x256xf32, #tpu.memory_space<vmem>>, vector<1x8x256xf32>
    %49 = vector.shape_cast %48 : vector<1x8x256xf32> to vector<8x256xf32>
    %50 = vector.shape_cast %47 : vector<8x256xf32> to vector<1x8x256xf32>
    tpu.vector_store %arg4[%c0_7, %c0_8, %c0_9], %50 {strides = array<i32>} : memref<1x8x256xf32, #tpu.memory_space<vmem>>, vector<1x8x256xf32>,
    return
  }
  func.func @transform_0(%arg0: i32) -> (i32, i32, i32, i32) {
    %c0_i32 = arith.constant 0 : i32
    %c0_i32_0 = arith.constant 0 : i32
    %c0_i32_1 = arith.constant 0 : i32
    %c0_i32_2 = arith.constant 0 : i32
    return %arg0, %c0_i32, %c0_i32_0, %c0_i32_1 : i32, i32, i32, i32
  }
  func.func @transform_1(%arg0: i32) -> (i32, i32) {
    %c0_i32 = arith.constant 0 : i32
    %c0_i32_0 = arith.constant 0 : i32
    %c0_i32_1 = arith.constant 0 : i32
    return %c0_i32, %c0_i32_0 : i32, i32
  }
  func.func @transform_2(%arg0: i32) -> (i32, i32) {
    %c0_i32 = arith.constant 0 : i32
    %c0_i32_0 = arith.constant 0 : i32
    %c0_i32_1 = arith.constant 0 : i32
    return %c0_i32, %c0_i32_0 : i32, i32
  }
  func.func @transform_3(%arg0: i32) -> (i32, i32, i32) {
    %c0_i32 = arith.constant 0 : i32
    %c0_i32_0 = arith.constant 0 : i32
    %c0_i32_1 = arith.constant 0 : i32
    return %arg0, %c0_i32, %c0_i32_0 : i32, i32, i32
  }
}

</mosaic_0001>

<llo_original>
// kernel: tpu_custom_call.1
$region0: #{tpu_custom_call.1}
  #allocation0 [shape = 'u32[]', space=smem, size = 0x4, offset = 0x4, fixed_abs, tag = 'smem constant byte address 0x4 - core index']
  #allocation1 [shape = 'u32[144,128]{1,0:T(1,128)}', space=vmem, size = 0x12000, scoped, tag = 'internal scratch']
  %s0 = inlined_call_operand.vmem [shape: f32[2,4,20,20], index: 0, kind: input, shape index: {}]
  %s1 = inlined_call_operand.vmem [shape: f32[8,68], index: 1, kind: input, shape index: {}]
  %s2 = inlined_call_operand.vmem [shape: f32[8,1], index: 2, kind: input, shape index: {}]
  %s3 = inlined_call_operand.hbm [shape: f32[2,8,256], index: 3, kind: output, shape index: {}]
  %s4 = sld [smem:[#allocation0]]
  $region45: #{tpu_custom_call.1} parent=0
    _
  %s6 = ssub.s32 1, %s4
  %s7 = scalar_select 0, %s6, %s4
  $region1: #{tpu_custom_call.1} parent=0
    #allocation2 [shape = 'u8[16384]{0}', space=vmem, size = 0x4000, scoped, tag = 'output window, operand 0']
    #allocation3 [shape = 's32[2]{0}', space=sflag, size = 0x8, scoped, tag = 'scoped memory for tpu_custom_call.1']
    %8 = vsyncpa [#allocation3], 0
    %s9 = scalar_lea.sflag [#allocation3], 1
    %10 = vsyncpa %s9, 0
    loop: start=0, step=1, limit=4
    $region2: #{tpu_custom_call.1} parent=1 // loop_pre_header
      _
    $region3: #{tpu_custom_call.1} parent=1 // loop_header
      %s12 = sphi 0, %s16
      %p13 = scmp.ge.s32.totalorder %s12, 4
      %s22 = sphi 0, %s24
      %s25 = sphi 0, %s22
      %s26 = sphi 0, %s25
      %s42 = sphi 0, %s26
      %s46 = sphi 0, %s46
      %s48 = sphi 0, %s46
      %s49 = sphi 0, %s48
      %s63 = sphi 0, %s49
      %s67 = sphi 0, %s67
      %s69 = sphi 0, %s67
      %s70 = sphi 0, %s69
      %s84 = sphi 0, %s70
      %s90 = sphi 0, %s92
      %s93 = sphi 0, %s90
      %s94 = sphi 0, %s93
      %s110 = sphi 0, %s94
    $region4: #{tpu_custom_call.1} parent=1 // loop_header_branch
      %15 = sbr.rel (%p13) target = $region8
    $region5: #{tpu_custom_call.1} parent=1 // loop_body
      %s17 = ssub.s32 %s12, 1
      %s18 = ssub.s32 %s12, 2
      %s19 = sadd.s32 %s12, 1
      %s20 = ssub.s32 %s12, %s19
      %p21 = scmp.eq.s32.totalorder %s20, 0
      %s23 = sadd.s32 %s22, 1
      %s24 = scalar_select %p21, %s22, %s23
      %p27 = pneg %p21
      %p28 = scmp.eq.s32.totalorder %s12, 1
      %p29 = por %p27, %p28
      %p30 = scmp.ne.s32.totalorder %s22, %s25
      %p31 = scmp.eq.s32.totalorder %s12, 0
      %p32 = por %p30, %p31
      %p33 = scmp.ne.s32.totalorder %s22, %s25
      %p34 = scmp.eq.s32.totalorder %s17, 1
      %p35 = por %p33, %p34
      %p36 = scmp.ne.s32.totalorder %s25, %s26
      %p37 = scmp.eq.s32.totalorder %s17, 0
      %p38 = por %p36, %p37
      %p39 = scmp.ne.s32.totalorder %s25, %s26
      %p40 = scmp.eq.s32.totalorder %s18, 1
      %p41 = por %p39, %p40
      %p43 = scmp.ne.s32.totalorder %s26, %s42
      %p44 = scmp.eq.s32.totalorder %s18, 0
      %p45 = por %p43, %p44
      %s47 = sadd.s32 %s46, 1
      %p50 = scmp.eq.s32.totalorder %s12, 1
      %p51 = scmp.ne.s32.totalorder %s46, %s48
      %p52 = scmp.eq.s32.totalorder %s12, 0
      %p53 = por %p51, %p52
      %p54 = scmp.ne.s32.totalorder %s46, %s48
      %p55 = scmp.eq.s32.totalorder %s17, 1
      %p56 = por %p54, %p55
      %p57 = scmp.ne.s32.totalorder %s48, %s49
      %p58 = scmp.eq.s32.totalorder %s17, 0
      %p59 = por %p57, %p58
      %p60 = scmp.ne.s32.totalorder %s48, %s49
      %p61 = scmp.eq.s32.totalorder %s18, 1
      %p62 = por %p60, %p61
      %p64 = scmp.ne.s32.totalorder %s49, %s63
      %p65 = scmp.eq.s32.totalorder %s18, 0
      %p66 = por %p64, %p65
      %s68 = sadd.s32 %s67, 1
      %p71 = scmp.eq.s32.totalorder %s12, 1
      %p72 = scmp.ne.s32.totalorder %s67, %s69
      %p73 = scmp.eq.s32.totalorder %s12, 0
      %p74 = por %p72, %p73
      %p75 = scmp.ne.s32.totalorder %s67, %s69
      %p76 = scmp.eq.s32.totalorder %s17, 1
      %p77 = por %p75, %p76
      %p78 = scmp.ne.s32.totalorder %s69, %s70
      %p79 = scmp.eq.s32.totalorder %s17, 0
      %p80 = por %p78, %p79
      %p81 = scmp.ne.s32.totalorder %s69, %s70
      %p82 = scmp.eq.s32.totalorder %s18, 1
      %p83 = por %p81, %p82
      %p85 = scmp.ne.s32.totalorder %s70, %s84
      %p86 = scmp.eq.s32.totalorder %s18, 0
      %p87 = por %p85, %p86
      %s88 = ssub.s32 %s12, %s19
      %p89 = scmp.eq.s32.totalorder %s88, 0
      %s91 = sadd.s32 %s90, 1
      %s92 = scalar_select %p89, %s90, %s91
      %p95 = pneg %p89
      %p96 = scmp.eq.s32.totalorder %s12, 1
      %p97 = por %p95, %p96
      %p98 = scmp.ne.s32.totalorder %s90, %s93
      %p99 = scmp.eq.s32.totalorder %s12, 0
      %p100 = por %p98, %p99
      %p101 = scmp.ne.s32.totalorder %s90, %s93
      %p102 = scmp.eq.s32.totalorder %s17, 1
      %p103 = por %p101, %p102
      %p104 = scmp.ne.s32.totalorder %s93, %s94
      %p105 = scmp.eq.s32.totalorder %s17, 0
      %p106 = por %p104, %p105
      %p107 = scmp.ne.s32.totalorder %s93, %s94
      %p108 = scmp.eq.s32.totalorder %s18, 1
      %p109 = por %p107, %p108
      %p111 = scmp.ne.s32.totalorder %s94, %s110
      %p112 = scmp.eq.s32.totalorder %s18, 0
      %p113 = por %p111, %p112
      %p114 = scmp.le.s32.totalorder 1, %s12
      %p115 = scmp.lt.s32.totalorder %s12, 3
      %p116 = pnand %p114, %p115
      %p117 = pneg %p116
      // Predicated region
      $region9: #{tpu_custom_call.1} parent=5 // pred_check
        _
      $region10: #{tpu_custom_call.1} parent=5 // pred_check_branch
        %119 = sbr.rel (%p116) target = $region12
      $region11: #{tpu_custom_call.1} parent=5 // pred_region
        %s120 = ssub.s32 %s12, 1
        // Predicated region
        $region13: #{tpu_custom_call.1} parent=11 // pred_check
          %p121 = pneg %p59
        $region14: #{tpu_custom_call.1} parent=11 // pred_check_branch
          %123 = sbr.rel (%p121) target = $region16
        $region15: #{tpu_custom_call.1} parent=11 // pred_region
          _
        $region16: #{tpu_custom_call.1} parent=11 // pred_fallthru
          _
        // Predicated region
        $region17: #{tpu_custom_call.1} parent=11 // pred_check
          %p124 = pneg %p80
        $region18: #{tpu_custom_call.1} parent=11 // pred_check_branch
          %126 = sbr.rel (%p124) target = $region20
        $region19: #{tpu_custom_call.1} parent=11 // pred_region
          _
        $region20: #{tpu_custom_call.1} parent=11 // pred_fallthru
          _
      $region12: #{tpu_custom_call.1} parent=5 // pred_fallthru
        _
      %p127 = scmp.lt.s32.totalorder %s12, 2
      // Predicated region
      $region21: #{tpu_custom_call.1} parent=5 // pred_check
        %p128 = pneg %p127
      $region22: #{tpu_custom_call.1} parent=5 // pred_check_branch
        %130 = sbr.rel (%p128) target = $region24
      $region23: #{tpu_custom_call.1} parent=5 // pred_region
        // Predicated region
        $region25: #{tpu_custom_call.1} parent=23 // pred_check
          %p131 = pneg %p32
        $region26: #{tpu_custom_call.1} parent=23 // pred_check_branch
          %133 = sbr.rel (%p131) target = $region28
        $region27: #{tpu_custom_call.1} parent=23 // pred_region
          %p134 = scmp.lt.s32.totalorder %s12, 1
          %s135 = scalar_select %p134, %s12, 1
          %s136 = smul.addr %s135, 12
          %s137 = smul.addr %s136, 8
          %s138 = scalar_lea.vmem %s0, %s137
        $region28: #{tpu_custom_call.1} parent=23 // pred_fallthru
          _
      $region24: #{tpu_custom_call.1} parent=5 // pred_fallthru
        _
      %p139 = scmp.le.s32.totalorder 1, %s12
      %p140 = scmp.lt.s32.totalorder %s12, 3
      %p141 = pnand %p139, %p140
      %p142 = pneg %p141
      // Predicated region
      $region29: #{tpu_custom_call.1} parent=5 // pred_check
        _
      $region30: #{tpu_custom_call.1} parent=5 // pred_check_branch
        %144 = sbr.rel (%p141) target = $region32
      $region31: #{tpu_custom_call.1} parent=5 // pred_region
        %s145 = ssub.s32 %s12, 1
        %p146 = scmp.lt.s32.totalorder %s17, 1
        %s147 = scalar_select %p146, %s17, 1
        %s148 = smul.addr %s147, 12
        %s149 = smul.addr %s148, 8
        %s150 = scalar_lea.vmem %s0, %s149
        %p151 = pneg %p38
        %p152 = pneg %p35
        %p153 = pneg %p59
        %p154 = pneg %p56
        %p155 = pneg %p80
        %p156 = pneg %p77
        %p157 = pneg %p106
        %p158 = pneg %p103
        %s159 = sand.u32 %s93, 1
        %s160 = scalar_lea.sflag [#allocation3], %s159
        %s161 = sand.u32 %s93, 1
        %s162 = smul.addr %s161, 16
        %s163 = scalar_lea.vmem [#allocation2], %s162
        %p164 = scmp.lt.s32.totalorder %s17, 1
        %s165 = scalar_select %p164, %s17, 1
        %s166 = smul.addr %s165, 12
        %s167 = smul.addr %s166, 8
        %s168 = scalar_lea.vmem %s0, %s167
        %v169 = vld [vmem:[%s168] sm:$0xff]
        %v170 = vld [vmem:[%s168 + $0x8] sm:$0xff]
        %v171 = vld [vmem:[%s168 + $0x10] sm:$0xf]
        %v172 = vld [vmem:[%s168 + $0x18] sm:$0xff]
        %v173 = vld [vmem:[%s168 + $0x20] sm:$0xff]
        %v174 = vld [vmem:[%s168 + $0x28] sm:$0xf]
        %v175 = vld [vmem:[%s168 + $0x30] sm:$0xff]
        %v176 = vld [vmem:[%s168 + $0x38] sm:$0xff]
        %v177 = vld [vmem:[%s168 + $0x40] sm:$0xf]
        %v178 = vld [vmem:[%s168 + $0x48] sm:$0xff]
        %v179 = vld [vmem:[%s168 + $0x50] sm:$0xff]
        %v180 = vld [vmem:[%s168 + $0x58] sm:$0xf]
        %187 = vrot.lane.b32.xlu0 %v169, 127
        %v188 = vpop.permute.xlu0 %187
        %189 = vrot.lane.b32.xlu0 %v170, 127
        %v190 = vpop.permute.xlu0 %189
        %191 = vrot.lane.b32.xlu0 %v171, 127
        %v192 = vpop.permute.xlu0 %191
        %193 = vrot.lane.b32.xlu0 %v172, 127
        %v194 = vpop.permute.xlu0 %193
        %195 = vrot.lane.b32.xlu0 %v173, 127
        %v196 = vpop.permute.xlu0 %195
        %197 = vrot.lane.b32.xlu0 %v174, 127
        %v198 = vpop.permute.xlu0 %197
        %199 = vrot.lane.b32.xlu0 %v169, 126
        %v200 = vpop.permute.xlu0 %199
        %201 = vrot.lane.b32.xlu0 %v170, 126
        %v202 = vpop.permute.xlu0 %201
        %203 = vrot.lane.b32.xlu0 %v171, 126
        %v204 = vpop.permute.xlu0 %203
        %205 = vrot.lane.b32.xlu0 %v172, 126
        %v206 = vpop.permute.xlu0 %205
        %207 = vrot.lane.b32.xlu0 %v173, 126
        %v208 = vpop.permute.xlu0 %207
        %209 = vrot.lane.b32.xlu0 %v174, 126
        %v210 = vpop.permute.xlu0 %209
        %vm211 = vcmask 1046528
        %v212 = vrot.slane %v169, 1
        %v213 = vrot.slane %v170, 1
        %v214 = vsel %vm211, %v212, %v213
        %v215 = vrot.slane %v171, 1
        %v216 = vsel %vm211, %v213, %v215
        %v217 = vrot.slane %v172, 1
        %v218 = vrot.slane %v173, 1
        %v219 = vsel %vm211, %v217, %v218
        %v220 = vrot.slane %v174, 1
        %v221 = vsel %vm211, %v218, %v220
        %222 = vrot.lane.b32.xlu0 %v214, 127
        %v223 = vpop.permute.xlu0 %222
        %224 = vrot.lane.b32.xlu0 %v216, 127
        %v225 = vpop.permute.xlu0 %224
        %226 = vrot.lane.b32.xlu0 %v215, 127
        %v227 = vpop.permute.xlu0 %226
        %228 = vrot.lane.b32.xlu0 %v219, 127
        %v229 = vpop.permute.xlu0 %228
        %230 = vrot.lane.b32.xlu0 %v221, 127
        %v231 = vpop.permute.xlu0 %230
        %232 = vrot.lane.b32.xlu0 %v220, 127
        %v233 = vpop.permute.xlu0 %232
        %234 = vrot.lane.b32.xlu0 %v214, 126
        %v235 = vpop.permute.xlu0 %234
        %236 = vrot.lane.b32.xlu0 %v216, 126
        %v237 = vpop.permute.xlu0 %236
        %238 = vrot.lane.b32.xlu0 %v215, 126
        %v239 = vpop.permute.xlu0 %238
        %240 = vrot.lane.b32.xlu0 %v219, 126
        %v241 = vpop.permute.xlu0 %240
        %242 = vrot.lane.b32.xlu0 %v221, 126
        %v243 = vpop.permute.xlu0 %242
        %244 = vrot.lane.b32.xlu0 %v220, 126
        %v245 = vpop.permute.xlu0 %244
        %vm246 = vcmask 1045504
        %v247 = vrot.slane %v169, 2
        %v248 = vrot.slane %v170, 2
        %v249 = vsel %vm246, %v247, %v248
        %v250 = vrot.slane %v171, 2
        %v251 = vsel %vm246, %v248, %v250
        %v252 = vrot.slane %v172, 2
        %v253 = vrot.slane %v173, 2
        %v254 = vsel %vm246, %v252, %v253
        %v255 = vrot.slane %v174, 2
        %v256 = vsel %vm246, %v253, %v255
        %257 = vrot.lane.b32.xlu0 %v249, 127
        %v258 = vpop.permute.xlu0 %257
        %259 = vrot.lane.b32.xlu0 %v251, 127
        %v260 = vpop.permute.xlu0 %259
        %261 = vrot.lane.b32.xlu0 %v250, 127
        %v262 = vpop.permute.xlu0 %261
        %263 = vrot.lane.b32.xlu0 %v254, 127
        %v264 = vpop.permute.xlu0 %263
        %265 = vrot.lane.b32.xlu0 %v256, 127
        %v266 = vpop.permute.xlu0 %265
        %267 = vrot.lane.b32.xlu0 %v255, 127
        %v268 = vpop.permute.xlu0 %267
        %269 = vrot.lane.b32.xlu0 %v249, 126
        %v270 = vpop.permute.xlu0 %269
        %271 = vrot.lane.b32.xlu0 %v251, 126
        %v272 = vpop.permute.xlu0 %271
        %273 = vrot.lane.b32.xlu0 %v250, 126
        %v274 = vpop.permute.xlu0 %273
        %275 = vrot.lane.b32.xlu0 %v254, 126
        %v276 = vpop.permute.xlu0 %275
        %277 = vrot.lane.b32.xlu0 %v256, 126
        %v278 = vpop.permute.xlu0 %277
        %279 = vrot.lane.b32.xlu0 %v255, 126
        %v280 = vpop.permute.xlu0 %279
        %vm285 = vcmask 1040384
        %v286 = vrot.slane %v175, 7
        %v287 = vrot.slane %v176, 7
        %v288 = vsel %vm285, %v286, %v287
        %v289 = vrot.slane %v178, 7
        %v290 = vrot.slane %v179, 7
        %v291 = vsel %vm285, %v289, %v290
        %292 = vrot.lane.b32.xlu0 %v286, 1
        %v293 = vpop.permute.xlu0 %292
        %294 = vrot.lane.b32.xlu0 %v288, 1
        %v295 = vpop.permute.xlu0 %294
        %296 = vrot.lane.b32.xlu0 %v287, 1
        %v297 = vpop.permute.xlu0 %296
        %298 = vrot.lane.b32.xlu0 %v289, 1
        %v299 = vpop.permute.xlu0 %298
        %300 = vrot.lane.b32.xlu0 %v291, 1
        %v301 = vpop.permute.xlu0 %300
        %302 = vrot.lane.b32.xlu0 %v290, 1
        %v303 = vpop.permute.xlu0 %302
        %304 = vrot.lane.b32.xlu0 %v286, 127
        %v305 = vpop.permute.xlu0 %304
        %306 = vrot.lane.b32.xlu0 %v288, 127
        %v307 = vpop.permute.xlu0 %306
        %308 = vrot.lane.b32.xlu0 %v287, 127
        %v309 = vpop.permute.xlu0 %308
        %310 = vrot.lane.b32.xlu0 %v289, 127
        %v311 = vpop.permute.xlu0 %310
        %312 = vrot.lane.b32.xlu0 %v291, 127
        %v313 = vpop.permute.xlu0 %312
        %314 = vrot.lane.b32.xlu0 %v290, 127
        %v315 = vpop.permute.xlu0 %314
        %316 = vrot.lane.b32.xlu0 %v286, 126
        %v317 = vpop.permute.xlu0 %316
        %318 = vrot.lane.b32.xlu0 %v288, 126
        %v319 = vpop.permute.xlu0 %318
        %320 = vrot.lane.b32.xlu0 %v287, 126
        %v321 = vpop.permute.xlu0 %320
        %322 = vrot.lane.b32.xlu0 %v289, 126
        %v323 = vpop.permute.xlu0 %322
        %324 = vrot.lane.b32.xlu0 %v291, 126
        %v325 = vpop.permute.xlu0 %324
        %326 = vrot.lane.b32.xlu0 %v290, 126
        %v327 = vpop.permute.xlu0 %326
        %328 = vrot.lane.b32.xlu0 %v286, 125
        %v329 = vpop.permute.xlu0 %328
        %330 = vrot.lane.b32.xlu0 %v288, 125
        %v331 = vpop.permute.xlu0 %330
        %332 = vrot.lane.b32.xlu0 %v287, 125
        %v333 = vpop.permute.xlu0 %332
        %334 = vrot.lane.b32.xlu0 %v289, 125
        %v335 = vpop.permute.xlu0 %334
        %336 = vrot.lane.b32.xlu0 %v291, 125
        %v337 = vpop.permute.xlu0 %336
        %338 = vrot.lane.b32.xlu0 %v290, 125
        %v339 = vpop.permute.xlu0 %338
        %342 = vrot.lane.b32.xlu0 %v175, 1
        %v343 = vpop.permute.xlu0 %342
        %344 = vrot.lane.b32.xlu0 %v176, 1
        %v345 = vpop.permute.xlu0 %344
        %346 = vrot.lane.b32.xlu0 %v177, 1
        %v347 = vpop.permute.xlu0 %346
        %348 = vrot.lane.b32.xlu0 %v178, 1
        %v349 = vpop.permute.xlu0 %348
        %350 = vrot.lane.b32.xlu0 %v179, 1
        %v351 = vpop.permute.xlu0 %350
        %352 = vrot.lane.b32.xlu0 %v180, 1
        %v353 = vpop.permute.xlu0 %352
        %354 = vrot.lane.b32.xlu0 %v175, 127
        %v355 = vpop.permute.xlu0 %354
        %356 = vrot.lane.b32.xlu0 %v176, 127
        %v357 = vpop.permute.xlu0 %356
        %358 = vrot.lane.b32.xlu0 %v177, 127
        %v359 = vpop.permute.xlu0 %358
        %360 = vrot.lane.b32.xlu0 %v178, 127
        %v361 = vpop.permute.xlu0 %360
        %362 = vrot.lane.b32.xlu0 %v179, 127
        %v363 = vpop.permute.xlu0 %362
        %364 = vrot.lane.b32.xlu0 %v180, 127
        %v365 = vpop.permute.xlu0 %364
        %366 = vrot.lane.b32.xlu0 %v175, 126
        %v367 = vpop.permute.xlu0 %366
        %368 = vrot.lane.b32.xlu0 %v176, 126
        %v369 = vpop.permute.xlu0 %368
        %370 = vrot.lane.b32.xlu0 %v177, 126
        %v371 = vpop.permute.xlu0 %370
        %372 = vrot.lane.b32.xlu0 %v178, 126
        %v373 = vpop.permute.xlu0 %372
        %374 = vrot.lane.b32.xlu0 %v179, 126
        %v375 = vpop.permute.xlu0 %374
        %376 = vrot.lane.b32.xlu0 %v180, 126
        %v377 = vpop.permute.xlu0 %376
        %v378 = vrot.slane %v175, 1
        %v379 = vrot.slane %v176, 1
        %v380 = vsel %vm211, %v378, %v379
        %v381 = vrot.slane %v177, 1
        %v382 = vsel %vm211, %v379, %v381
        %v383 = vrot.slane %v178, 1
        %v384 = vrot.slane %v179, 1
        %v385 = vsel %vm211, %v383, %v384
        %v386 = vrot.slane %v180, 1
        %v387 = vsel %vm211, %v384, %v386
        %388 = vrot.lane.b32.xlu0 %v380, 2
        %v389 = vpop.permute.xlu0 %388
        %390 = vrot.lane.b32.xlu0 %v382, 2
        %v391 = vpop.permute.xlu0 %390
        %392 = vrot.lane.b32.xlu0 %v381, 2
        %v393 = vpop.permute.xlu0 %392
        %394 = vrot.lane.b32.xlu0 %v385, 2
        %v395 = vpop.permute.xlu0 %394
        %396 = vrot.lane.b32.xlu0 %v387, 2
        %v397 = vpop.permute.xlu0 %396
        %398 = vrot.lane.b32.xlu0 %v386, 2
        %v399 = vpop.permute.xlu0 %398
        %400 = vrot.lane.b32.xlu0 %v380, 1
        %v401 = vpop.permute.xlu0 %400
        %402 = vrot.lane.b32.xlu0 %v382, 1
        %v403 = vpop.permute.xlu0 %402
        %404 = vrot.lane.b32.xlu0 %v381, 1
        %v405 = vpop.permute.xlu0 %404
        %406 = vrot.lane.b32.xlu0 %v385, 1
        %v407 = vpop.permute.xlu0 %406
        %408 = vrot.lane.b32.xlu0 %v387, 1
        %v409 = vpop.permute.xlu0 %408
        %410 = vrot.lane.b32.xlu0 %v386, 1
        %v411 = vpop.permute.xlu0 %410
        %412 = vrot.lane.b32.xlu0 %v380, 127
        %v413 = vpop.permute.xlu0 %412
        %414 = vrot.lane.b32.xlu0 %v382, 127
        %v415 = vpop.permute.xlu0 %414
        %416 = vrot.lane.b32.xlu0 %v381, 127
        %v417 = vpop.permute.xlu0 %416
        %418 = vrot.lane.b32.xlu0 %v385, 127
        %v419 = vpop.permute.xlu0 %418
        %420 = vrot.lane.b32.xlu0 %v387, 127
        %v421 = vpop.permute.xlu0 %420
        %422 = vrot.lane.b32.xlu0 %v386, 127
        %v423 = vpop.permute.xlu0 %422
        %424 = vrot.lane.b32.xlu0 %v380, 126
        %v425 = vpop.permute.xlu0 %424
        %426 = vrot.lane.b32.xlu0 %v382, 126
        %v427 = vpop.permute.xlu0 %426
        %428 = vrot.lane.b32.xlu0 %v381, 126
        %v429 = vpop.permute.xlu0 %428
        %430 = vrot.lane.b32.xlu0 %v385, 126
        %v431 = vpop.permute.xlu0 %430
        %432 = vrot.lane.b32.xlu0 %v387, 126
        %v433 = vpop.permute.xlu0 %432
        %434 = vrot.lane.b32.xlu0 %v386, 126
        %v435 = vpop.permute.xlu0 %434
        %v436 = vrot.slane %v175, 2
        %v437 = vrot.slane %v176, 2
        %v438 = vsel %vm246, %v436, %v437
        %v439 = vrot.slane %v177, 2
        %v440 = vsel %vm246, %v437, %v439
        %v441 = vrot.slane %v178, 2
        %v442 = vrot.slane %v179, 2
        %v443 = vsel %vm246, %v441, %v442
        %v444 = vrot.slane %v180, 2
        %v445 = vsel %vm246, %v442, %v444
        %446 = vrot.lane.b32.xlu0 %v438, 2
        %v447 = vpop.permute.xlu0 %446
        %448 = vrot.lane.b32.xlu0 %v440, 2
        %v449 = vpop.permute.xlu0 %448
        %450 = vrot.lane.b32.xlu0 %v439, 2
        %v451 = vpop.permute.xlu0 %450
        %452 = vrot.lane.b32.xlu0 %v443, 2
        %v453 = vpop.permute.xlu0 %452
        %454 = vrot.lane.b32.xlu0 %v445, 2
        %v455 = vpop.permute.xlu0 %454
        %456 = vrot.lane.b32.xlu0 %v444, 2
        %v457 = vpop.permute.xlu0 %456
        %458 = vrot.lane.b32.xlu0 %v438, 1
        %v459 = vpop.permute.xlu0 %458
        %460 = vrot.lane.b32.xlu0 %v440, 1
        %v461 = vpop.permute.xlu0 %460
        %462 = vrot.lane.b32.xlu0 %v439, 1
        %v463 = vpop.permute.xlu0 %462
        %464 = vrot.lane.b32.xlu0 %v443, 1
        %v465 = vpop.permute.xlu0 %464
        %466 = vrot.lane.b32.xlu0 %v445, 1
        %v467 = vpop.permute.xlu0 %466
        %468 = vrot.lane.b32.xlu0 %v444, 1
        %v469 = vpop.permute.xlu0 %468
        %470 = vrot.lane.b32.xlu0 %v438, 127
        %v471 = vpop.permute.xlu0 %470
        %472 = vrot.lane.b32.xlu0 %v440, 127
        %v473 = vpop.permute.xlu0 %472
        %474 = vrot.lane.b32.xlu0 %v439, 127
        %v475 = vpop.permute.xlu0 %474
        %476 = vrot.lane.b32.xlu0 %v443, 127
        %v477 = vpop.permute.xlu0 %476
        %478 = vrot.lane.b32.xlu0 %v445, 127
        %v479 = vpop.permute.xlu0 %478
        %480 = vrot.lane.b32.xlu0 %v444, 127
        %v481 = vpop.permute.xlu0 %480
        %482 = vrot.lane.b32.xlu0 %v438, 126
        %v483 = vpop.permute.xlu0 %482
        %484 = vrot.lane.b32.xlu0 %v440, 126
        %v485 = vpop.permute.xlu0 %484
        %486 = vrot.lane.b32.xlu0 %v439, 126
        %v487 = vpop.permute.xlu0 %486
        %488 = vrot.lane.b32.xlu0 %v443, 126
        %v489 = vpop.permute.xlu0 %488
        %490 = vrot.lane.b32.xlu0 %v445, 126
        %v491 = vpop.permute.xlu0 %490
        %492 = vrot.lane.b32.xlu0 %v444, 126
        %v493 = vpop.permute.xlu0 %492
        %vm494 = vcmask 1044480
        %v495 = vrot.slane %v175, 3
        %v496 = vrot.slane %v176, 3
        %v497 = vsel %vm494, %v495, %v496
        %v498 = vrot.slane %v177, 3
        %v499 = vsel %vm494, %v496, %v498
        %v500 = vrot.slane %v178, 3
        %v501 = vrot.slane %v179, 3
        %v502 = vsel %vm494, %v500, %v501
        %v503 = vrot.slane %v180, 3
        %v504 = vsel %vm494, %v501, %v503
        %505 = vrot.lane.b32.xlu0 %v497, 2
        %v506 = vpop.permute.xlu0 %505
        %507 = vrot.lane.b32.xlu0 %v499, 2
        %v508 = vpop.permute.xlu0 %507
        %509 = vrot.lane.b32.xlu0 %v498, 2
        %v510 = vpop.permute.xlu0 %509
        %511 = vrot.lane.b32.xlu0 %v502, 2
        %v512 = vpop.permute.xlu0 %511
        %513 = vrot.lane.b32.xlu0 %v504, 2
        %v514 = vpop.permute.xlu0 %513
        %515 = vrot.lane.b32.xlu0 %v503, 2
        %v516 = vpop.permute.xlu0 %515
        %517 = vrot.lane.b32.xlu0 %v497, 1
        %v518 = vpop.permute.xlu0 %517
        %519 = vrot.lane.b32.xlu0 %v499, 1
        %v520 = vpop.permute.xlu0 %519
        %521 = vrot.lane.b32.xlu0 %v498, 1
        %v522 = vpop.permute.xlu0 %521
        %523 = vrot.lane.b32.xlu0 %v502, 1
        %v524 = vpop.permute.xlu0 %523
        %525 = vrot.lane.b32.xlu0 %v504, 1
        %v526 = vpop.permute.xlu0 %525
        %527 = vrot.lane.b32.xlu0 %v503, 1
        %v528 = vpop.permute.xlu0 %527
        %529 = vrot.lane.b32.xlu0 %v355, 127
        %v530 = vpop.permute.xlu0 %529
        %531 = vrot.lane.b32.xlu0 %v357, 127
        %v532 = vpop.permute.xlu0 %531
        %533 = vrot.lane.b32.xlu0 %v359, 127
        %v534 = vpop.permute.xlu0 %533
        %535 = vrot.lane.b32.xlu0 %v361, 127
        %v536 = vpop.permute.xlu0 %535
        %537 = vrot.lane.b32.xlu0 %v363, 127
        %v538 = vpop.permute.xlu0 %537
        %539 = vrot.lane.b32.xlu0 %v365, 127
        %v540 = vpop.permute.xlu0 %539
        %541 = vrot.lane.b32.xlu0 %v367, 127
        %v542 = vpop.permute.xlu0 %541
        %543 = vrot.lane.b32.xlu0 %v369, 127
        %v544 = vpop.permute.xlu0 %543
        %545 = vrot.lane.b32.xlu0 %v371, 127
        %v546 = vpop.permute.xlu0 %545
        %547 = vrot.lane.b32.xlu0 %v373, 127
        %v548 = vpop.permute.xlu0 %547
        %549 = vrot.lane.b32.xlu0 %v375, 127
        %v550 = vpop.permute.xlu0 %549
        %551 = vrot.lane.b32.xlu0 %v377, 127
        %v552 = vpop.permute.xlu0 %551
        %553 = vrot.lane.b32.xlu0 %v389, 127
        %v554 = vpop.permute.xlu0 %553
        %555 = vrot.lane.b32.xlu0 %v391, 127
        %v556 = vpop.permute.xlu0 %555
        %557 = vrot.lane.b32.xlu0 %v393, 127
        %v558 = vpop.permute.xlu0 %557
        %559 = vrot.lane.b32.xlu0 %v395, 127
        %v560 = vpop.permute.xlu0 %559
        %561 = vrot.lane.b32.xlu0 %v397, 127
        %v562 = vpop.permute.xlu0 %561
        %563 = vrot.lane.b32.xlu0 %v399, 127
        %v564 = vpop.permute.xlu0 %563
        %565 = vrot.lane.b32.xlu0 %v401, 127
        %v566 = vpop.permute.xlu0 %565
        %567 = vrot.lane.b32.xlu0 %v403, 127
        %v568 = vpop.permute.xlu0 %567
        %569 = vrot.lane.b32.xlu0 %v405, 127
        %v570 = vpop.permute.xlu0 %569
        %571 = vrot.lane.b32.xlu0 %v407, 127
        %v572 = vpop.permute.xlu0 %571
        %573 = vrot.lane.b32.xlu0 %v409, 127
        %v574 = vpop.permute.xlu0 %573
        %575 = vrot.lane.b32.xlu0 %v411, 127
        %v576 = vpop.permute.xlu0 %575
        %577 = vrot.lane.b32.xlu0 %v413, 127
        %v578 = vpop.permute.xlu0 %577
        %579 = vrot.lane.b32.xlu0 %v415, 127
        %v580 = vpop.permute.xlu0 %579
        %581 = vrot.lane.b32.xlu0 %v417, 127
        %v582 = vpop.permute.xlu0 %581
        %583 = vrot.lane.b32.xlu0 %v419, 127
        %v584 = vpop.permute.xlu0 %583
        %585 = vrot.lane.b32.xlu0 %v421, 127
        %v586 = vpop.permute.xlu0 %585
        %587 = vrot.lane.b32.xlu0 %v423, 127
        %v588 = vpop.permute.xlu0 %587
        %589 = vrot.lane.b32.xlu0 %v425, 127
        %v590 = vpop.permute.xlu0 %589
        %591 = vrot.lane.b32.xlu0 %v427, 127
        %v592 = vpop.permute.xlu0 %591
        %593 = vrot.lane.b32.xlu0 %v429, 127
        %v594 = vpop.permute.xlu0 %593
        %595 = vrot.lane.b32.xlu0 %v431, 127
        %v596 = vpop.permute.xlu0 %595
        %597 = vrot.lane.b32.xlu0 %v433, 127
        %v598 = vpop.permute.xlu0 %597
        %599 = vrot.lane.b32.xlu0 %v435, 127
        %v600 = vpop.permute.xlu0 %599
        %601 = vrot.lane.b32.xlu0 %v447, 127
        %v602 = vpop.permute.xlu0 %601
        %603 = vrot.lane.b32.xlu0 %v449, 127
        %v604 = vpop.permute.xlu0 %603
        %605 = vrot.lane.b32.xlu0 %v451, 127
        %v606 = vpop.permute.xlu0 %605
        %607 = vrot.lane.b32.xlu0 %v453, 127
        %v608 = vpop.permute.xlu0 %607
        %609 = vrot.lane.b32.xlu0 %v455, 127
        %v610 = vpop.permute.xlu0 %609
        %611 = vrot.lane.b32.xlu0 %v457, 127
        %v612 = vpop.permute.xlu0 %611
        %613 = vrot.lane.b32.xlu0 %v459, 127
        %v614 = vpop.permute.xlu0 %613
        %615 = vrot.lane.b32.xlu0 %v461, 127
        %v616 = vpop.permute.xlu0 %615
        %617 = vrot.lane.b32.xlu0 %v463, 127
        %v618 = vpop.permute.xlu0 %617
        %619 = vrot.lane.b32.xlu0 %v465, 127
        %v620 = vpop.permute.xlu0 %619
        %621 = vrot.lane.b32.xlu0 %v467, 127
        %v622 = vpop.permute.xlu0 %621
        %623 = vrot.lane.b32.xlu0 %v469, 127
        %v624 = vpop.permute.xlu0 %623
        %625 = vrot.lane.b32.xlu0 %v471, 127
        %v626 = vpop.permute.xlu0 %625
        %627 = vrot.lane.b32.xlu0 %v473, 127
        %v628 = vpop.permute.xlu0 %627
        %629 = vrot.lane.b32.xlu0 %v475, 127
        %v630 = vpop.permute.xlu0 %629
        %631 = vrot.lane.b32.xlu0 %v477, 127
        %v632 = vpop.permute.xlu0 %631
        %633 = vrot.lane.b32.xlu0 %v479, 127
        %v634 = vpop.permute.xlu0 %633
        %635 = vrot.lane.b32.xlu0 %v481, 127
        %v636 = vpop.permute.xlu0 %635
        %637 = vrot.lane.b32.xlu0 %v483, 127
        %v638 = vpop.permute.xlu0 %637
        %639 = vrot.lane.b32.xlu0 %v485, 127
        %v640 = vpop.permute.xlu0 %639
        %641 = vrot.lane.b32.xlu0 %v487, 127
        %v642 = vpop.permute.xlu0 %641
        %643 = vrot.lane.b32.xlu0 %v489, 127
        %v644 = vpop.permute.xlu0 %643
        %645 = vrot.lane.b32.xlu0 %v491, 127
        %v646 = vpop.permute.xlu0 %645
        %647 = vrot.lane.b32.xlu0 %v493, 127
        %v648 = vpop.permute.xlu0 %647
        %649 = vrot.lane.b32.xlu0 %v506, 127
        %v650 = vpop.permute.xlu0 %649
        %651 = vrot.lane.b32.xlu0 %v508, 127
        %v652 = vpop.permute.xlu0 %651
        %653 = vrot.lane.b32.xlu0 %v510, 127
        %v654 = vpop.permute.xlu0 %653
        %655 = vrot.lane.b32.xlu0 %v512, 127
        %v656 = vpop.permute.xlu0 %655
        %657 = vrot.lane.b32.xlu0 %v514, 127
        %v658 = vpop.permute.xlu0 %657
        %659 = vrot.lane.b32.xlu0 %v516, 127
        %v660 = vpop.permute.xlu0 %659
        %661 = vrot.lane.b32.xlu0 %v518, 127
        %v662 = vpop.permute.xlu0 %661
        %663 = vrot.lane.b32.xlu0 %v520, 127
        %v664 = vpop.permute.xlu0 %663
        %665 = vrot.lane.b32.xlu0 %v522, 127
        %v666 = vpop.permute.xlu0 %665
        %667 = vrot.lane.b32.xlu0 %v524, 127
        %v668 = vpop.permute.xlu0 %667
        %669 = vrot.lane.b32.xlu0 %v526, 127
        %v670 = vpop.permute.xlu0 %669
        %671 = vrot.lane.b32.xlu0 %v528, 127
        %v672 = vpop.permute.xlu0 %671
        %673 = vrot.lane.b32.xlu0 %v497, 127
        %v674 = vpop.permute.xlu0 %673
        %675 = vrot.lane.b32.xlu0 %v499, 127
        %v676 = vpop.permute.xlu0 %675
        %677 = vrot.lane.b32.xlu0 %v498, 127
        %v678 = vpop.permute.xlu0 %677
        %679 = vrot.lane.b32.xlu0 %v502, 127
        %v680 = vpop.permute.xlu0 %679
        %681 = vrot.lane.b32.xlu0 %v504, 127
        %v682 = vpop.permute.xlu0 %681
        %683 = vrot.lane.b32.xlu0 %v503, 127
        %v684 = vpop.permute.xlu0 %683
        %v685 = vrot.slane %v355, 3
        %v686 = vrot.slane %v357, 3
        %v687 = vsel %vm494, %v685, %v686
        %v688 = vrot.slane %v359, 3
        %v689 = vsel %vm494, %v686, %v688
        %v690 = vrot.slane %v361, 3
        %v691 = vrot.slane %v363, 3
        %v692 = vsel %vm494, %v690, %v691
        %v693 = vrot.slane %v365, 3
        %v694 = vsel %vm494, %v691, %v693
        %695 = vrot.lane.b32.xlu0 %v497, 126
        %v696 = vpop.permute.xlu0 %695
        %697 = vrot.lane.b32.xlu0 %v499, 126
        %v698 = vpop.permute.xlu0 %697
        %699 = vrot.lane.b32.xlu0 %v498, 126
        %v700 = vpop.permute.xlu0 %699
        %701 = vrot.lane.b32.xlu0 %v502, 126
        %v702 = vpop.permute.xlu0 %701
        %703 = vrot.lane.b32.xlu0 %v504, 126
        %v704 = vpop.permute.xlu0 %703
        %705 = vrot.lane.b32.xlu0 %v503, 126
        %v706 = vpop.permute.xlu0 %705
        %707 = vrot.lane.b32.xlu0 %v687, 126
        %v708 = vpop.permute.xlu0 %707
        %709 = vrot.lane.b32.xlu0 %v689, 126
        %v710 = vpop.permute.xlu0 %709
        %711 = vrot.lane.b32.xlu0 %v688, 126
        %v712 = vpop.permute.xlu0 %711
        %713 = vrot.lane.b32.xlu0 %v692, 126
        %v714 = vpop.permute.xlu0 %713
        %715 = vrot.lane.b32.xlu0 %v694, 126
        %v716 = vpop.permute.xlu0 %715
        %717 = vrot.lane.b32.xlu0 %v693, 126
        %v718 = vpop.permute.xlu0 %717
        %v719 = vrot.slane %v188, 1
        %v720 = vrot.slane %v190, 1
        %v721 = vsel %vm211, %v719, %v720
        %v722 = vrot.slane %v192, 1
        %v723 = vsel %vm211, %v720, %v722
        %v724 = vrot.slane %v194, 1
        %v725 = vrot.slane %v196, 1
        %v726 = vsel %vm211, %v724, %v725
        %v727 = vrot.slane %v198, 1
        %v728 = vsel %vm211, %v725, %v727
        %v729 = vrot.slane %v200, 1
        %v730 = vrot.slane %v202, 1
        %v731 = vsel %vm211, %v729, %v730
        %v732 = vrot.slane %v204, 1
        %v733 = vsel %vm211, %v730, %v732
        %v734 = vrot.slane %v206, 1
        %v735 = vrot.slane %v208, 1
        %v736 = vsel %vm211, %v734, %v735
        %v737 = vrot.slane %v210, 1
        %v738 = vsel %vm211, %v735, %v737
        %v739 = vrot.slane %v214, 1
        %v740 = vrot.slane %v216, 1
        %v741 = vsel %vm211, %v739, %v740
        %v742 = vrot.slane %v215, 1
        %v743 = vsel %vm211, %v740, %v742
        %v744 = vrot.slane %v219, 1
        %v745 = vrot.slane %v221, 1
        %v746 = vsel %vm211, %v744, %v745
        %v747 = vrot.slane %v220, 1
        %v748 = vsel %vm211, %v745, %v747
        %v749 = vrot.slane %v223, 1
        %v750 = vrot.slane %v225, 1
        %v751 = vsel %vm211, %v749, %v750
        %v752 = vrot.slane %v227, 1
        %v753 = vsel %vm211, %v750, %v752
        %v754 = vrot.slane %v229, 1
        %v755 = vrot.slane %v231, 1
        %v756 = vsel %vm211, %v754, %v755
        %v757 = vrot.slane %v233, 1
        %v758 = vsel %vm211, %v755, %v757
        %v759 = vrot.slane %v235, 1
        %v760 = vrot.slane %v237, 1
        %v761 = vsel %vm211, %v759, %v760
        %v762 = vrot.slane %v239, 1
        %v763 = vsel %vm211, %v760, %v762
        %v764 = vrot.slane %v241, 1
        %v765 = vrot.slane %v243, 1
        %v766 = vsel %vm211, %v764, %v765
        %v767 = vrot.slane %v245, 1
        %v768 = vsel %vm211, %v765, %v767
        %v769 = vrot.slane %v249, 1
        %v770 = vrot.slane %v251, 1
        %v771 = vsel %vm211, %v769, %v770
        %v772 = vrot.slane %v250, 1
        %v773 = vsel %vm211, %v770, %v772
        %v774 = vrot.slane %v254, 1
        %v775 = vrot.slane %v256, 1
        %v776 = vsel %vm211, %v774, %v775
        %v777 = vrot.slane %v255, 1
        %v778 = vsel %vm211, %v775, %v777
        %v779 = vrot.slane %v258, 1
        %v780 = vrot.slane %v260, 1
        %v781 = vsel %vm211, %v779, %v780
        %v782 = vrot.slane %v262, 1
        %v783 = vsel %vm211, %v780, %v782
        %v784 = vrot.slane %v264, 1
        %v785 = vrot.slane %v266, 1
        %v786 = vsel %vm211, %v784, %v785
        %v787 = vrot.slane %v268, 1
        %v788 = vsel %vm211, %v785, %v787
        %v789 = vrot.slane %v270, 1
        %v790 = vrot.slane %v272, 1
        %v791 = vsel %vm211, %v789, %v790
        %v792 = vrot.slane %v274, 1
        %v793 = vsel %vm211, %v790, %v792
        %v794 = vrot.slane %v276, 1
        %v795 = vrot.slane %v278, 1
        %v796 = vsel %vm211, %v794, %v795
        %v797 = vrot.slane %v280, 1
        %v798 = vsel %vm211, %v795, %v797
        %v799 = vrot.slane %v293, 1
        %v800 = vrot.slane %v295, 1
        %v801 = vsel %vm211, %v799, %v800
        %v802 = vrot.slane %v297, 1
        %v803 = vsel %vm211, %v800, %v802
        %v804 = vrot.slane %v299, 1
        %v805 = vrot.slane %v301, 1
        %v806 = vsel %vm211, %v804, %v805
        %v807 = vrot.slane %v303, 1
        %v808 = vsel %vm211, %v805, %v807
        %v809 = vrot.slane %v286, 1
        %v810 = vrot.slane %v288, 1
        %v811 = vsel %vm211, %v809, %v810
        %v812 = vrot.slane %v287, 1
        %v813 = vsel %vm211, %v810, %v812
        %v814 = vrot.slane %v289, 1
        %v815 = vrot.slane %v291, 1
        %v816 = vsel %vm211, %v814, %v815
        %v817 = vrot.slane %v290, 1
        %v818 = vsel %vm211, %v815, %v817
        %v819 = vrot.slane %v305, 1
        %v820 = vrot.slane %v307, 1
        %v821 = vsel %vm211, %v819, %v820
        %v822 = vrot.slane %v309, 1
        %v823 = vsel %vm211, %v820, %v822
        %v824 = vrot.slane %v311, 1
        %v825 = vrot.slane %v313, 1
        %v826 = vsel %vm211, %v824, %v825
        %v827 = vrot.slane %v315, 1
        %v828 = vsel %vm211, %v825, %v827
        %v829 = vrot.slane %v317, 1
        %v830 = vrot.slane %v319, 1
        %v831 = vsel %vm211, %v829, %v830
        %v832 = vrot.slane %v321, 1
        %v833 = vsel %vm211, %v830, %v832
        %v834 = vrot.slane %v323, 1
        %v835 = vrot.slane %v325, 1
        %v836 = vsel %vm211, %v834, %v835
        %v837 = vrot.slane %v327, 1
        %v838 = vsel %vm211, %v835, %v837
        %v839 = vrot.slane %v329, 1
        %v840 = vrot.slane %v331, 1
        %v841 = vsel %vm211, %v839, %v840
        %v842 = vrot.slane %v333, 1
        %v843 = vsel %vm211, %v840, %v842
        %v844 = vrot.slane %v335, 1
        %v845 = vrot.slane %v337, 1
        %v846 = vsel %vm211, %v844, %v845
        %v847 = vrot.slane %v339, 1
        %v848 = vsel %vm211, %v845, %v847
        %v849 = vrot.slane %v343, 1
        %v850 = vrot.slane %v345, 1
        %v851 = vsel %vm211, %v849, %v850
        %v852 = vrot.slane %v347, 1
        %v853 = vsel %vm211, %v850, %v852
        %v854 = vrot.slane %v349, 1
        %v855 = vrot.slane %v351, 1
        %v856 = vsel %vm211, %v854, %v855
        %v857 = vrot.slane %v353, 1
        %v858 = vsel %vm211, %v855, %v857
        %v859 = vrot.slane %v355, 1
        %v860 = vrot.slane %v357, 1
        %v861 = vsel %vm211, %v859, %v860
        %v862 = vrot.slane %v359, 1
        %v863 = vsel %vm211, %v860, %v862
        %v864 = vrot.slane %v361, 1
        %v865 = vrot.slane %v363, 1
        %v866 = vsel %vm211, %v864, %v865
        %v867 = vrot.slane %v365, 1
        %v868 = vsel %vm211, %v865, %v867
        %v869 = vrot.slane %v530, 1
        %v870 = vrot.slane %v532, 1
        %v871 = vsel %vm211, %v869, %v870
        %v872 = vrot.slane %v534, 1
        %v873 = vsel %vm211, %v870, %v872
        %v874 = vrot.slane %v536, 1
        %v875 = vrot.slane %v538, 1
        %v876 = vsel %vm211, %v874, %v875
        %v877 = vrot.slane %v540, 1
        %v878 = vsel %vm211, %v875, %v877
        %v879 = vrot.slane %v542, 1
        %v880 = vrot.slane %v544, 1
        %v881 = vsel %vm211, %v879, %v880
        %v882 = vrot.slane %v546, 1
        %v883 = vsel %vm211, %v880, %v882
        %v884 = vrot.slane %v548, 1
        %v885 = vrot.slane %v550, 1
        %v886 = vsel %vm211, %v884, %v885
        %v887 = vrot.slane %v552, 1
        %v888 = vsel %vm211, %v885, %v887
        %v889 = vrot.slane %v554, 1
        %v890 = vrot.slane %v556, 1
        %v891 = vsel %vm211, %v889, %v890
        %v892 = vrot.slane %v558, 1
        %v893 = vsel %vm211, %v890, %v892
        %v894 = vrot.slane %v560, 1
        %v895 = vrot.slane %v562, 1
        %v896 = vsel %vm211, %v894, %v895
        %v897 = vrot.slane %v564, 1
        %v898 = vsel %vm211, %v895, %v897
        %v899 = vrot.slane %v566, 1
        %v900 = vrot.slane %v568, 1
        %v901 = vsel %vm211, %v899, %v900
        %v902 = vrot.slane %v570, 1
        %v903 = vsel %vm211, %v900, %v902
        %v904 = vrot.slane %v572, 1
        %v905 = vrot.slane %v574, 1
        %v906 = vsel %vm211, %v904, %v905
        %v907 = vrot.slane %v576, 1
        %v908 = vsel %vm211, %v905, %v907
        %v909 = vrot.slane %v413, 1
        %v910 = vrot.slane %v415, 1
        %v911 = vsel %vm211, %v909, %v910
        %v912 = vrot.slane %v417, 1
        %v913 = vsel %vm211, %v910, %v912
        %v914 = vrot.slane %v419, 1
        %v915 = vrot.slane %v421, 1
        %v916 = vsel %vm211, %v914, %v915
        %v917 = vrot.slane %v423, 1
        %v918 = vsel %vm211, %v915, %v917
        %v919 = vrot.slane %v578, 1
        %v920 = vrot.slane %v580, 1
        %v921 = vsel %vm211, %v919, %v920
        %v922 = vrot.slane %v582, 1
        %v923 = vsel %vm211, %v920, %v922
        %v924 = vrot.slane %v584, 1
        %v925 = vrot.slane %v586, 1
        %v926 = vsel %vm211, %v924, %v925
        %v927 = vrot.slane %v588, 1
        %v928 = vsel %vm211, %v925, %v927
        %v929 = vrot.slane %v590, 1
        %v930 = vrot.slane %v592, 1
        %v931 = vsel %vm211, %v929, %v930
        %v932 = vrot.slane %v594, 1
        %v933 = vsel %vm211, %v930, %v932
        %v934 = vrot.slane %v596, 1
        %v935 = vrot.slane %v598, 1
        %v936 = vsel %vm211, %v934, %v935
        %v937 = vrot.slane %v600, 1
        %v938 = vsel %vm211, %v935, %v937
        %v939 = vrot.slane %v602, 1
        %v940 = vrot.slane %v604, 1
        %v941 = vsel %vm211, %v939, %v940
        %v942 = vrot.slane %v606, 1
        %v943 = vsel %vm211, %v940, %v942
        %v944 = vrot.slane %v608, 1
        %v945 = vrot.slane %v610, 1
        %v946 = vsel %vm211, %v944, %v945
        %v947 = vrot.slane %v612, 1
        %v948 = vsel %vm211, %v945, %v947
        %v949 = vrot.slane %v614, 1
        %v950 = vrot.slane %v616, 1
        %v951 = vsel %vm211, %v949, %v950
        %v952 = vrot.slane %v618, 1
        %v953 = vsel %vm211, %v950, %v952
        %v954 = vrot.slane %v620, 1
        %v955 = vrot.slane %v622, 1
        %v956 = vsel %vm211, %v954, %v955
        %v957 = vrot.slane %v624, 1
        %v958 = vsel %vm211, %v955, %v957
        %v959 = vrot.slane %v471, 1
        %v960 = vrot.slane %v473, 1
        %v961 = vsel %vm211, %v959, %v960
        %v962 = vrot.slane %v475, 1
        %v963 = vsel %vm211, %v960, %v962
        %v964 = vrot.slane %v477, 1
        %v965 = vrot.slane %v479, 1
        %v966 = vsel %vm211, %v964, %v965
        %v967 = vrot.slane %v481, 1
        %v968 = vsel %vm211, %v965, %v967
        %v969 = vrot.slane %v626, 1
        %v970 = vrot.slane %v628, 1
        %v971 = vsel %vm211, %v969, %v970
        %v972 = vrot.slane %v630, 1
        %v973 = vsel %vm211, %v970, %v972
        %v974 = vrot.slane %v632, 1
        %v975 = vrot.slane %v634, 1
        %v976 = vsel %vm211, %v974, %v975
        %v977 = vrot.slane %v636, 1
        %v978 = vsel %vm211, %v975, %v977
        %v979 = vrot.slane %v638, 1
        %v980 = vrot.slane %v640, 1
        %v981 = vsel %vm211, %v979, %v980
        %v982 = vrot.slane %v642, 1
        %v983 = vsel %vm211, %v980, %v982
        %v984 = vrot.slane %v644, 1
        %v985 = vrot.slane %v646, 1
        %v986 = vsel %vm211, %v984, %v985
        %v987 = vrot.slane %v648, 1
        %v988 = vsel %vm211, %v985, %v987
        %v989 = vrot.slane %v650, 1
        %v990 = vrot.slane %v652, 1
        %v991 = vsel %vm211, %v989, %v990
        %v992 = vrot.slane %v654, 1
        %v993 = vsel %vm211, %v990, %v992
        %v994 = vrot.slane %v656, 1
        %v995 = vrot.slane %v658, 1
        %v996 = vsel %vm211, %v994, %v995
        %v997 = vrot.slane %v660, 1
        %v998 = vsel %vm211, %v995, %v997
        %v999 = vrot.slane %v662, 1
        %v1000 = vrot.slane %v664, 1
        %v1001 = vsel %vm211, %v999, %v1000
        %v1002 = vrot.slane %v666, 1
        %v1003 = vsel %vm211, %v1000, %v1002
        %v1004 = vrot.slane %v668, 1
        %v1005 = vrot.slane %v670, 1
        %v1006 = vsel %vm211, %v1004, %v1005
        %v1007 = vrot.slane %v672, 1
        %v1008 = vsel %vm211, %v1005, %v1007
        %v1009 = vrot.slane %v674, 1
        %v1010 = vrot.slane %v676, 1
        %v1011 = vsel %vm211, %v1009, %v1010
        %v1012 = vrot.slane %v678, 1
        %v1013 = vsel %vm211, %v1010, %v1012
        %v1014 = vrot.slane %v680, 1
        %v1015 = vrot.slane %v682, 1
        %v1016 = vsel %vm211, %v1014, %v1015
        %v1017 = vrot.slane %v684, 1
        %v1018 = vsel %vm211, %v1015, %v1017
        %v1019 = vrot.slane %v696, 1
        %v1020 = vrot.slane %v698, 1
        %v1021 = vsel %vm211, %v1019, %v1020
        %v1022 = vrot.slane %v700, 1
        %v1023 = vsel %vm211, %v1020, %v1022
        %v1024 = vrot.slane %v702, 1
        %v1025 = vrot.slane %v704, 1
        %v1026 = vsel %vm211, %v1024, %v1025
        %v1027 = vrot.slane %v706, 1
        %v1028 = vsel %vm211, %v1025, %v1027
        %v1029 = vrot.slane %v708, 1
        %v1030 = vrot.slane %v710, 1
        %v1031 = vsel %vm211, %v1029, %v1030
        %v1032 = vrot.slane %v712, 1
        %v1033 = vsel %vm211, %v1030, %v1032
        %v1034 = vrot.slane %v714, 1
        %v1035 = vrot.slane %v716, 1
        %v1036 = vsel %vm211, %v1034, %v1035
        %v1037 = vrot.slane %v718, 1
        %v1038 = vsel %vm211, %v1035, %v1037
        %1039 = vrot.lane.b32.xlu0 %v721, 127
        %v1040 = vpop.permute.xlu0 %1039
        %1041 = vrot.lane.b32.xlu0 %v723, 127
        %v1042 = vpop.permute.xlu0 %1041
        %1043 = vrot.lane.b32.xlu0 %v726, 127
        %v1044 = vpop.permute.xlu0 %1043
        %1045 = vrot.lane.b32.xlu0 %v728, 127
        %v1046 = vpop.permute.xlu0 %1045
        %1047 = vrot.lane.b32.xlu0 %v731, 127
        %v1048 = vpop.permute.xlu0 %1047
        %1049 = vrot.lane.b32.xlu0 %v733, 127
        %v1050 = vpop.permute.xlu0 %1049
        %1051 = vrot.lane.b32.xlu0 %v736, 127
        %v1052 = vpop.permute.xlu0 %1051
        %1053 = vrot.lane.b32.xlu0 %v738, 127
        %v1054 = vpop.permute.xlu0 %1053
        %1055 = vrot.lane.b32.xlu0 %v741, 127
        %v1056 = vpop.permute.xlu0 %1055
        %1057 = vrot.lane.b32.xlu0 %v743, 127
        %v1058 = vpop.permute.xlu0 %1057
        %1059 = vrot.lane.b32.xlu0 %v746, 127
        %v1060 = vpop.permute.xlu0 %1059
        %1061 = vrot.lane.b32.xlu0 %v748, 127
        %v1062 = vpop.permute.xlu0 %1061
        %1063 = vrot.lane.b32.xlu0 %v751, 127
        %v1064 = vpop.permute.xlu0 %1063
        %1065 = vrot.lane.b32.xlu0 %v753, 127
        %v1066 = vpop.permute.xlu0 %1065
        %1067 = vrot.lane.b32.xlu0 %v756, 127
        %v1068 = vpop.permute.xlu0 %1067
        %1069 = vrot.lane.b32.xlu0 %v758, 127
        %v1070 = vpop.permute.xlu0 %1069
        %1071 = vrot.lane.b32.xlu0 %v761, 127
        %v1072 = vpop.permute.xlu0 %1071
        %1073 = vrot.lane.b32.xlu0 %v763, 127
        %v1074 = vpop.permute.xlu0 %1073
        %1075 = vrot.lane.b32.xlu0 %v766, 127
        %v1076 = vpop.permute.xlu0 %1075
        %1077 = vrot.lane.b32.xlu0 %v768, 127
        %v1078 = vpop.permute.xlu0 %1077
        %1079 = vrot.lane.b32.xlu0 %v771, 127
        %v1080 = vpop.permute.xlu0 %1079
        %1081 = vrot.lane.b32.xlu0 %v773, 127
        %v1082 = vpop.permute.xlu0 %1081
        %1083 = vrot.lane.b32.xlu0 %v776, 127
        %v1084 = vpop.permute.xlu0 %1083
        %1085 = vrot.lane.b32.xlu0 %v778, 127
        %v1086 = vpop.permute.xlu0 %1085
        %1087 = vrot.lane.b32.xlu0 %v781, 127
        %v1088 = vpop.permute.xlu0 %1087
        %1089 = vrot.lane.b32.xlu0 %v783, 127
        %v1090 = vpop.permute.xlu0 %1089
        %1091 = vrot.lane.b32.xlu0 %v786, 127
        %v1092 = vpop.permute.xlu0 %1091
        %1093 = vrot.lane.b32.xlu0 %v788, 127
        %v1094 = vpop.permute.xlu0 %1093
        %1095 = vrot.lane.b32.xlu0 %v791, 127
        %v1096 = vpop.permute.xlu0 %1095
        %1097 = vrot.lane.b32.xlu0 %v793, 127
        %v1098 = vpop.permute.xlu0 %1097
        %1099 = vrot.lane.b32.xlu0 %v796, 127
        %v1100 = vpop.permute.xlu0 %1099
        %1101 = vrot.lane.b32.xlu0 %v798, 127
        %v1102 = vpop.permute.xlu0 %1101
        %1103 = vrot.lane.b32.xlu0 %v801, 127
        %v1104 = vpop.permute.xlu0 %1103
        %1105 = vrot.lane.b32.xlu0 %v803, 127
        %v1106 = vpop.permute.xlu0 %1105
        %1107 = vrot.lane.b32.xlu0 %v806, 127
        %v1108 = vpop.permute.xlu0 %1107
        %1109 = vrot.lane.b32.xlu0 %v808, 127
        %v1110 = vpop.permute.xlu0 %1109
        %1111 = vrot.lane.b32.xlu0 %v811, 127
        %v1112 = vpop.permute.xlu0 %1111
        %1113 = vrot.lane.b32.xlu0 %v813, 127
        %v1114 = vpop.permute.xlu0 %1113
        %1115 = vrot.lane.b32.xlu0 %v816, 127
        %v1116 = vpop.permute.xlu0 %1115
        %1117 = vrot.lane.b32.xlu0 %v818, 127
        %v1118 = vpop.permute.xlu0 %1117
        %1119 = vrot.lane.b32.xlu0 %v821, 127
        %v1120 = vpop.permute.xlu0 %1119
        %1121 = vrot.lane.b32.xlu0 %v823, 127
        %v1122 = vpop.permute.xlu0 %1121
        %1123 = vrot.lane.b32.xlu0 %v826, 127
        %v1124 = vpop.permute.xlu0 %1123
        %1125 = vrot.lane.b32.xlu0 %v828, 127
        %v1126 = vpop.permute.xlu0 %1125
        %1127 = vrot.lane.b32.xlu0 %v831, 127
        %v1128 = vpop.permute.xlu0 %1127
        %1129 = vrot.lane.b32.xlu0 %v833, 127
        %v1130 = vpop.permute.xlu0 %1129
        %1131 = vrot.lane.b32.xlu0 %v836, 127
        %v1132 = vpop.permute.xlu0 %1131
        %1133 = vrot.lane.b32.xlu0 %v838, 127
        %v1134 = vpop.permute.xlu0 %1133
        %1135 = vrot.lane.b32.xlu0 %v841, 127
        %v1136 = vpop.permute.xlu0 %1135
        %1137 = vrot.lane.b32.xlu0 %v843, 127
        %v1138 = vpop.permute.xlu0 %1137
        %1139 = vrot.lane.b32.xlu0 %v846, 127
        %v1140 = vpop.permute.xlu0 %1139
        %1141 = vrot.lane.b32.xlu0 %v848, 127
        %v1142 = vpop.permute.xlu0 %1141
        %1143 = vrot.lane.b32.xlu0 %v851, 127
        %v1144 = vpop.permute.xlu0 %1143
        %1145 = vrot.lane.b32.xlu0 %v853, 127
        %v1146 = vpop.permute.xlu0 %1145
        %1147 = vrot.lane.b32.xlu0 %v856, 127
        %v1148 = vpop.permute.xlu0 %1147
        %1149 = vrot.lane.b32.xlu0 %v858, 127
        %v1150 = vpop.permute.xlu0 %1149
        %1151 = vrot.lane.b32.xlu0 %v861, 127
        %v1152 = vpop.permute.xlu0 %1151
        %1153 = vrot.lane.b32.xlu0 %v863, 127
        %v1154 = vpop.permute.xlu0 %1153
        %1155 = vrot.lane.b32.xlu0 %v866, 127
        %v1156 = vpop.permute.xlu0 %1155
        %1157 = vrot.lane.b32.xlu0 %v868, 127
        %v1158 = vpop.permute.xlu0 %1157
        %1159 = vrot.lane.b32.xlu0 %v871, 127
        %v1160 = vpop.permute.xlu0 %1159
        %1161 = vrot.lane.b32.xlu0 %v873, 127
        %v1162 = vpop.permute.xlu0 %1161
        %1163 = vrot.lane.b32.xlu0 %v876, 127
        %v1164 = vpop.permute.xlu0 %1163
        %1165 = vrot.lane.b32.xlu0 %v878, 127
        %v1166 = vpop.permute.xlu0 %1165
        %1167 = vrot.lane.b32.xlu0 %v881, 127
        %v1168 = vpop.permute.xlu0 %1167
        %1169 = vrot.lane.b32.xlu0 %v883, 127
        %v1170 = vpop.permute.xlu0 %1169
        %1171 = vrot.lane.b32.xlu0 %v886, 127
        %v1172 = vpop.permute.xlu0 %1171
        %1173 = vrot.lane.b32.xlu0 %v888, 127
        %v1174 = vpop.permute.xlu0 %1173
        %1175 = vrot.lane.b32.xlu0 %v891, 127
        %v1176 = vpop.permute.xlu0 %1175
        %1177 = vrot.lane.b32.xlu0 %v893, 127
        %v1178 = vpop.permute.xlu0 %1177
        %1179 = vrot.lane.b32.xlu0 %v896, 127
        %v1180 = vpop.permute.xlu0 %1179
        %1181 = vrot.lane.b32.xlu0 %v898, 127
        %v1182 = vpop.permute.xlu0 %1181
        %1183 = vrot.lane.b32.xlu0 %v901, 127
        %v1184 = vpop.permute.xlu0 %1183
        %1185 = vrot.lane.b32.xlu0 %v903, 127
        %v1186 = vpop.permute.xlu0 %1185
        %1187 = vrot.lane.b32.xlu0 %v906, 127
        %v1188 = vpop.permute.xlu0 %1187
        %1189 = vrot.lane.b32.xlu0 %v908, 127
        %v1190 = vpop.permute.xlu0 %1189
        %1191 = vrot.lane.b32.xlu0 %v911, 127
        %v1192 = vpop.permute.xlu0 %1191
        %1193 = vrot.lane.b32.xlu0 %v913, 127
        %v1194 = vpop.permute.xlu0 %1193
        %1195 = vrot.lane.b32.xlu0 %v916, 127
        %v1196 = vpop.permute.xlu0 %1195
        %1197 = vrot.lane.b32.xlu0 %v918, 127
        %v1198 = vpop.permute.xlu0 %1197
        %1199 = vrot.lane.b32.xlu0 %v921, 127
        %v1200 = vpop.permute.xlu0 %1199
        %1201 = vrot.lane.b32.xlu0 %v923, 127
        %v1202 = vpop.permute.xlu0 %1201
        %1203 = vrot.lane.b32.xlu0 %v926, 127
        %v1204 = vpop.permute.xlu0 %1203
        %1205 = vrot.lane.b32.xlu0 %v928, 127
        %v1206 = vpop.permute.xlu0 %1205
        %1207 = vrot.lane.b32.xlu0 %v931, 127
        %v1208 = vpop.permute.xlu0 %1207
        %1209 = vrot.lane.b32.xlu0 %v933, 127
        %v1210 = vpop.permute.xlu0 %1209
        %1211 = vrot.lane.b32.xlu0 %v936, 127
        %v1212 = vpop.permute.xlu0 %1211
        %1213 = vrot.lane.b32.xlu0 %v938, 127
        %v1214 = vpop.permute.xlu0 %1213
        %1215 = vrot.lane.b32.xlu0 %v941, 127
        %v1216 = vpop.permute.xlu0 %1215
        %1217 = vrot.lane.b32.xlu0 %v943, 127
        %v1218 = vpop.permute.xlu0 %1217
        %1219 = vrot.lane.b32.xlu0 %v946, 127
        %v1220 = vpop.permute.xlu0 %1219
        %1221 = vrot.lane.b32.xlu0 %v948, 127
        %v1222 = vpop.permute.xlu0 %1221
        %1223 = vrot.lane.b32.xlu0 %v951, 127
        %v1224 = vpop.permute.xlu0 %1223
        %1225 = vrot.lane.b32.xlu0 %v953, 127
        %v1226 = vpop.permute.xlu0 %1225
        %1227 = vrot.lane.b32.xlu0 %v956, 127
        %v1228 = vpop.permute.xlu0 %1227
        %1229 = vrot.lane.b32.xlu0 %v958, 127
        %v1230 = vpop.permute.xlu0 %1229
        %1231 = vrot.lane.b32.xlu0 %v961, 127
        %v1232 = vpop.permute.xlu0 %1231
        %1233 = vrot.lane.b32.xlu0 %v963, 127
        %v1234 = vpop.permute.xlu0 %1233
        %1235 = vrot.lane.b32.xlu0 %v966, 127
        %v1236 = vpop.permute.xlu0 %1235
        %1237 = vrot.lane.b32.xlu0 %v968, 127
        %v1238 = vpop.permute.xlu0 %1237
        %1239 = vrot.lane.b32.xlu0 %v971, 127
        %v1240 = vpop.permute.xlu0 %1239
        %1241 = vrot.lane.b32.xlu0 %v973, 127
        %v1242 = vpop.permute.xlu0 %1241
        %1243 = vrot.lane.b32.xlu0 %v976, 127
        %v1244 = vpop.permute.xlu0 %1243
        %1245 = vrot.lane.b32.xlu0 %v978, 127
        %v1246 = vpop.permute.xlu0 %1245
        %1247 = vrot.lane.b32.xlu0 %v981, 127
        %v1248 = vpop.permute.xlu0 %1247
        %1249 = vrot.lane.b32.xlu0 %v983, 127
        %v1250 = vpop.permute.xlu0 %1249
        %1251 = vrot.lane.b32.xlu0 %v986, 127
        %v1252 = vpop.permute.xlu0 %1251
        %1253 = vrot.lane.b32.xlu0 %v988, 127
        %v1254 = vpop.permute.xlu0 %1253
        %1255 = vrot.lane.b32.xlu0 %v991, 127
        %v1256 = vpop.permute.xlu0 %1255
        %1257 = vrot.lane.b32.xlu0 %v993, 127
        %v1258 = vpop.permute.xlu0 %1257
        %1259 = vrot.lane.b32.xlu0 %v996, 127
        %v1260 = vpop.permute.xlu0 %1259
        %1261 = vrot.lane.b32.xlu0 %v998, 127
        %v1262 = vpop.permute.xlu0 %1261
        %1263 = vrot.lane.b32.xlu0 %v1001, 127
        %v1264 = vpop.permute.xlu0 %1263
        %1265 = vrot.lane.b32.xlu0 %v1003, 127
        %v1266 = vpop.permute.xlu0 %1265
        %1267 = vrot.lane.b32.xlu0 %v1006, 127
        %v1268 = vpop.permute.xlu0 %1267
        %1269 = vrot.lane.b32.xlu0 %v1008, 127
        %v1270 = vpop.permute.xlu0 %1269
        %1271 = vrot.lane.b32.xlu0 %v1011, 127
        %v1272 = vpop.permute.xlu0 %1271
        %1273 = vrot.lane.b32.xlu0 %v1013, 127
        %v1274 = vpop.permute.xlu0 %1273
        %1275 = vrot.lane.b32.xlu0 %v1016, 127
        %v1276 = vpop.permute.xlu0 %1275
        %1277 = vrot.lane.b32.xlu0 %v1018, 127
        %v1278 = vpop.permute.xlu0 %1277
        %1279 = vrot.lane.b32.xlu0 %v1021, 127
        %v1280 = vpop.permute.xlu0 %1279
        %1281 = vrot.lane.b32.xlu0 %v1023, 127
        %v1282 = vpop.permute.xlu0 %1281
        %1283 = vrot.lane.b32.xlu0 %v1026, 127
        %v1284 = vpop.permute.xlu0 %1283
        %1285 = vrot.lane.b32.xlu0 %v1028, 127
        %v1286 = vpop.permute.xlu0 %1285
        %1287 = vrot.lane.b32.xlu0 %v1031, 127
        %v1288 = vpop.permute.xlu0 %1287
        %1289 = vrot.lane.b32.xlu0 %v1033, 127
        %v1290 = vpop.permute.xlu0 %1289
        %1291 = vrot.lane.b32.xlu0 %v1036, 127
        %v1292 = vpop.permute.xlu0 %1291
        %1293 = vrot.lane.b32.xlu0 %v1038, 127
        %v1294 = vpop.permute.xlu0 %1293
        %v1431 = vcombine.low %v223, %v1040
        %v1432 = vcombine.high %v223, %v1040
        %v1434 = vunpack.c.l.s4 1983009808
        %v1435 = vunpack.c.0.s8 %v1434
        %v1436 = vlaneseq
        %v1437 = vshrl.u32 %v1436, 7
        %v1438 = vsub.s32 %v1435, %v1437
        %v1439 = vrot.slane %v1431, %v1438
        %v1441 = vunpack.c.l.s4 1983009808
        %v1442 = vunpack.c.0.s8 %v1441
        %v1443 = vlaneseq
        %v1444 = vshrl.u32 %v1443, 7
        %v1445 = vsub.s32 %v1442, %v1444
        %v1446 = vrot.slane %v1432, %v1445
        %v1447 = vcombine.low %v229, %v1044
        %v1448 = vcombine.high %v229, %v1044
        %v1450 = vunpack.c.l.s4 1983009808
        %v1451 = vunpack.c.0.s8 %v1450
        %v1452 = vlaneseq
        %v1453 = vshrl.u32 %v1452, 7
        %v1454 = vsub.s32 %v1451, %v1453
        %v1455 = vrot.slane %v1447, %v1454
        %v1457 = vunpack.c.l.s4 1983009808
        %v1458 = vunpack.c.0.s8 %v1457
        %v1459 = vlaneseq
        %v1460 = vshrl.u32 %v1459, 7
        %v1461 = vsub.s32 %v1458, %v1460
        %v1462 = vrot.slane %v1448, %v1461
        %v1463 = vcombine.low %v1048, %v1056
        %v1464 = vcombine.high %v1048, %v1056
        %v1466 = vunpack.c.l.s4 1983009808
        %v1467 = vunpack.c.0.s8 %v1466
        %v1468 = vlaneseq
        %v1469 = vshrl.u32 %v1468, 7
        %v1470 = vsub.s32 %v1467, %v1469
        %v1471 = vrot.slane %v1463, %v1470
        %v1473 = vunpack.c.l.s4 1983009808
        %v1474 = vunpack.c.0.s8 %v1473
        %v1475 = vlaneseq
        %v1476 = vshrl.u32 %v1475, 7
        %v1477 = vsub.s32 %v1474, %v1476
        %v1478 = vrot.slane %v1464, %v1477
        %v1479 = vcombine.low %v1052, %v1060
        %v1480 = vcombine.high %v1052, %v1060
        %v1482 = vunpack.c.l.s4 1983009808
        %v1483 = vunpack.c.0.s8 %v1482
        %v1484 = vlaneseq
        %v1485 = vshrl.u32 %v1484, 7
        %v1486 = vsub.s32 %v1483, %v1485
        %v1487 = vrot.slane %v1479, %v1486
        %v1489 = vunpack.c.l.s4 1983009808
        %v1490 = vunpack.c.0.s8 %v1489
        %v1491 = vlaneseq
        %v1492 = vshrl.u32 %v1491, 7
        %v1493 = vsub.s32 %v1490, %v1492
        %v1494 = vrot.slane %v1480, %v1493
        %v1495 = vcombine.low %v1439, %v1455
        %v1496 = vcombine.high %v1439, %v1455
        %v1498 = vunpack.c.l.s4 1934713408
        %v1499 = vunpack.c.0.s8 %v1498
        %v1500 = vlaneseq
        %v1501 = vshrl.u32 %v1500, 7
        %v1502 = vsub.s32 %v1499, %v1501
        %v1503 = vrot.slane %v1495, %v1502
        %v1505 = vunpack.c.l.s4 1934713408
        %v1506 = vunpack.c.0.s8 %v1505
        %v1507 = vlaneseq
        %v1508 = vshrl.u32 %v1507, 7
        %v1509 = vsub.s32 %v1506, %v1508
        %v1510 = vrot.slane %v1496, %v1509
        %v1511 = vcombine.low %v1446, %v1462
        %v1512 = vcombine.high %v1446, %v1462
        %v1514 = vunpack.c.l.s4 1934713408
        %v1515 = vunpack.c.0.s8 %v1514
        %v1516 = vlaneseq
        %v1517 = vshrl.u32 %v1516, 7
        %v1518 = vsub.s32 %v1515, %v1517
        %v1519 = vrot.slane %v1511, %v1518
        %v1521 = vunpack.c.l.s4 1934713408
        %v1522 = vunpack.c.0.s8 %v1521
        %v1523 = vlaneseq
        %v1524 = vshrl.u32 %v1523, 7
        %v1525 = vsub.s32 %v1522, %v1524
        %v1526 = vrot.slane %v1512, %v1525
        %v1527 = vcombine.low %v1471, %v1487
        %v1528 = vcombine.high %v1471, %v1487
        %v1530 = vunpack.c.l.s4 1934713408
        %v1531 = vunpack.c.0.s8 %v1530
        %v1532 = vlaneseq
        %v1533 = vshrl.u32 %v1532, 7
        %v1534 = vsub.s32 %v1531, %v1533
        %v1535 = vrot.slane %v1527, %v1534
        %v1537 = vunpack.c.l.s4 1934713408
        %v1538 = vunpack.c.0.s8 %v1537
        %v1539 = vlaneseq
        %v1540 = vshrl.u32 %v1539, 7
        %v1541 = vsub.s32 %v1538, %v1540
        %v1542 = vrot.slane %v1528, %v1541
        %v1543 = vcombine.low %v1478, %v1494
        %v1544 = vcombine.high %v1478, %v1494
        %v1546 = vunpack.c.l.s4 1934713408
        %v1547 = vunpack.c.0.s8 %v1546
        %v1548 = vlaneseq
        %v1549 = vshrl.u32 %v1548, 7
        %v1550 = vsub.s32 %v1547, %v1549
        %v1551 = vrot.slane %v1543, %v1550
        %v1553 = vunpack.c.l.s4 1934713408
        %v1554 = vunpack.c.0.s8 %v1553
        %v1555 = vlaneseq
        %v1556 = vshrl.u32 %v1555, 7
        %v1557 = vsub.s32 %v1554, %v1556
        %v1558 = vrot.slane %v1544, %v1557
        %v1559 = vcombine.low %v1503, %v1535
        %v1560 = vcombine.high %v1503, %v1535
        %v1561 = vcombine.low %v1510, %v1542
        %v1562 = vcombine.high %v1510, %v1542
        %v1563 = vcombine.low %v1519, %v1551
        %v1564 = vcombine.high %v1519, %v1551
        %v1565 = vcombine.low %v1526, %v1558
        %v1566 = vcombine.high %v1526, %v1558
        %v1567 = vcombine.low %v1064, %v1072
        %v1568 = vcombine.high %v1064, %v1072
        %v1570 = vunpack.c.l.s4 1983009808
        %v1571 = vunpack.c.0.s8 %v1570
        %v1572 = vlaneseq
        %v1573 = vshrl.u32 %v1572, 7
        %v1574 = vsub.s32 %v1571, %v1573
        %v1575 = vrot.slane %v1567, %v1574
        %v1577 = vunpack.c.l.s4 1983009808
        %v1578 = vunpack.c.0.s8 %v1577
        %v1579 = vlaneseq
        %v1580 = vshrl.u32 %v1579, 7
        %v1581 = vsub.s32 %v1578, %v1580
        %v1582 = vrot.slane %v1568, %v1581
        %v1583 = vcombine.low %v1068, %v1076
        %v1584 = vcombine.high %v1068, %v1076
        %v1586 = vunpack.c.l.s4 1983009808
        %v1587 = vunpack.c.0.s8 %v1586
        %v1588 = vlaneseq
        %v1589 = vshrl.u32 %v1588, 7
        %v1590 = vsub.s32 %v1587, %v1589
        %v1591 = vrot.slane %v1583, %v1590
        %v1593 = vunpack.c.l.s4 1983009808
        %v1594 = vunpack.c.0.s8 %v1593
        %v1595 = vlaneseq
        %v1596 = vshrl.u32 %v1595, 7
        %v1597 = vsub.s32 %v1594, %v1596
        %v1598 = vrot.slane %v1584, %v1597
        %v1599 = vcombine.low %v1080, %v1088
        %v1600 = vcombine.high %v1080, %v1088
        %v1602 = vunpack.c.l.s4 1983009808
        %v1603 = vunpack.c.0.s8 %v1602
        %v1604 = vlaneseq
        %v1605 = vshrl.u32 %v1604, 7
        %v1606 = vsub.s32 %v1603, %v1605
        %v1607 = vrot.slane %v1599, %v1606
        %v1609 = vunpack.c.l.s4 1983009808
        %v1610 = vunpack.c.0.s8 %v1609
        %v1611 = vlaneseq
        %v1612 = vshrl.u32 %v1611, 7
        %v1613 = vsub.s32 %v1610, %v1612
        %v1614 = vrot.slane %v1600, %v1613
        %v1615 = vcombine.low %v1084, %v1092
        %v1616 = vcombine.high %v1084, %v1092
        %v1618 = vunpack.c.l.s4 1983009808
        %v1619 = vunpack.c.0.s8 %v1618
        %v1620 = vlaneseq
        %v1621 = vshrl.u32 %v1620, 7
        %v1622 = vsub.s32 %v1619, %v1621
        %v1623 = vrot.slane %v1615, %v1622
        %v1625 = vunpack.c.l.s4 1983009808
        %v1626 = vunpack.c.0.s8 %v1625
        %v1627 = vlaneseq
        %v1628 = vshrl.u32 %v1627, 7
        %v1629 = vsub.s32 %v1626, %v1628
        %v1630 = vrot.slane %v1616, %v1629
        %v1631 = vcombine.low %v1575, %v1591
        %v1632 = vcombine.high %v1575, %v1591
        %v1634 = vunpack.c.l.s4 1934713408
        %v1635 = vunpack.c.0.s8 %v1634
        %v1636 = vlaneseq
        %v1637 = vshrl.u32 %v1636, 7
        %v1638 = vsub.s32 %v1635, %v1637
        %v1639 = vrot.slane %v1631, %v1638
        %v1641 = vunpack.c.l.s4 1934713408
        %v1642 = vunpack.c.0.s8 %v1641
        %v1643 = vlaneseq
        %v1644 = vshrl.u32 %v1643, 7
        %v1645 = vsub.s32 %v1642, %v1644
        %v1646 = vrot.slane %v1632, %v1645
        %v1647 = vcombine.low %v1582, %v1598
        %v1648 = vcombine.high %v1582, %v1598
        %v1650 = vunpack.c.l.s4 1934713408
        %v1651 = vunpack.c.0.s8 %v1650
        %v1652 = vlaneseq
        %v1653 = vshrl.u32 %v1652, 7
        %v1654 = vsub.s32 %v1651, %v1653
        %v1655 = vrot.slane %v1647, %v1654
        %v1657 = vunpack.c.l.s4 1934713408
        %v1658 = vunpack.c.0.s8 %v1657
        %v1659 = vlaneseq
        %v1660 = vshrl.u32 %v1659, 7
        %v1661 = vsub.s32 %v1658, %v1660
        %v1662 = vrot.slane %v1648, %v1661
        %v1663 = vcombine.low %v1607, %v1623
        %v1664 = vcombine.high %v1607, %v1623
        %v1666 = vunpack.c.l.s4 1934713408
        %v1667 = vunpack.c.0.s8 %v1666
        %v1668 = vlaneseq
        %v1669 = vshrl.u32 %v1668, 7
        %v1670 = vsub.s32 %v1667, %v1669
        %v1671 = vrot.slane %v1663, %v1670
        %v1673 = vunpack.c.l.s4 1934713408
        %v1674 = vunpack.c.0.s8 %v1673
        %v1675 = vlaneseq
        %v1676 = vshrl.u32 %v1675, 7
        %v1677 = vsub.s32 %v1674, %v1676
        %v1678 = vrot.slane %v1664, %v1677
        %v1679 = vcombine.low %v1614, %v1630
        %v1680 = vcombine.high %v1614, %v1630
        %v1682 = vunpack.c.l.s4 1934713408
        %v1683 = vunpack.c.0.s8 %v1682
        %v1684 = vlaneseq
        %v1685 = vshrl.u32 %v1684, 7
        %v1686 = vsub.s32 %v1683, %v1685
        %v1687 = vrot.slane %v1679, %v1686
        %v1689 = vunpack.c.l.s4 1934713408
        %v1690 = vunpack.c.0.s8 %v1689
        %v1691 = vlaneseq
        %v1692 = vshrl.u32 %v1691, 7
        %v1693 = vsub.s32 %v1690, %v1692
        %v1694 = vrot.slane %v1680, %v1693
        %v1695 = vcombine.low %v1639, %v1671
        %v1696 = vcombine.high %v1639, %v1671
        %v1697 = vcombine.low %v1646, %v1678
        %v1698 = vcombine.high %v1646, %v1678
        %v1699 = vcombine.low %v1655, %v1687
        %v1700 = vcombine.high %v1655, %v1687
        %v1701 = vcombine.low %v1662, %v1694
        %v1702 = vcombine.high %v1662, %v1694
        %v1703 = vcombine.low %v1096, %v1104
        %v1704 = vcombine.high %v1096, %v1104
        %v1706 = vunpack.c.l.s4 1983009808
        %v1707 = vunpack.c.0.s8 %v1706
        %v1708 = vlaneseq
        %v1709 = vshrl.u32 %v1708, 7
        %v1710 = vsub.s32 %v1707, %v1709
        %v1711 = vrot.slane %v1703, %v1710
        %v1713 = vunpack.c.l.s4 1983009808
        %v1714 = vunpack.c.0.s8 %v1713
        %v1715 = vlaneseq
        %v1716 = vshrl.u32 %v1715, 7
        %v1717 = vsub.s32 %v1714, %v1716
        %v1718 = vrot.slane %v1704, %v1717
        %v1719 = vcombine.low %v1100, %v1108
        %v1720 = vcombine.high %v1100, %v1108
        %v1722 = vunpack.c.l.s4 1983009808
        %v1723 = vunpack.c.0.s8 %v1722
        %v1724 = vlaneseq
        %v1725 = vshrl.u32 %v1724, 7
        %v1726 = vsub.s32 %v1723, %v1725
        %v1727 = vrot.slane %v1719, %v1726
        %v1729 = vunpack.c.l.s4 1983009808
        %v1730 = vunpack.c.0.s8 %v1729
        %v1731 = vlaneseq
        %v1732 = vshrl.u32 %v1731, 7
        %v1733 = vsub.s32 %v1730, %v1732
        %v1734 = vrot.slane %v1720, %v1733
        %v1735 = vcombine.low %v1112, %v1120
        %v1736 = vcombine.high %v1112, %v1120
        %v1738 = vunpack.c.l.s4 1983009808
        %v1739 = vunpack.c.0.s8 %v1738
        %v1740 = vlaneseq
        %v1741 = vshrl.u32 %v1740, 7
        %v1742 = vsub.s32 %v1739, %v1741
        %v1743 = vrot.slane %v1735, %v1742
        %v1745 = vunpack.c.l.s4 1983009808
        %v1746 = vunpack.c.0.s8 %v1745
        %v1747 = vlaneseq
        %v1748 = vshrl.u32 %v1747, 7
        %v1749 = vsub.s32 %v1746, %v1748
        %v1750 = vrot.slane %v1736, %v1749
        %v1751 = vcombine.low %v1116, %v1124
        %v1752 = vcombine.high %v1116, %v1124
        %v1754 = vunpack.c.l.s4 1983009808
        %v1755 = vunpack.c.0.s8 %v1754
        %v1756 = vlaneseq
        %v1757 = vshrl.u32 %v1756, 7
        %v1758 = vsub.s32 %v1755, %v1757
        %v1759 = vrot.slane %v1751, %v1758
        %v1761 = vunpack.c.l.s4 1983009808
        %v1762 = vunpack.c.0.s8 %v1761
        %v1763 = vlaneseq
        %v1764 = vshrl.u32 %v1763, 7
        %v1765 = vsub.s32 %v1762, %v1764
        %v1766 = vrot.slane %v1752, %v1765
        %v1767 = vcombine.low %v1711, %v1727
        %v1768 = vcombine.high %v1711, %v1727
        %v1770 = vunpack.c.l.s4 1934713408
        %v1771 = vunpack.c.0.s8 %v1770
        %v1772 = vlaneseq
        %v1773 = vshrl.u32 %v1772, 7
        %v1774 = vsub.s32 %v1771, %v1773
        %v1775 = vrot.slane %v1767, %v1774
        %v1777 = vunpack.c.l.s4 1934713408
        %v1778 = vunpack.c.0.s8 %v1777
        %v1779 = vlaneseq
        %v1780 = vshrl.u32 %v1779, 7
        %v1781 = vsub.s32 %v1778, %v1780
        %v1782 = vrot.slane %v1768, %v1781
        %v1783 = vcombine.low %v1718, %v1734
        %v1784 = vcombine.high %v1718, %v1734
        %v1786 = vunpack.c.l.s4 1934713408
        %v1787 = vunpack.c.0.s8 %v1786
        %v1788 = vlaneseq
        %v1789 = vshrl.u32 %v1788, 7
        %v1790 = vsub.s32 %v1787, %v1789
        %v1791 = vrot.slane %v1783, %v1790
        %v1793 = vunpack.c.l.s4 1934713408
        %v1794 = vunpack.c.0.s8 %v1793
        %v1795 = vlaneseq
        %v1796 = vshrl.u32 %v1795, 7
        %v1797 = vsub.s32 %v1794, %v1796
        %v1798 = vrot.slane %v1784, %v1797
        %v1799 = vcombine.low %v1743, %v1759
        %v1800 = vcombine.high %v1743, %v1759
        %v1802 = vunpack.c.l.s4 1934713408
        %v1803 = vunpack.c.0.s8 %v1802
        %v1804 = vlaneseq
        %v1805 = vshrl.u32 %v1804, 7
        %v1806 = vsub.s32 %v1803, %v1805
        %v1807 = vrot.slane %v1799, %v1806
        %v1809 = vunpack.c.l.s4 1934713408
        %v1810 = vunpack.c.0.s8 %v1809
        %v1811 = vlaneseq
        %v1812 = vshrl.u32 %v1811, 7
        %v1813 = vsub.s32 %v1810, %v1812
        %v1814 = vrot.slane %v1800, %v1813
        %v1815 = vcombine.low %v1750, %v1766
        %v1816 = vcombine.high %v1750, %v1766
        %v1818 = vunpack.c.l.s4 1934713408
        %v1819 = vunpack.c.0.s8 %v1818
        %v1820 = vlaneseq
        %v1821 = vshrl.u32 %v1820, 7
        %v1822 = vsub.s32 %v1819, %v1821
        %v1823 = vrot.slane %v1815, %v1822
        %v1825 = vunpack.c.l.s4 1934713408
        %v1826 = vunpack.c.0.s8 %v1825
        %v1827 = vlaneseq
        %v1828 = vshrl.u32 %v1827, 7
        %v1829 = vsub.s32 %v1826, %v1828
        %v1830 = vrot.slane %v1816, %v1829
        %v1831 = vcombine.low %v1775, %v1807
        %v1832 = vcombine.high %v1775, %v1807
        %v1833 = vcombine.low %v1782, %v1814
        %v1834 = vcombine.high %v1782, %v1814
        %v1835 = vcombine.low %v1791, %v1823
        %v1836 = vcombine.high %v1791, %v1823
        %v1837 = vcombine.low %v1798, %v1830
        %v1838 = vcombine.high %v1798, %v1830
        %v1839 = vcombine.low %v1128, %v1136
        %v1840 = vcombine.high %v1128, %v1136
        %v1842 = vunpack.c.l.s4 1983009808
        %v1843 = vunpack.c.0.s8 %v1842
        %v1844 = vlaneseq
        %v1845 = vshrl.u32 %v1844, 7
        %v1846 = vsub.s32 %v1843, %v1845
        %v1847 = vrot.slane %v1839, %v1846
        %v1849 = vunpack.c.l.s4 1983009808
        %v1850 = vunpack.c.0.s8 %v1849
        %v1851 = vlaneseq
        %v1852 = vshrl.u32 %v1851, 7
        %v1853 = vsub.s32 %v1850, %v1852
        %v1854 = vrot.slane %v1840, %v1853
        %v1855 = vcombine.low %v1132, %v1140
        %v1856 = vcombine.high %v1132, %v1140
        %v1858 = vunpack.c.l.s4 1983009808
        %v1859 = vunpack.c.0.s8 %v1858
        %v1860 = vlaneseq
        %v1861 = vshrl.u32 %v1860, 7
        %v1862 = vsub.s32 %v1859, %v1861
        %v1863 = vrot.slane %v1855, %v1862
        %v1865 = vunpack.c.l.s4 1983009808
        %v1866 = vunpack.c.0.s8 %v1865
        %v1867 = vlaneseq
        %v1868 = vshrl.u32 %v1867, 7
        %v1869 = vsub.s32 %v1866, %v1868
        %v1870 = vrot.slane %v1856, %v1869
        %v1871 = vcombine.low %v1144, %v413
        %v1872 = vcombine.high %v1144, %v413
        %v1874 = vunpack.c.l.s4 1983009808
        %v1875 = vunpack.c.0.s8 %v1874
        %v1876 = vlaneseq
        %v1877 = vshrl.u32 %v1876, 7
        %v1878 = vsub.s32 %v1875, %v1877
        %v1879 = vrot.slane %v1871, %v1878
        %v1881 = vunpack.c.l.s4 1983009808
        %v1882 = vunpack.c.0.s8 %v1881
        %v1883 = vlaneseq
        %v1884 = vshrl.u32 %v1883, 7
        %v1885 = vsub.s32 %v1882, %v1884
        %v1886 = vrot.slane %v1872, %v1885
        %v1887 = vcombine.low %v1148, %v419
        %v1888 = vcombine.high %v1148, %v419
        %v1890 = vunpack.c.l.s4 1983009808
        %v1891 = vunpack.c.0.s8 %v1890
        %v1892 = vlaneseq
        %v1893 = vshrl.u32 %v1892, 7
        %v1894 = vsub.s32 %v1891, %v1893
        %v1895 = vrot.slane %v1887, %v1894
        %v1897 = vunpack.c.l.s4 1983009808
        %v1898 = vunpack.c.0.s8 %v1897
        %v1899 = vlaneseq
        %v1900 = vshrl.u32 %v1899, 7
        %v1901 = vsub.s32 %v1898, %v1900
        %v1902 = vrot.slane %v1888, %v1901
        %v1903 = vcombine.low %v1847, %v1863
        %v1904 = vcombine.high %v1847, %v1863
        %v1906 = vunpack.c.l.s4 1934713408
        %v1907 = vunpack.c.0.s8 %v1906
        %v1908 = vlaneseq
        %v1909 = vshrl.u32 %v1908, 7
        %v1910 = vsub.s32 %v1907, %v1909
        %v1911 = vrot.slane %v1903, %v1910
        %v1913 = vunpack.c.l.s4 1934713408
        %v1914 = vunpack.c.0.s8 %v1913
        %v1915 = vlaneseq
        %v1916 = vshrl.u32 %v1915, 7
        %v1917 = vsub.s32 %v1914, %v1916
        %v1918 = vrot.slane %v1904, %v1917
        %v1919 = vcombine.low %v1854, %v1870
        %v1920 = vcombine.high %v1854, %v1870
        %v1922 = vunpack.c.l.s4 1934713408
        %v1923 = vunpack.c.0.s8 %v1922
        %v1924 = vlaneseq
        %v1925 = vshrl.u32 %v1924, 7
        %v1926 = vsub.s32 %v1923, %v1925
        %v1927 = vrot.slane %v1919, %v1926
        %v1929 = vunpack.c.l.s4 1934713408
        %v1930 = vunpack.c.0.s8 %v1929
        %v1931 = vlaneseq
        %v1932 = vshrl.u32 %v1931, 7
        %v1933 = vsub.s32 %v1930, %v1932
        %v1934 = vrot.slane %v1920, %v1933
        %v1935 = vcombine.low %v1879, %v1895
        %v1936 = vcombine.high %v1879, %v1895
        %v1938 = vunpack.c.l.s4 1934713408
        %v1939 = vunpack.c.0.s8 %v1938
        %v1940 = vlaneseq
        %v1941 = vshrl.u32 %v1940, 7
        %v1942 = vsub.s32 %v1939, %v1941
        %v1943 = vrot.slane %v1935, %v1942
        %v1945 = vunpack.c.l.s4 1934713408
        %v1946 = vunpack.c.0.s8 %v1945
        %v1947 = vlaneseq
        %v1948 = vshrl.u32 %v1947, 7
        %v1949 = vsub.s32 %v1946, %v1948
        %v1950 = vrot.slane %v1936, %v1949
        %v1951 = vcombine.low %v1886, %v1902
        %v1952 = vcombine.high %v1886, %v1902
        %v1954 = vunpack.c.l.s4 1934713408
        %v1955 = vunpack.c.0.s8 %v1954
        %v1956 = vlaneseq
        %v1957 = vshrl.u32 %v1956, 7
        %v1958 = vsub.s32 %v1955, %v1957
        %v1959 = vrot.slane %v1951, %v1958
        %v1961 = vunpack.c.l.s4 1934713408
        %v1962 = vunpack.c.0.s8 %v1961
        %v1963 = vlaneseq
        %v1964 = vshrl.u32 %v1963, 7
        %v1965 = vsub.s32 %v1962, %v1964
        %v1966 = vrot.slane %v1952, %v1965
        %v1967 = vcombine.low %v1911, %v1943
        %v1968 = vcombine.high %v1911, %v1943
        %v1969 = vcombine.low %v1918, %v1950
        %v1970 = vcombine.high %v1918, %v1950
        %v1971 = vcombine.low %v1927, %v1959
        %v1972 = vcombine.high %v1927, %v1959
        %v1973 = vcombine.low %v1934, %v1966
        %v1974 = vcombine.high %v1934, %v1966
        %v1975 = vcombine.low %v1152, %v1160
        %v1976 = vcombine.high %v1152, %v1160
        %v1978 = vunpack.c.l.s4 1983009808
        %v1979 = vunpack.c.0.s8 %v1978
        %v1980 = vlaneseq
        %v1981 = vshrl.u32 %v1980, 7
        %v1982 = vsub.s32 %v1979, %v1981
        %v1983 = vrot.slane %v1975, %v1982
        %v1985 = vunpack.c.l.s4 1983009808
        %v1986 = vunpack.c.0.s8 %v1985
        %v1987 = vlaneseq
        %v1988 = vshrl.u32 %v1987, 7
        %v1989 = vsub.s32 %v1986, %v1988
        %v1990 = vrot.slane %v1976, %v1989
        %v1991 = vcombine.low %v1156, %v1164
        %v1992 = vcombine.high %v1156, %v1164
        %v1994 = vunpack.c.l.s4 1983009808
        %v1995 = vunpack.c.0.s8 %v1994
        %v1996 = vlaneseq
        %v1997 = vshrl.u32 %v1996, 7
        %v1998 = vsub.s32 %v1995, %v1997
        %v1999 = vrot.slane %v1991, %v1998
        %v2001 = vunpack.c.l.s4 1983009808
        %v2002 = vunpack.c.0.s8 %v2001
        %v2003 = vlaneseq
        %v2004 = vshrl.u32 %v2003, 7
        %v2005 = vsub.s32 %v2002, %v2004
        %v2006 = vrot.slane %v1992, %v2005
        %v2007 = vcombine.low %v1168, %v1176
        %v2008 = vcombine.high %v1168, %v1176
        %v2010 = vunpack.c.l.s4 1983009808
        %v2011 = vunpack.c.0.s8 %v2010
        %v2012 = vlaneseq
        %v2013 = vshrl.u32 %v2012, 7
        %v2014 = vsub.s32 %v2011, %v2013
        %v2015 = vrot.slane %v2007, %v2014
        %v2017 = vunpack.c.l.s4 1983009808
        %v2018 = vunpack.c.0.s8 %v2017
        %v2019 = vlaneseq
        %v2020 = vshrl.u32 %v2019, 7
        %v2021 = vsub.s32 %v2018, %v2020
        %v2022 = vrot.slane %v2008, %v2021
        %v2023 = vcombine.low %v1172, %v1180
        %v2024 = vcombine.high %v1172, %v1180
        %v2026 = vunpack.c.l.s4 1983009808
        %v2027 = vunpack.c.0.s8 %v2026
        %v2028 = vlaneseq
        %v2029 = vshrl.u32 %v2028, 7
        %v2030 = vsub.s32 %v2027, %v2029
        %v2031 = vrot.slane %v2023, %v2030
        %v2033 = vunpack.c.l.s4 1983009808
        %v2034 = vunpack.c.0.s8 %v2033
        %v2035 = vlaneseq
        %v2036 = vshrl.u32 %v2035, 7
        %v2037 = vsub.s32 %v2034, %v2036
        %v2038 = vrot.slane %v2024, %v2037
        %v2039 = vcombine.low %v1983, %v1999
        %v2040 = vcombine.high %v1983, %v1999
        %v2042 = vunpack.c.l.s4 1934713408
        %v2043 = vunpack.c.0.s8 %v2042
        %v2044 = vlaneseq
        %v2045 = vshrl.u32 %v2044, 7
        %v2046 = vsub.s32 %v2043, %v2045
        %v2047 = vrot.slane %v2039, %v2046
        %v2049 = vunpack.c.l.s4 1934713408
        %v2050 = vunpack.c.0.s8 %v2049
        %v2051 = vlaneseq
        %v2052 = vshrl.u32 %v2051, 7
        %v2053 = vsub.s32 %v2050, %v2052
        %v2054 = vrot.slane %v2040, %v2053
        %v2055 = vcombine.low %v1990, %v2006
        %v2056 = vcombine.high %v1990, %v2006
        %v2058 = vunpack.c.l.s4 1934713408
        %v2059 = vunpack.c.0.s8 %v2058
        %v2060 = vlaneseq
        %v2061 = vshrl.u32 %v2060, 7
        %v2062 = vsub.s32 %v2059, %v2061
        %v2063 = vrot.slane %v2055, %v2062
        %v2065 = vunpack.c.l.s4 1934713408
        %v2066 = vunpack.c.0.s8 %v2065
        %v2067 = vlaneseq
        %v2068 = vshrl.u32 %v2067, 7
        %v2069 = vsub.s32 %v2066, %v2068
        %v2070 = vrot.slane %v2056, %v2069
        %v2071 = vcombine.low %v2015, %v2031
        %v2072 = vcombine.high %v2015, %v2031
        %v2074 = vunpack.c.l.s4 1934713408
        %v2075 = vunpack.c.0.s8 %v2074
        %v2076 = vlaneseq
        %v2077 = vshrl.u32 %v2076, 7
        %v2078 = vsub.s32 %v2075, %v2077
        %v2079 = vrot.slane %v2071, %v2078
        %v2081 = vunpack.c.l.s4 1934713408
        %v2082 = vunpack.c.0.s8 %v2081
        %v2083 = vlaneseq
        %v2084 = vshrl.u32 %v2083, 7
        %v2085 = vsub.s32 %v2082, %v2084
        %v2086 = vrot.slane %v2072, %v2085
        %v2087 = vcombine.low %v2022, %v2038
        %v2088 = vcombine.high %v2022, %v2038
        %v2090 = vunpack.c.l.s4 1934713408
        %v2091 = vunpack.c.0.s8 %v2090
        %v2092 = vlaneseq
        %v2093 = vshrl.u32 %v2092, 7
        %v2094 = vsub.s32 %v2091, %v2093
        %v2095 = vrot.slane %v2087, %v2094
        %v2097 = vunpack.c.l.s4 1934713408
        %v2098 = vunpack.c.0.s8 %v2097
        %v2099 = vlaneseq
        %v2100 = vshrl.u32 %v2099, 7
        %v2101 = vsub.s32 %v2098, %v2100
        %v2102 = vrot.slane %v2088, %v2101
        %v2103 = vcombine.low %v2047, %v2079
        %v2104 = vcombine.high %v2047, %v2079
        %v2105 = vcombine.low %v2054, %v2086
        %v2106 = vcombine.high %v2054, %v2086
        %v2107 = vcombine.low %v2063, %v2095
        %v2108 = vcombine.high %v2063, %v2095
        %v2109 = vcombine.low %v2070, %v2102
        %v2110 = vcombine.high %v2070, %v2102
        %v2111 = vcombine.low %v1184, %v1192
        %v2112 = vcombine.high %v1184, %v1192
        %v2114 = vunpack.c.l.s4 1983009808
        %v2115 = vunpack.c.0.s8 %v2114
        %v2116 = vlaneseq
        %v2117 = vshrl.u32 %v2116, 7
        %v2118 = vsub.s32 %v2115, %v2117
        %v2119 = vrot.slane %v2111, %v2118
        %v2121 = vunpack.c.l.s4 1983009808
        %v2122 = vunpack.c.0.s8 %v2121
        %v2123 = vlaneseq
        %v2124 = vshrl.u32 %v2123, 7
        %v2125 = vsub.s32 %v2122, %v2124
        %v2126 = vrot.slane %v2112, %v2125
        %v2127 = vcombine.low %v1188, %v1196
        %v2128 = vcombine.high %v1188, %v1196
        %v2130 = vunpack.c.l.s4 1983009808
        %v2131 = vunpack.c.0.s8 %v2130
        %v2132 = vlaneseq
        %v2133 = vshrl.u32 %v2132, 7
        %v2134 = vsub.s32 %v2131, %v2133
        %v2135 = vrot.slane %v2127, %v2134
        %v2137 = vunpack.c.l.s4 1983009808
        %v2138 = vunpack.c.0.s8 %v2137
        %v2139 = vlaneseq
        %v2140 = vshrl.u32 %v2139, 7
        %v2141 = vsub.s32 %v2138, %v2140
        %v2142 = vrot.slane %v2128, %v2141
        %v2143 = vcombine.low %v1200, %v1208
        %v2144 = vcombine.high %v1200, %v1208
        %v2146 = vunpack.c.l.s4 1983009808
        %v2147 = vunpack.c.0.s8 %v2146
        %v2148 = vlaneseq
        %v2149 = vshrl.u32 %v2148, 7
        %v2150 = vsub.s32 %v2147, %v2149
        %v2151 = vrot.slane %v2143, %v2150
        %v2153 = vunpack.c.l.s4 1983009808
        %v2154 = vunpack.c.0.s8 %v2153
        %v2155 = vlaneseq
        %v2156 = vshrl.u32 %v2155, 7
        %v2157 = vsub.s32 %v2154, %v2156
        %v2158 = vrot.slane %v2144, %v2157
        %v2159 = vcombine.low %v1204, %v1212
        %v2160 = vcombine.high %v1204, %v1212
        %v2162 = vunpack.c.l.s4 1983009808
        %v2163 = vunpack.c.0.s8 %v2162
        %v2164 = vlaneseq
        %v2165 = vshrl.u32 %v2164, 7
        %v2166 = vsub.s32 %v2163, %v2165
        %v2167 = vrot.slane %v2159, %v2166
        %v2169 = vunpack.c.l.s4 1983009808
        %v2170 = vunpack.c.0.s8 %v2169
        %v2171 = vlaneseq
        %v2172 = vshrl.u32 %v2171, 7
        %v2173 = vsub.s32 %v2170, %v2172
        %v2174 = vrot.slane %v2160, %v2173
        %v2175 = vcombine.low %v2119, %v2135
        %v2176 = vcombine.high %v2119, %v2135
        %v2178 = vunpack.c.l.s4 1934713408
        %v2179 = vunpack.c.0.s8 %v2178
        %v2180 = vlaneseq
        %v2181 = vshrl.u32 %v2180, 7
        %v2182 = vsub.s32 %v2179, %v2181
        %v2183 = vrot.slane %v2175, %v2182
        %v2185 = vunpack.c.l.s4 1934713408
        %v2186 = vunpack.c.0.s8 %v2185
        %v2187 = vlaneseq
        %v2188 = vshrl.u32 %v2187, 7
        %v2189 = vsub.s32 %v2186, %v2188
        %v2190 = vrot.slane %v2176, %v2189
        %v2191 = vcombine.low %v2126, %v2142
        %v2192 = vcombine.high %v2126, %v2142
        %v2194 = vunpack.c.l.s4 1934713408
        %v2195 = vunpack.c.0.s8 %v2194
        %v2196 = vlaneseq
        %v2197 = vshrl.u32 %v2196, 7
        %v2198 = vsub.s32 %v2195, %v2197
        %v2199 = vrot.slane %v2191, %v2198
        %v2201 = vunpack.c.l.s4 1934713408
        %v2202 = vunpack.c.0.s8 %v2201
        %v2203 = vlaneseq
        %v2204 = vshrl.u32 %v2203, 7
        %v2205 = vsub.s32 %v2202, %v2204
        %v2206 = vrot.slane %v2192, %v2205
        %v2207 = vcombine.low %v2151, %v2167
        %v2208 = vcombine.high %v2151, %v2167
        %v2210 = vunpack.c.l.s4 1934713408
        %v2211 = vunpack.c.0.s8 %v2210
        %v2212 = vlaneseq
        %v2213 = vshrl.u32 %v2212, 7
        %v2214 = vsub.s32 %v2211, %v2213
        %v2215 = vrot.slane %v2207, %v2214
        %v2217 = vunpack.c.l.s4 1934713408
        %v2218 = vunpack.c.0.s8 %v2217
        %v2219 = vlaneseq
        %v2220 = vshrl.u32 %v2219, 7
        %v2221 = vsub.s32 %v2218, %v2220
        %v2222 = vrot.slane %v2208, %v2221
        %v2223 = vcombine.low %v2158, %v2174
        %v2224 = vcombine.high %v2158, %v2174
        %v2226 = vunpack.c.l.s4 1934713408
        %v2227 = vunpack.c.0.s8 %v2226
        %v2228 = vlaneseq
        %v2229 = vshrl.u32 %v2228, 7
        %v2230 = vsub.s32 %v2227, %v2229
        %v2231 = vrot.slane %v2223, %v2230
        %v2233 = vunpack.c.l.s4 1934713408
        %v2234 = vunpack.c.0.s8 %v2233
        %v2235 = vlaneseq
        %v2236 = vshrl.u32 %v2235, 7
        %v2237 = vsub.s32 %v2234, %v2236
        %v2238 = vrot.slane %v2224, %v2237
        %v2239 = vcombine.low %v2183, %v2215
        %v2240 = vcombine.high %v2183, %v2215
        %v2241 = vcombine.low %v2190, %v2222
        %v2242 = vcombine.high %v2190, %v2222
        %v2243 = vcombine.low %v2199, %v2231
        %v2244 = vcombine.high %v2199, %v2231
        %v2245 = vcombine.low %v2206, %v2238
        %v2246 = vcombine.high %v2206, %v2238
        %v2247 = vcombine.low %v1216, %v1224
        %v2248 = vcombine.high %v1216, %v1224
        %v2250 = vunpack.c.l.s4 1983009808
        %v2251 = vunpack.c.0.s8 %v2250
        %v2252 = vlaneseq
        %v2253 = vshrl.u32 %v2252, 7
        %v2254 = vsub.s32 %v2251, %v2253
        %v2255 = vrot.slane %v2247, %v2254
        %v2257 = vunpack.c.l.s4 1983009808
        %v2258 = vunpack.c.0.s8 %v2257
        %v2259 = vlaneseq
        %v2260 = vshrl.u32 %v2259, 7
        %v2261 = vsub.s32 %v2258, %v2260
        %v2262 = vrot.slane %v2248, %v2261
        %v2263 = vcombine.low %v1220, %v1228
        %v2264 = vcombine.high %v1220, %v1228
        %v2266 = vunpack.c.l.s4 1983009808
        %v2267 = vunpack.c.0.s8 %v2266
        %v2268 = vlaneseq
        %v2269 = vshrl.u32 %v2268, 7
        %v2270 = vsub.s32 %v2267, %v2269
        %v2271 = vrot.slane %v2263, %v2270
        %v2273 = vunpack.c.l.s4 1983009808
        %v2274 = vunpack.c.0.s8 %v2273
        %v2275 = vlaneseq
        %v2276 = vshrl.u32 %v2275, 7
        %v2277 = vsub.s32 %v2274, %v2276
        %v2278 = vrot.slane %v2264, %v2277
        %v2279 = vcombine.low %v1232, %v1240
        %v2280 = vcombine.high %v1232, %v1240
        %v2282 = vunpack.c.l.s4 1983009808
        %v2283 = vunpack.c.0.s8 %v2282
        %v2284 = vlaneseq
        %v2285 = vshrl.u32 %v2284, 7
        %v2286 = vsub.s32 %v2283, %v2285
        %v2287 = vrot.slane %v2279, %v2286
        %v2289 = vunpack.c.l.s4 1983009808
        %v2290 = vunpack.c.0.s8 %v2289
        %v2291 = vlaneseq
        %v2292 = vshrl.u32 %v2291, 7
        %v2293 = vsub.s32 %v2290, %v2292
        %v2294 = vrot.slane %v2280, %v2293
        %v2295 = vcombine.low %v1236, %v1244
        %v2296 = vcombine.high %v1236, %v1244
        %v2298 = vunpack.c.l.s4 1983009808
        %v2299 = vunpack.c.0.s8 %v2298
        %v2300 = vlaneseq
        %v2301 = vshrl.u32 %v2300, 7
        %v2302 = vsub.s32 %v2299, %v2301
        %v2303 = vrot.slane %v2295, %v2302
        %v2305 = vunpack.c.l.s4 1983009808
        %v2306 = vunpack.c.0.s8 %v2305
        %v2307 = vlaneseq
        %v2308 = vshrl.u32 %v2307, 7
        %v2309 = vsub.s32 %v2306, %v2308
        %v2310 = vrot.slane %v2296, %v2309
        %v2311 = vcombine.low %v2255, %v2271
        %v2312 = vcombine.high %v2255, %v2271
        %v2314 = vunpack.c.l.s4 1934713408
        %v2315 = vunpack.c.0.s8 %v2314
        %v2316 = vlaneseq
        %v2317 = vshrl.u32 %v2316, 7
        %v2318 = vsub.s32 %v2315, %v2317
        %v2319 = vrot.slane %v2311, %v2318
        %v2321 = vunpack.c.l.s4 1934713408
        %v2322 = vunpack.c.0.s8 %v2321
        %v2323 = vlaneseq
        %v2324 = vshrl.u32 %v2323, 7
        %v2325 = vsub.s32 %v2322, %v2324
        %v2326 = vrot.slane %v2312, %v2325
        %v2327 = vcombine.low %v2262, %v2278
        %v2328 = vcombine.high %v2262, %v2278
        %v2330 = vunpack.c.l.s4 1934713408
        %v2331 = vunpack.c.0.s8 %v2330
        %v2332 = vlaneseq
        %v2333 = vshrl.u32 %v2332, 7
        %v2334 = vsub.s32 %v2331, %v2333
        %v2335 = vrot.slane %v2327, %v2334
        %v2337 = vunpack.c.l.s4 1934713408
        %v2338 = vunpack.c.0.s8 %v2337
        %v2339 = vlaneseq
        %v2340 = vshrl.u32 %v2339, 7
        %v2341 = vsub.s32 %v2338, %v2340
        %v2342 = vrot.slane %v2328, %v2341
        %v2343 = vcombine.low %v2287, %v2303
        %v2344 = vcombine.high %v2287, %v2303
        %v2346 = vunpack.c.l.s4 1934713408
        %v2347 = vunpack.c.0.s8 %v2346
        %v2348 = vlaneseq
        %v2349 = vshrl.u32 %v2348, 7
        %v2350 = vsub.s32 %v2347, %v2349
        %v2351 = vrot.slane %v2343, %v2350
        %v2353 = vunpack.c.l.s4 1934713408
        %v2354 = vunpack.c.0.s8 %v2353
        %v2355 = vlaneseq
        %v2356 = vshrl.u32 %v2355, 7
        %v2357 = vsub.s32 %v2354, %v2356
        %v2358 = vrot.slane %v2344, %v2357
        %v2359 = vcombine.low %v2294, %v2310
        %v2360 = vcombine.high %v2294, %v2310
        %v2362 = vunpack.c.l.s4 1934713408
        %v2363 = vunpack.c.0.s8 %v2362
        %v2364 = vlaneseq
        %v2365 = vshrl.u32 %v2364, 7
        %v2366 = vsub.s32 %v2363, %v2365
        %v2367 = vrot.slane %v2359, %v2366
        %v2369 = vunpack.c.l.s4 1934713408
        %v2370 = vunpack.c.0.s8 %v2369
        %v2371 = vlaneseq
        %v2372 = vshrl.u32 %v2371, 7
        %v2373 = vsub.s32 %v2370, %v2372
        %v2374 = vrot.slane %v2360, %v2373
        %v2375 = vcombine.low %v2319, %v2351
        %v2376 = vcombine.high %v2319, %v2351
        %v2377 = vcombine.low %v2326, %v2358
        %v2378 = vcombine.high %v2326, %v2358
        %v2379 = vcombine.low %v2335, %v2367
        %v2380 = vcombine.high %v2335, %v2367
        %v2381 = vcombine.low %v2342, %v2374
        %v2382 = vcombine.high %v2342, %v2374
        %v2383 = vcombine.low %v1248, %v1256
        %v2384 = vcombine.high %v1248, %v1256
        %v2386 = vunpack.c.l.s4 1983009808
        %v2387 = vunpack.c.0.s8 %v2386
        %v2388 = vlaneseq
        %v2389 = vshrl.u32 %v2388, 7
        %v2390 = vsub.s32 %v2387, %v2389
        %v2391 = vrot.slane %v2383, %v2390
        %v2393 = vunpack.c.l.s4 1983009808
        %v2394 = vunpack.c.0.s8 %v2393
        %v2395 = vlaneseq
        %v2396 = vshrl.u32 %v2395, 7
        %v2397 = vsub.s32 %v2394, %v2396
        %v2398 = vrot.slane %v2384, %v2397
        %v2399 = vcombine.low %v1252, %v1260
        %v2400 = vcombine.high %v1252, %v1260
        %v2402 = vunpack.c.l.s4 1983009808
        %v2403 = vunpack.c.0.s8 %v2402
        %v2404 = vlaneseq
        %v2405 = vshrl.u32 %v2404, 7
        %v2406 = vsub.s32 %v2403, %v2405
        %v2407 = vrot.slane %v2399, %v2406
        %v2409 = vunpack.c.l.s4 1983009808
        %v2410 = vunpack.c.0.s8 %v2409
        %v2411 = vlaneseq
        %v2412 = vshrl.u32 %v2411, 7
        %v2413 = vsub.s32 %v2410, %v2412
        %v2414 = vrot.slane %v2400, %v2413
        %v2415 = vcombine.low %v1264, %v1272
        %v2416 = vcombine.high %v1264, %v1272
        %v2418 = vunpack.c.l.s4 1983009808
        %v2419 = vunpack.c.0.s8 %v2418
        %v2420 = vlaneseq
        %v2421 = vshrl.u32 %v2420, 7
        %v2422 = vsub.s32 %v2419, %v2421
        %v2423 = vrot.slane %v2415, %v2422
        %v2425 = vunpack.c.l.s4 1983009808
        %v2426 = vunpack.c.0.s8 %v2425
        %v2427 = vlaneseq
        %v2428 = vshrl.u32 %v2427, 7
        %v2429 = vsub.s32 %v2426, %v2428
        %v2430 = vrot.slane %v2416, %v2429
        %v2431 = vcombine.low %v1268, %v1276
        %v2432 = vcombine.high %v1268, %v1276
        %v2434 = vunpack.c.l.s4 1983009808
        %v2435 = vunpack.c.0.s8 %v2434
        %v2436 = vlaneseq
        %v2437 = vshrl.u32 %v2436, 7
        %v2438 = vsub.s32 %v2435, %v2437
        %v2439 = vrot.slane %v2431, %v2438
        %v2441 = vunpack.c.l.s4 1983009808
        %v2442 = vunpack.c.0.s8 %v2441
        %v2443 = vlaneseq
        %v2444 = vshrl.u32 %v2443, 7
        %v2445 = vsub.s32 %v2442, %v2444
        %v2446 = vrot.slane %v2432, %v2445
        %v2447 = vcombine.low %v2391, %v2407
        %v2448 = vcombine.high %v2391, %v2407
        %v2450 = vunpack.c.l.s4 1934713408
        %v2451 = vunpack.c.0.s8 %v2450
        %v2452 = vlaneseq
        %v2453 = vshrl.u32 %v2452, 7
        %v2454 = vsub.s32 %v2451, %v2453
        %v2455 = vrot.slane %v2447, %v2454
        %v2457 = vunpack.c.l.s4 1934713408
        %v2458 = vunpack.c.0.s8 %v2457
        %v2459 = vlaneseq
        %v2460 = vshrl.u32 %v2459, 7
        %v2461 = vsub.s32 %v2458, %v2460
        %v2462 = vrot.slane %v2448, %v2461
        %v2463 = vcombine.low %v2398, %v2414
        %v2464 = vcombine.high %v2398, %v2414
        %v2466 = vunpack.c.l.s4 1934713408
        %v2467 = vunpack.c.0.s8 %v2466
        %v2468 = vlaneseq
        %v2469 = vshrl.u32 %v2468, 7
        %v2470 = vsub.s32 %v2467, %v2469
        %v2471 = vrot.slane %v2463, %v2470
        %v2473 = vunpack.c.l.s4 1934713408
        %v2474 = vunpack.c.0.s8 %v2473
        %v2475 = vlaneseq
        %v2476 = vshrl.u32 %v2475, 7
        %v2477 = vsub.s32 %v2474, %v2476
        %v2478 = vrot.slane %v2464, %v2477
        %v2479 = vcombine.low %v2423, %v2439
        %v2480 = vcombine.high %v2423, %v2439
        %v2482 = vunpack.c.l.s4 1934713408
        %v2483 = vunpack.c.0.s8 %v2482
        %v2484 = vlaneseq
        %v2485 = vshrl.u32 %v2484, 7
        %v2486 = vsub.s32 %v2483, %v2485
        %v2487 = vrot.slane %v2479, %v2486
        %v2489 = vunpack.c.l.s4 1934713408
        %v2490 = vunpack.c.0.s8 %v2489
        %v2491 = vlaneseq
        %v2492 = vshrl.u32 %v2491, 7
        %v2493 = vsub.s32 %v2490, %v2492
        %v2494 = vrot.slane %v2480, %v2493
        %v2495 = vcombine.low %v2430, %v2446
        %v2496 = vcombine.high %v2430, %v2446
        %v2498 = vunpack.c.l.s4 1934713408
        %v2499 = vunpack.c.0.s8 %v2498
        %v2500 = vlaneseq
        %v2501 = vshrl.u32 %v2500, 7
        %v2502 = vsub.s32 %v2499, %v2501
        %v2503 = vrot.slane %v2495, %v2502
        %v2505 = vunpack.c.l.s4 1934713408
        %v2506 = vunpack.c.0.s8 %v2505
        %v2507 = vlaneseq
        %v2508 = vshrl.u32 %v2507, 7
        %v2509 = vsub.s32 %v2506, %v2508
        %v2510 = vrot.slane %v2496, %v2509
        %v2511 = vcombine.low %v2455, %v2487
        %v2512 = vcombine.high %v2455, %v2487
        %v2513 = vcombine.low %v2462, %v2494
        %v2514 = vcombine.high %v2462, %v2494
        %v2515 = vcombine.low %v2471, %v2503
        %v2516 = vcombine.high %v2471, %v2503
        %v2517 = vcombine.low %v2478, %v2510
        %v2518 = vcombine.high %v2478, %v2510
        %v2519 = vcombine.low %v1280, %v1288
        %v2520 = vcombine.high %v1280, %v1288
        %v2522 = vunpack.c.l.s4 1983009808
        %v2523 = vunpack.c.0.s8 %v2522
        %v2524 = vlaneseq
        %v2525 = vshrl.u32 %v2524, 7
        %v2526 = vsub.s32 %v2523, %v2525
        %v2527 = vrot.slane %v2519, %v2526
        %v2529 = vunpack.c.l.s4 1983009808
        %v2530 = vunpack.c.0.s8 %v2529
        %v2531 = vlaneseq
        %v2532 = vshrl.u32 %v2531, 7
        %v2533 = vsub.s32 %v2530, %v2532
        %v2534 = vrot.slane %v2520, %v2533
        %v2535 = vcombine.low %v1284, %v1292
        %v2536 = vcombine.high %v1284, %v1292
        %v2538 = vunpack.c.l.s4 1983009808
        %v2539 = vunpack.c.0.s8 %v2538
        %v2540 = vlaneseq
        %v2541 = vshrl.u32 %v2540, 7
        %v2542 = vsub.s32 %v2539, %v2541
        %v2543 = vrot.slane %v2535, %v2542
        %v2545 = vunpack.c.l.s4 1983009808
        %v2546 = vunpack.c.0.s8 %v2545
        %v2547 = vlaneseq
        %v2548 = vshrl.u32 %v2547, 7
        %v2549 = vsub.s32 %v2546, %v2548
        %v2550 = vrot.slane %v2536, %v2549
        %v2551 = vcombine.low %v2527, %v2543
        %v2552 = vcombine.high %v2527, %v2543
        %v2554 = vunpack.c.l.s4 1934713408
        %v2555 = vunpack.c.0.s8 %v2554
        %v2556 = vlaneseq
        %v2557 = vshrl.u32 %v2556, 7
        %v2558 = vsub.s32 %v2555, %v2557
        %v2559 = vrot.slane %v2551, %v2558
        %v2561 = vunpack.c.l.s4 1934713408
        %v2562 = vunpack.c.0.s8 %v2561
        %v2563 = vlaneseq
        %v2564 = vshrl.u32 %v2563, 7
        %v2565 = vsub.s32 %v2562, %v2564
        %v2566 = vrot.slane %v2552, %v2565
        %v2567 = vcombine.low %v2534, %v2550
        %v2568 = vcombine.high %v2534, %v2550
        %v2570 = vunpack.c.l.s4 1934713408
        %v2571 = vunpack.c.0.s8 %v2570
        %v2572 = vlaneseq
        %v2573 = vshrl.u32 %v2572, 7
        %v2574 = vsub.s32 %v2571, %v2573
        %v2575 = vrot.slane %v2567, %v2574
        %v2577 = vunpack.c.l.s4 1934713408
        %v2578 = vunpack.c.0.s8 %v2577
        %v2579 = vlaneseq
        %v2580 = vshrl.u32 %v2579, 7
        %v2581 = vsub.s32 %v2578, %v2580
        %v2582 = vrot.slane %v2568, %v2581
        %v2583 = vcombine.high %v2559, 0.0
        %v2584 = vcombine.high %v2566, 0.0
        %v2585 = vcombine.high %v2575, 0.0
        %v2586 = vcombine.high %v2582, 0.0
        %v2587 = vcombine.low %v225, %v1042
        %v2588 = vcombine.high %v225, %v1042
        %v2590 = vunpack.c.l.s4 1983009808
        %v2591 = vunpack.c.0.s8 %v2590
        %v2592 = vlaneseq
        %v2593 = vshrl.u32 %v2592, 7
        %v2594 = vsub.s32 %v2591, %v2593
        %v2595 = vrot.slane %v2587, %v2594
        %v2597 = vunpack.c.l.s4 1983009808
        %v2598 = vunpack.c.0.s8 %v2597
        %v2599 = vlaneseq
        %v2600 = vshrl.u32 %v2599, 7
        %v2601 = vsub.s32 %v2598, %v2600
        %v2602 = vrot.slane %v2588, %v2601
        %v2603 = vcombine.low %v231, %v1046
        %v2604 = vcombine.high %v231, %v1046
        %v2606 = vunpack.c.l.s4 1983009808
        %v2607 = vunpack.c.0.s8 %v2606
        %v2608 = vlaneseq
        %v2609 = vshrl.u32 %v2608, 7
        %v2610 = vsub.s32 %v2607, %v2609
        %v2611 = vrot.slane %v2603, %v2610
        %v2613 = vunpack.c.l.s4 1983009808
        %v2614 = vunpack.c.0.s8 %v2613
        %v2615 = vlaneseq
        %v2616 = vshrl.u32 %v2615, 7
        %v2617 = vsub.s32 %v2614, %v2616
        %v2618 = vrot.slane %v2604, %v2617
        %v2619 = vcombine.low %v1050, %v1058
        %v2620 = vcombine.high %v1050, %v1058
        %v2622 = vunpack.c.l.s4 1983009808
        %v2623 = vunpack.c.0.s8 %v2622
        %v2624 = vlaneseq
        %v2625 = vshrl.u32 %v2624, 7
        %v2626 = vsub.s32 %v2623, %v2625
        %v2627 = vrot.slane %v2619, %v2626
        %v2629 = vunpack.c.l.s4 1983009808
        %v2630 = vunpack.c.0.s8 %v2629
        %v2631 = vlaneseq
        %v2632 = vshrl.u32 %v2631, 7
        %v2633 = vsub.s32 %v2630, %v2632
        %v2634 = vrot.slane %v2620, %v2633
        %v2635 = vcombine.low %v1054, %v1062
        %v2636 = vcombine.high %v1054, %v1062
        %v2638 = vunpack.c.l.s4 1983009808
        %v2639 = vunpack.c.0.s8 %v2638
        %v2640 = vlaneseq
        %v2641 = vshrl.u32 %v2640, 7
        %v2642 = vsub.s32 %v2639, %v2641
        %v2643 = vrot.slane %v2635, %v2642
        %v2645 = vunpack.c.l.s4 1983009808
        %v2646 = vunpack.c.0.s8 %v2645
        %v2647 = vlaneseq
        %v2648 = vshrl.u32 %v2647, 7
        %v2649 = vsub.s32 %v2646, %v2648
        %v2650 = vrot.slane %v2636, %v2649
        %v2651 = vcombine.low %v2595, %v2611
        %v2652 = vcombine.high %v2595, %v2611
        %v2654 = vunpack.c.l.s4 1934713408
        %v2655 = vunpack.c.0.s8 %v2654
        %v2656 = vlaneseq
        %v2657 = vshrl.u32 %v2656, 7
        %v2658 = vsub.s32 %v2655, %v2657
        %v2659 = vrot.slane %v2651, %v2658
        %v2661 = vunpack.c.l.s4 1934713408
        %v2662 = vunpack.c.0.s8 %v2661
        %v2663 = vlaneseq
        %v2664 = vshrl.u32 %v2663, 7
        %v2665 = vsub.s32 %v2662, %v2664
        %v2666 = vrot.slane %v2652, %v2665
        %v2667 = vcombine.low %v2602, %v2618
        %v2668 = vcombine.high %v2602, %v2618
        %v2670 = vunpack.c.l.s4 1934713408
        %v2671 = vunpack.c.0.s8 %v2670
        %v2672 = vlaneseq
        %v2673 = vshrl.u32 %v2672, 7
        %v2674 = vsub.s32 %v2671, %v2673
        %v2675 = vrot.slane %v2667, %v2674
        %v2677 = vunpack.c.l.s4 1934713408
        %v2678 = vunpack.c.0.s8 %v2677
        %v2679 = vlaneseq
        %v2680 = vshrl.u32 %v2679, 7
        %v2681 = vsub.s32 %v2678, %v2680
        %v2682 = vrot.slane %v2668, %v2681
        %v2683 = vcombine.low %v2627, %v2643
        %v2684 = vcombine.high %v2627, %v2643
        %v2686 = vunpack.c.l.s4 1934713408
        %v2687 = vunpack.c.0.s8 %v2686
        %v2688 = vlaneseq
        %v2689 = vshrl.u32 %v2688, 7
        %v2690 = vsub.s32 %v2687, %v2689
        %v2691 = vrot.slane %v2683, %v2690
        %v2693 = vunpack.c.l.s4 1934713408
        %v2694 = vunpack.c.0.s8 %v2693
        %v2695 = vlaneseq
        %v2696 = vshrl.u32 %v2695, 7
        %v2697 = vsub.s32 %v2694, %v2696
        %v2698 = vrot.slane %v2684, %v2697
        %v2699 = vcombine.low %v2634, %v2650
        %v2700 = vcombine.high %v2634, %v2650
        %v2702 = vunpack.c.l.s4 1934713408
        %v2703 = vunpack.c.0.s8 %v2702
        %v2704 = vlaneseq
        %v2705 = vshrl.u32 %v2704, 7
        %v2706 = vsub.s32 %v2703, %v2705
        %v2707 = vrot.slane %v2699, %v2706
        %v2709 = vunpack.c.l.s4 1934713408
        %v2710 = vunpack.c.0.s8 %v2709
        %v2711 = vlaneseq
        %v2712 = vshrl.u32 %v2711, 7
        %v2713 = vsub.s32 %v2710, %v2712
        %v2714 = vrot.slane %v2700, %v2713
        %v2715 = vcombine.low %v2659, %v2691
        %v2716 = vcombine.high %v2659, %v2691
        %v2717 = vcombine.low %v2666, %v2698
        %v2718 = vcombine.high %v2666, %v2698
        %v2719 = vcombine.low %v2675, %v2707
        %v2720 = vcombine.high %v2675, %v2707
        %v2721 = vcombine.low %v2682, %v2714
        %v2722 = vcombine.high %v2682, %v2714
        %v2723 = vcombine.low %v1066, %v1074
        %v2724 = vcombine.high %v1066, %v1074
        %v2726 = vunpack.c.l.s4 1983009808
        %v2727 = vunpack.c.0.s8 %v2726
        %v2728 = vlaneseq
        %v2729 = vshrl.u32 %v2728, 7
        %v2730 = vsub.s32 %v2727, %v2729
        %v2731 = vrot.slane %v2723, %v2730
        %v2733 = vunpack.c.l.s4 1983009808
        %v2734 = vunpack.c.0.s8 %v2733
        %v2735 = vlaneseq
        %v2736 = vshrl.u32 %v2735, 7
        %v2737 = vsub.s32 %v2734, %v2736
        %v2738 = vrot.slane %v2724, %v2737
        %v2739 = vcombine.low %v1070, %v1078
        %v2740 = vcombine.high %v1070, %v1078
        %v2742 = vunpack.c.l.s4 1983009808
        %v2743 = vunpack.c.0.s8 %v2742
        %v2744 = vlaneseq
        %v2745 = vshrl.u32 %v2744, 7
        %v2746 = vsub.s32 %v2743, %v2745
        %v2747 = vrot.slane %v2739, %v2746
        %v2749 = vunpack.c.l.s4 1983009808
        %v2750 = vunpack.c.0.s8 %v2749
        %v2751 = vlaneseq
        %v2752 = vshrl.u32 %v2751, 7
        %v2753 = vsub.s32 %v2750, %v2752
        %v2754 = vrot.slane %v2740, %v2753
        %v2755 = vcombine.low %v1082, %v1090
        %v2756 = vcombine.high %v1082, %v1090
        %v2758 = vunpack.c.l.s4 1983009808
        %v2759 = vunpack.c.0.s8 %v2758
        %v2760 = vlaneseq
        %v2761 = vshrl.u32 %v2760, 7
        %v2762 = vsub.s32 %v2759, %v2761
        %v2763 = vrot.slane %v2755, %v2762
        %v2765 = vunpack.c.l.s4 1983009808
        %v2766 = vunpack.c.0.s8 %v2765
        %v2767 = vlaneseq
        %v2768 = vshrl.u32 %v2767, 7
        %v2769 = vsub.s32 %v2766, %v2768
        %v2770 = vrot.slane %v2756, %v2769
        %v2771 = vcombine.low %v1086, %v1094
        %v2772 = vcombine.high %v1086, %v1094
        %v2774 = vunpack.c.l.s4 1983009808
        %v2775 = vunpack.c.0.s8 %v2774
        %v2776 = vlaneseq
        %v2777 = vshrl.u32 %v2776, 7
        %v2778 = vsub.s32 %v2775, %v2777
        %v2779 = vrot.slane %v2771, %v2778
        %v2781 = vunpack.c.l.s4 1983009808
        %v2782 = vunpack.c.0.s8 %v2781
        %v2783 = vlaneseq
        %v2784 = vshrl.u32 %v2783, 7
        %v2785 = vsub.s32 %v2782, %v2784
        %v2786 = vrot.slane %v2772, %v2785
        %v2787 = vcombine.low %v2731, %v2747
        %v2788 = vcombine.high %v2731, %v2747
        %v2790 = vunpack.c.l.s4 1934713408
        %v2791 = vunpack.c.0.s8 %v2790
        %v2792 = vlaneseq
        %v2793 = vshrl.u32 %v2792, 7
        %v2794 = vsub.s32 %v2791, %v2793
        %v2795 = vrot.slane %v2787, %v2794
        %v2797 = vunpack.c.l.s4 1934713408
        %v2798 = vunpack.c.0.s8 %v2797
        %v2799 = vlaneseq
        %v2800 = vshrl.u32 %v2799, 7
        %v2801 = vsub.s32 %v2798, %v2800
        %v2802 = vrot.slane %v2788, %v2801
        %v2803 = vcombine.low %v2738, %v2754
        %v2804 = vcombine.high %v2738, %v2754
        %v2806 = vunpack.c.l.s4 1934713408
        %v2807 = vunpack.c.0.s8 %v2806
        %v2808 = vlaneseq
        %v2809 = vshrl.u32 %v2808, 7
        %v2810 = vsub.s32 %v2807, %v2809
        %v2811 = vrot.slane %v2803, %v2810
        %v2813 = vunpack.c.l.s4 1934713408
        %v2814 = vunpack.c.0.s8 %v2813
        %v2815 = vlaneseq
        %v2816 = vshrl.u32 %v2815, 7
        %v2817 = vsub.s32 %v2814, %v2816
        %v2818 = vrot.slane %v2804, %v2817
        %v2819 = vcombine.low %v2763, %v2779
        %v2820 = vcombine.high %v2763, %v2779
        %v2822 = vunpack.c.l.s4 1934713408
        %v2823 = vunpack.c.0.s8 %v2822
        %v2824 = vlaneseq
        %v2825 = vshrl.u32 %v2824, 7
        %v2826 = vsub.s32 %v2823, %v2825
        %v2827 = vrot.slane %v2819, %v2826
        %v2829 = vunpack.c.l.s4 1934713408
        %v2830 = vunpack.c.0.s8 %v2829
        %v2831 = vlaneseq
        %v2832 = vshrl.u32 %v2831, 7
        %v2833 = vsub.s32 %v2830, %v2832
        %v2834 = vrot.slane %v2820, %v2833
        %v2835 = vcombine.low %v2770, %v2786
        %v2836 = vcombine.high %v2770, %v2786
        %v2838 = vunpack.c.l.s4 1934713408
        %v2839 = vunpack.c.0.s8 %v2838
        %v2840 = vlaneseq
        %v2841 = vshrl.u32 %v2840, 7
        %v2842 = vsub.s32 %v2839, %v2841
        %v2843 = vrot.slane %v2835, %v2842
        %v2845 = vunpack.c.l.s4 1934713408
        %v2846 = vunpack.c.0.s8 %v2845
        %v2847 = vlaneseq
        %v2848 = vshrl.u32 %v2847, 7
        %v2849 = vsub.s32 %v2846, %v2848
        %v2850 = vrot.slane %v2836, %v2849
        %v2851 = vcombine.low %v2795, %v2827
        %v2852 = vcombine.high %v2795, %v2827
        %v2853 = vcombine.low %v2802, %v2834
        %v2854 = vcombine.high %v2802, %v2834
        %v2855 = vcombine.low %v2811, %v2843
        %v2856 = vcombine.high %v2811, %v2843
        %v2857 = vcombine.low %v2818, %v2850
        %v2858 = vcombine.high %v2818, %v2850
        %v2859 = vcombine.low %v1098, %v1106
        %v2860 = vcombine.high %v1098, %v1106
        %v2862 = vunpack.c.l.s4 1983009808
        %v2863 = vunpack.c.0.s8 %v2862
        %v2864 = vlaneseq
        %v2865 = vshrl.u32 %v2864, 7
        %v2866 = vsub.s32 %v2863, %v2865
        %v2867 = vrot.slane %v2859, %v2866
        %v2869 = vunpack.c.l.s4 1983009808
        %v2870 = vunpack.c.0.s8 %v2869
        %v2871 = vlaneseq
        %v2872 = vshrl.u32 %v2871, 7
        %v2873 = vsub.s32 %v2870, %v2872
        %v2874 = vrot.slane %v2860, %v2873
        %v2875 = vcombine.low %v1102, %v1110
        %v2876 = vcombine.high %v1102, %v1110
        %v2878 = vunpack.c.l.s4 1983009808
        %v2879 = vunpack.c.0.s8 %v2878
        %v2880 = vlaneseq
        %v2881 = vshrl.u32 %v2880, 7
        %v2882 = vsub.s32 %v2879, %v2881
        %v2883 = vrot.slane %v2875, %v2882
        %v2885 = vunpack.c.l.s4 1983009808
        %v2886 = vunpack.c.0.s8 %v2885
        %v2887 = vlaneseq
        %v2888 = vshrl.u32 %v2887, 7
        %v2889 = vsub.s32 %v2886, %v2888
        %v2890 = vrot.slane %v2876, %v2889
        %v2891 = vcombine.low %v1114, %v1122
        %v2892 = vcombine.high %v1114, %v1122
        %v2894 = vunpack.c.l.s4 1983009808
        %v2895 = vunpack.c.0.s8 %v2894
        %v2896 = vlaneseq
        %v2897 = vshrl.u32 %v2896, 7
        %v2898 = vsub.s32 %v2895, %v2897
        %v2899 = vrot.slane %v2891, %v2898
        %v2901 = vunpack.c.l.s4 1983009808
        %v2902 = vunpack.c.0.s8 %v2901
        %v2903 = vlaneseq
        %v2904 = vshrl.u32 %v2903, 7
        %v2905 = vsub.s32 %v2902, %v2904
        %v2906 = vrot.slane %v2892, %v2905
        %v2907 = vcombine.low %v1118, %v1126
        %v2908 = vcombine.high %v1118, %v1126
        %v2910 = vunpack.c.l.s4 1983009808
        %v2911 = vunpack.c.0.s8 %v2910
        %v2912 = vlaneseq
        %v2913 = vshrl.u32 %v2912, 7
        %v2914 = vsub.s32 %v2911, %v2913
        %v2915 = vrot.slane %v2907, %v2914
        %v2917 = vunpack.c.l.s4 1983009808
        %v2918 = vunpack.c.0.s8 %v2917
        %v2919 = vlaneseq
        %v2920 = vshrl.u32 %v2919, 7
        %v2921 = vsub.s32 %v2918, %v2920
        %v2922 = vrot.slane %v2908, %v2921
        %v2923 = vcombine.low %v2867, %v2883
        %v2924 = vcombine.high %v2867, %v2883
        %v2926 = vunpack.c.l.s4 1934713408
        %v2927 = vunpack.c.0.s8 %v2926
        %v2928 = vlaneseq
        %v2929 = vshrl.u32 %v2928, 7
        %v2930 = vsub.s32 %v2927, %v2929
        %v2931 = vrot.slane %v2923, %v2930
        %v2933 = vunpack.c.l.s4 1934713408
        %v2934 = vunpack.c.0.s8 %v2933
        %v2935 = vlaneseq
        %v2936 = vshrl.u32 %v2935, 7
        %v2937 = vsub.s32 %v2934, %v2936
        %v2938 = vrot.slane %v2924, %v2937
        %v2939 = vcombine.low %v2874, %v2890
        %v2940 = vcombine.high %v2874, %v2890
        %v2942 = vunpack.c.l.s4 1934713408
        %v2943 = vunpack.c.0.s8 %v2942
        %v2944 = vlaneseq
        %v2945 = vshrl.u32 %v2944, 7
        %v2946 = vsub.s32 %v2943, %v2945
        %v2947 = vrot.slane %v2939, %v2946
        %v2949 = vunpack.c.l.s4 1934713408
        %v2950 = vunpack.c.0.s8 %v2949
        %v2951 = vlaneseq
        %v2952 = vshrl.u32 %v2951, 7
        %v2953 = vsub.s32 %v2950, %v2952
        %v2954 = vrot.slane %v2940, %v2953
        %v2955 = vcombine.low %v2899, %v2915
        %v2956 = vcombine.high %v2899, %v2915
        %v2958 = vunpack.c.l.s4 1934713408
        %v2959 = vunpack.c.0.s8 %v2958
        %v2960 = vlaneseq
        %v2961 = vshrl.u32 %v2960, 7
        %v2962 = vsub.s32 %v2959, %v2961
        %v2963 = vrot.slane %v2955, %v2962
        %v2965 = vunpack.c.l.s4 1934713408
        %v2966 = vunpack.c.0.s8 %v2965
        %v2967 = vlaneseq
        %v2968 = vshrl.u32 %v2967, 7
        %v2969 = vsub.s32 %v2966, %v2968
        %v2970 = vrot.slane %v2956, %v2969
        %v2971 = vcombine.low %v2906, %v2922
        %v2972 = vcombine.high %v2906, %v2922
        %v2974 = vunpack.c.l.s4 1934713408
        %v2975 = vunpack.c.0.s8 %v2974
        %v2976 = vlaneseq
        %v2977 = vshrl.u32 %v2976, 7
        %v2978 = vsub.s32 %v2975, %v2977
        %v2979 = vrot.slane %v2971, %v2978
        %v2981 = vunpack.c.l.s4 1934713408
        %v2982 = vunpack.c.0.s8 %v2981
        %v2983 = vlaneseq
        %v2984 = vshrl.u32 %v2983, 7
        %v2985 = vsub.s32 %v2982, %v2984
        %v2986 = vrot.slane %v2972, %v2985
        %v2987 = vcombine.low %v2931, %v2963
        %v2988 = vcombine.high %v2931, %v2963
        %v2989 = vcombine.low %v2938, %v2970
        %v2990 = vcombine.high %v2938, %v2970
        %v2991 = vcombine.low %v2947, %v2979
        %v2992 = vcombine.high %v2947, %v2979
        %v2993 = vcombine.low %v2954, %v2986
        %v2994 = vcombine.high %v2954, %v2986
        %v2995 = vcombine.low %v1130, %v1138
        %v2996 = vcombine.high %v1130, %v1138
        %v2998 = vunpack.c.l.s4 1983009808
        %v2999 = vunpack.c.0.s8 %v2998
        %v3000 = vlaneseq
        %v3001 = vshrl.u32 %v3000, 7
        %v3002 = vsub.s32 %v2999, %v3001
        %v3003 = vrot.slane %v2995, %v3002
        %v3005 = vunpack.c.l.s4 1983009808
        %v3006 = vunpack.c.0.s8 %v3005
        %v3007 = vlaneseq
        %v3008 = vshrl.u32 %v3007, 7
        %v3009 = vsub.s32 %v3006, %v3008
        %v3010 = vrot.slane %v2996, %v3009
        %v3011 = vcombine.low %v1134, %v1142
        %v3012 = vcombine.high %v1134, %v1142
        %v3014 = vunpack.c.l.s4 1983009808
        %v3015 = vunpack.c.0.s8 %v3014
        %v3016 = vlaneseq
        %v3017 = vshrl.u32 %v3016, 7
        %v3018 = vsub.s32 %v3015, %v3017
        %v3019 = vrot.slane %v3011, %v3018
        %v3021 = vunpack.c.l.s4 1983009808
        %v3022 = vunpack.c.0.s8 %v3021
        %v3023 = vlaneseq
        %v3024 = vshrl.u32 %v3023, 7
        %v3025 = vsub.s32 %v3022, %v3024
        %v3026 = vrot.slane %v3012, %v3025
        %v3027 = vcombine.low %v1146, %v415
        %v3028 = vcombine.high %v1146, %v415
        %v3030 = vunpack.c.l.s4 1983009808
        %v3031 = vunpack.c.0.s8 %v3030
        %v3032 = vlaneseq
        %v3033 = vshrl.u32 %v3032, 7
        %v3034 = vsub.s32 %v3031, %v3033
        %v3035 = vrot.slane %v3027, %v3034
        %v3037 = vunpack.c.l.s4 1983009808
        %v3038 = vunpack.c.0.s8 %v3037
        %v3039 = vlaneseq
        %v3040 = vshrl.u32 %v3039, 7
        %v3041 = vsub.s32 %v3038, %v3040
        %v3042 = vrot.slane %v3028, %v3041
        %v3043 = vcombine.low %v1150, %v421
        %v3044 = vcombine.high %v1150, %v421
        %v3046 = vunpack.c.l.s4 1983009808
        %v3047 = vunpack.c.0.s8 %v3046
        %v3048 = vlaneseq
        %v3049 = vshrl.u32 %v3048, 7
        %v3050 = vsub.s32 %v3047, %v3049
        %v3051 = vrot.slane %v3043, %v3050
        %v3053 = vunpack.c.l.s4 1983009808
        %v3054 = vunpack.c.0.s8 %v3053
        %v3055 = vlaneseq
        %v3056 = vshrl.u32 %v3055, 7
        %v3057 = vsub.s32 %v3054, %v3056
        %v3058 = vrot.slane %v3044, %v3057
        %v3059 = vcombine.low %v3003, %v3019
        %v3060 = vcombine.high %v3003, %v3019
        %v3062 = vunpack.c.l.s4 1934713408
        %v3063 = vunpack.c.0.s8 %v3062
        %v3064 = vlaneseq
        %v3065 = vshrl.u32 %v3064, 7
        %v3066 = vsub.s32 %v3063, %v3065
        %v3067 = vrot.slane %v3059, %v3066
        %v3069 = vunpack.c.l.s4 1934713408
        %v3070 = vunpack.c.0.s8 %v3069
        %v3071 = vlaneseq
        %v3072 = vshrl.u32 %v3071, 7
        %v3073 = vsub.s32 %v3070, %v3072
        %v3074 = vrot.slane %v3060, %v3073
        %v3075 = vcombine.low %v3010, %v3026
        %v3076 = vcombine.high %v3010, %v3026
        %v3078 = vunpack.c.l.s4 1934713408
        %v3079 = vunpack.c.0.s8 %v3078
        %v3080 = vlaneseq
        %v3081 = vshrl.u32 %v3080, 7
        %v3082 = vsub.s32 %v3079, %v3081
        %v3083 = vrot.slane %v3075, %v3082
        %v3085 = vunpack.c.l.s4 1934713408
        %v3086 = vunpack.c.0.s8 %v3085
        %v3087 = vlaneseq
        %v3088 = vshrl.u32 %v3087, 7
        %v3089 = vsub.s32 %v3086, %v3088
        %v3090 = vrot.slane %v3076, %v3089
        %v3091 = vcombine.low %v3035, %v3051
        %v3092 = vcombine.high %v3035, %v3051
        %v3094 = vunpack.c.l.s4 1934713408
        %v3095 = vunpack.c.0.s8 %v3094
        %v3096 = vlaneseq
        %v3097 = vshrl.u32 %v3096, 7
        %v3098 = vsub.s32 %v3095, %v3097
        %v3099 = vrot.slane %v3091, %v3098
        %v3101 = vunpack.c.l.s4 1934713408
        %v3102 = vunpack.c.0.s8 %v3101
        %v3103 = vlaneseq
        %v3104 = vshrl.u32 %v3103, 7
        %v3105 = vsub.s32 %v3102, %v3104
        %v3106 = vrot.slane %v3092, %v3105
        %v3107 = vcombine.low %v3042, %v3058
        %v3108 = vcombine.high %v3042, %v3058
        %v3110 = vunpack.c.l.s4 1934713408
        %v3111 = vunpack.c.0.s8 %v3110
        %v3112 = vlaneseq
        %v3113 = vshrl.u32 %v3112, 7
        %v3114 = vsub.s32 %v3111, %v3113
        %v3115 = vrot.slane %v3107, %v3114
        %v3117 = vunpack.c.l.s4 1934713408
        %v3118 = vunpack.c.0.s8 %v3117
        %v3119 = vlaneseq
        %v3120 = vshrl.u32 %v3119, 7
        %v3121 = vsub.s32 %v3118, %v3120
        %v3122 = vrot.slane %v3108, %v3121
        %v3123 = vcombine.low %v3067, %v3099
        %v3124 = vcombine.high %v3067, %v3099
        %v3125 = vcombine.low %v3074, %v3106
        %v3126 = vcombine.high %v3074, %v3106
        %v3127 = vcombine.low %v3083, %v3115
        %v3128 = vcombine.high %v3083, %v3115
        %v3129 = vcombine.low %v3090, %v3122
        %v3130 = vcombine.high %v3090, %v3122
        %v3131 = vcombine.low %v1154, %v1162
        %v3132 = vcombine.high %v1154, %v1162
        %v3134 = vunpack.c.l.s4 1983009808
        %v3135 = vunpack.c.0.s8 %v3134
        %v3136 = vlaneseq
        %v3137 = vshrl.u32 %v3136, 7
        %v3138 = vsub.s32 %v3135, %v3137
        %v3139 = vrot.slane %v3131, %v3138
        %v3141 = vunpack.c.l.s4 1983009808
        %v3142 = vunpack.c.0.s8 %v3141
        %v3143 = vlaneseq
        %v3144 = vshrl.u32 %v3143, 7
        %v3145 = vsub.s32 %v3142, %v3144
        %v3146 = vrot.slane %v3132, %v3145
        %v3147 = vcombine.low %v1158, %v1166
        %v3148 = vcombine.high %v1158, %v1166
        %v3150 = vunpack.c.l.s4 1983009808
        %v3151 = vunpack.c.0.s8 %v3150
        %v3152 = vlaneseq
        %v3153 = vshrl.u32 %v3152, 7
        %v3154 = vsub.s32 %v3151, %v3153
        %v3155 = vrot.slane %v3147, %v3154
        %v3157 = vunpack.c.l.s4 1983009808
        %v3158 = vunpack.c.0.s8 %v3157
        %v3159 = vlaneseq
        %v3160 = vshrl.u32 %v3159, 7
        %v3161 = vsub.s32 %v3158, %v3160
        %v3162 = vrot.slane %v3148, %v3161
        %v3163 = vcombine.low %v1170, %v1178
        %v3164 = vcombine.high %v1170, %v1178
        %v3166 = vunpack.c.l.s4 1983009808
        %v3167 = vunpack.c.0.s8 %v3166
        %v3168 = vlaneseq
        %v3169 = vshrl.u32 %v3168, 7
        %v3170 = vsub.s32 %v3167, %v3169
        %v3171 = vrot.slane %v3163, %v3170
        %v3173 = vunpack.c.l.s4 1983009808
        %v3174 = vunpack.c.0.s8 %v3173
        %v3175 = vlaneseq
        %v3176 = vshrl.u32 %v3175, 7
        %v3177 = vsub.s32 %v3174, %v3176
        %v3178 = vrot.slane %v3164, %v3177
        %v3179 = vcombine.low %v1174, %v1182
        %v3180 = vcombine.high %v1174, %v1182
        %v3182 = vunpack.c.l.s4 1983009808
        %v3183 = vunpack.c.0.s8 %v3182
        %v3184 = vlaneseq
        %v3185 = vshrl.u32 %v3184, 7
        %v3186 = vsub.s32 %v3183, %v3185
        %v3187 = vrot.slane %v3179, %v3186
        %v3189 = vunpack.c.l.s4 1983009808
        %v3190 = vunpack.c.0.s8 %v3189
        %v3191 = vlaneseq
        %v3192 = vshrl.u32 %v3191, 7
        %v3193 = vsub.s32 %v3190, %v3192
        %v3194 = vrot.slane %v3180, %v3193
        %v3195 = vcombine.low %v3139, %v3155
        %v3196 = vcombine.high %v3139, %v3155
        %v3198 = vunpack.c.l.s4 1934713408
        %v3199 = vunpack.c.0.s8 %v3198
        %v3200 = vlaneseq
        %v3201 = vshrl.u32 %v3200, 7
        %v3202 = vsub.s32 %v3199, %v3201
        %v3203 = vrot.slane %v3195, %v3202
        %v3205 = vunpack.c.l.s4 1934713408
        %v3206 = vunpack.c.0.s8 %v3205
        %v3207 = vlaneseq
        %v3208 = vshrl.u32 %v3207, 7
        %v3209 = vsub.s32 %v3206, %v3208
        %v3210 = vrot.slane %v3196, %v3209
        %v3211 = vcombine.low %v3146, %v3162
        %v3212 = vcombine.high %v3146, %v3162
        %v3214 = vunpack.c.l.s4 1934713408
        %v3215 = vunpack.c.0.s8 %v3214
        %v3216 = vlaneseq
        %v3217 = vshrl.u32 %v3216, 7
        %v3218 = vsub.s32 %v3215, %v3217
        %v3219 = vrot.slane %v3211, %v3218
        %v3221 = vunpack.c.l.s4 1934713408
        %v3222 = vunpack.c.0.s8 %v3221
        %v3223 = vlaneseq
        %v3224 = vshrl.u32 %v3223, 7
        %v3225 = vsub.s32 %v3222, %v3224
        %v3226 = vrot.slane %v3212, %v3225
        %v3227 = vcombine.low %v3171, %v3187
        %v3228 = vcombine.high %v3171, %v3187
        %v3230 = vunpack.c.l.s4 1934713408
        %v3231 = vunpack.c.0.s8 %v3230
        %v3232 = vlaneseq
        %v3233 = vshrl.u32 %v3232, 7
        %v3234 = vsub.s32 %v3231, %v3233
        %v3235 = vrot.slane %v3227, %v3234
        %v3237 = vunpack.c.l.s4 1934713408
        %v3238 = vunpack.c.0.s8 %v3237
        %v3239 = vlaneseq
        %v3240 = vshrl.u32 %v3239, 7
        %v3241 = vsub.s32 %v3238, %v3240
        %v3242 = vrot.slane %v3228, %v3241
        %v3243 = vcombine.low %v3178, %v3194
        %v3244 = vcombine.high %v3178, %v3194
        %v3246 = vunpack.c.l.s4 1934713408
        %v3247 = vunpack.c.0.s8 %v3246
        %v3248 = vlaneseq
        %v3249 = vshrl.u32 %v3248, 7
        %v3250 = vsub.s32 %v3247, %v3249
        %v3251 = vrot.slane %v3243, %v3250
        %v3253 = vunpack.c.l.s4 1934713408
        %v3254 = vunpack.c.0.s8 %v3253
        %v3255 = vlaneseq
        %v3256 = vshrl.u32 %v3255, 7
        %v3257 = vsub.s32 %v3254, %v3256
        %v3258 = vrot.slane %v3244, %v3257
        %v3259 = vcombine.low %v3203, %v3235
        %v3260 = vcombine.high %v3203, %v3235
        %v3261 = vcombine.low %v3210, %v3242
        %v3262 = vcombine.high %v3210, %v3242
        %v3263 = vcombine.low %v3219, %v3251
        %v3264 = vcombine.high %v3219, %v3251
        %v3265 = vcombine.low %v3226, %v3258
        %v3266 = vcombine.high %v3226, %v3258
        %v3267 = vcombine.low %v1186, %v1194
        %v3268 = vcombine.high %v1186, %v1194
        %v3270 = vunpack.c.l.s4 1983009808
        %v3271 = vunpack.c.0.s8 %v3270
        %v3272 = vlaneseq
        %v3273 = vshrl.u32 %v3272, 7
        %v3274 = vsub.s32 %v3271, %v3273
        %v3275 = vrot.slane %v3267, %v3274
        %v3277 = vunpack.c.l.s4 1983009808
        %v3278 = vunpack.c.0.s8 %v3277
        %v3279 = vlaneseq
        %v3280 = vshrl.u32 %v3279, 7
        %v3281 = vsub.s32 %v3278, %v3280
        %v3282 = vrot.slane %v3268, %v3281
        %v3283 = vcombine.low %v1190, %v1198
        %v3284 = vcombine.high %v1190, %v1198
        %v3286 = vunpack.c.l.s4 1983009808
        %v3287 = vunpack.c.0.s8 %v3286
        %v3288 = vlaneseq
        %v3289 = vshrl.u32 %v3288, 7
        %v3290 = vsub.s32 %v3287, %v3289
        %v3291 = vrot.slane %v3283, %v3290
        %v3293 = vunpack.c.l.s4 1983009808
        %v3294 = vunpack.c.0.s8 %v3293
        %v3295 = vlaneseq
        %v3296 = vshrl.u32 %v3295, 7
        %v3297 = vsub.s32 %v3294, %v3296
        %v3298 = vrot.slane %v3284, %v3297
        %v3299 = vcombine.low %v1202, %v1210
        %v3300 = vcombine.high %v1202, %v1210
        %v3302 = vunpack.c.l.s4 1983009808
        %v3303 = vunpack.c.0.s8 %v3302
        %v3304 = vlaneseq
        %v3305 = vshrl.u32 %v3304, 7
        %v3306 = vsub.s32 %v3303, %v3305
        %v3307 = vrot.slane %v3299, %v3306
        %v3309 = vunpack.c.l.s4 1983009808
        %v3310 = vunpack.c.0.s8 %v3309
        %v3311 = vlaneseq
        %v3312 = vshrl.u32 %v3311, 7
        %v3313 = vsub.s32 %v3310, %v3312
        %v3314 = vrot.slane %v3300, %v3313
        %v3315 = vcombine.low %v1206, %v1214
        %v3316 = vcombine.high %v1206, %v1214
        %v3318 = vunpack.c.l.s4 1983009808
        %v3319 = vunpack.c.0.s8 %v3318
        %v3320 = vlaneseq
        %v3321 = vshrl.u32 %v3320, 7
        %v3322 = vsub.s32 %v3319, %v3321
        %v3323 = vrot.slane %v3315, %v3322
        %v3325 = vunpack.c.l.s4 1983009808
        %v3326 = vunpack.c.0.s8 %v3325
        %v3327 = vlaneseq
        %v3328 = vshrl.u32 %v3327, 7
        %v3329 = vsub.s32 %v3326, %v3328
        %v3330 = vrot.slane %v3316, %v3329
        %v3331 = vcombine.low %v3275, %v3291
        %v3332 = vcombine.high %v3275, %v3291
        %v3334 = vunpack.c.l.s4 1934713408
        %v3335 = vunpack.c.0.s8 %v3334
        %v3336 = vlaneseq
        %v3337 = vshrl.u32 %v3336, 7
        %v3338 = vsub.s32 %v3335, %v3337
        %v3339 = vrot.slane %v3331, %v3338
        %v3341 = vunpack.c.l.s4 1934713408
        %v3342 = vunpack.c.0.s8 %v3341
        %v3343 = vlaneseq
        %v3344 = vshrl.u32 %v3343, 7
        %v3345 = vsub.s32 %v3342, %v3344
        %v3346 = vrot.slane %v3332, %v3345
        %v3347 = vcombine.low %v3282, %v3298
        %v3348 = vcombine.high %v3282, %v3298
        %v3350 = vunpack.c.l.s4 1934713408
        %v3351 = vunpack.c.0.s8 %v3350
        %v3352 = vlaneseq
        %v3353 = vshrl.u32 %v3352, 7
        %v3354 = vsub.s32 %v3351, %v3353
        %v3355 = vrot.slane %v3347, %v3354
        %v3357 = vunpack.c.l.s4 1934713408
        %v3358 = vunpack.c.0.s8 %v3357
        %v3359 = vlaneseq
        %v3360 = vshrl.u32 %v3359, 7
        %v3361 = vsub.s32 %v3358, %v3360
        %v3362 = vrot.slane %v3348, %v3361
        %v3363 = vcombine.low %v3307, %v3323
        %v3364 = vcombine.high %v3307, %v3323
        %v3366 = vunpack.c.l.s4 1934713408
        %v3367 = vunpack.c.0.s8 %v3366
        %v3368 = vlaneseq
        %v3369 = vshrl.u32 %v3368, 7
        %v3370 = vsub.s32 %v3367, %v3369
        %v3371 = vrot.slane %v3363, %v3370
        %v3373 = vunpack.c.l.s4 1934713408
        %v3374 = vunpack.c.0.s8 %v3373
        %v3375 = vlaneseq
        %v3376 = vshrl.u32 %v3375, 7
        %v3377 = vsub.s32 %v3374, %v3376
        %v3378 = vrot.slane %v3364, %v3377
        %v3379 = vcombine.low %v3314, %v3330
        %v3380 = vcombine.high %v3314, %v3330
        %v3382 = vunpack.c.l.s4 1934713408
        %v3383 = vunpack.c.0.s8 %v3382
        %v3384 = vlaneseq
        %v3385 = vshrl.u32 %v3384, 7
        %v3386 = vsub.s32 %v3383, %v3385
        %v3387 = vrot.slane %v3379, %v3386
        %v3389 = vunpack.c.l.s4 1934713408
        %v3390 = vunpack.c.0.s8 %v3389
        %v3391 = vlaneseq
        %v3392 = vshrl.u32 %v3391, 7
        %v3393 = vsub.s32 %v3390, %v3392
        %v3394 = vrot.slane %v3380, %v3393
        %v3395 = vcombine.low %v3339, %v3371
        %v3396 = vcombine.high %v3339, %v3371
        %v3397 = vcombine.low %v3346, %v3378
        %v3398 = vcombine.high %v3346, %v3378
        %v3399 = vcombine.low %v3355, %v3387
        %v3400 = vcombine.high %v3355, %v3387
        %v3401 = vcombine.low %v3362, %v3394
        %v3402 = vcombine.high %v3362, %v3394
        %v3403 = vcombine.low %v1218, %v1226
        %v3404 = vcombine.high %v1218, %v1226
        %v3406 = vunpack.c.l.s4 1983009808
        %v3407 = vunpack.c.0.s8 %v3406
        %v3408 = vlaneseq
        %v3409 = vshrl.u32 %v3408, 7
        %v3410 = vsub.s32 %v3407, %v3409
        %v3411 = vrot.slane %v3403, %v3410
        %v3413 = vunpack.c.l.s4 1983009808
        %v3414 = vunpack.c.0.s8 %v3413
        %v3415 = vlaneseq
        %v3416 = vshrl.u32 %v3415, 7
        %v3417 = vsub.s32 %v3414, %v3416
        %v3418 = vrot.slane %v3404, %v3417
        %v3419 = vcombine.low %v1222, %v1230
        %v3420 = vcombine.high %v1222, %v1230
        %v3422 = vunpack.c.l.s4 1983009808
        %v3423 = vunpack.c.0.s8 %v3422
        %v3424 = vlaneseq
        %v3425 = vshrl.u32 %v3424, 7
        %v3426 = vsub.s32 %v3423, %v3425
        %v3427 = vrot.slane %v3419, %v3426
        %v3429 = vunpack.c.l.s4 1983009808
        %v3430 = vunpack.c.0.s8 %v3429
        %v3431 = vlaneseq
        %v3432 = vshrl.u32 %v3431, 7
        %v3433 = vsub.s32 %v3430, %v3432
        %v3434 = vrot.slane %v3420, %v3433
        %v3435 = vcombine.low %v1234, %v1242
        %v3436 = vcombine.high %v1234, %v1242
        %v3438 = vunpack.c.l.s4 1983009808
        %v3439 = vunpack.c.0.s8 %v3438
        %v3440 = vlaneseq
        %v3441 = vshrl.u32 %v3440, 7
        %v3442 = vsub.s32 %v3439, %v3441
        %v3443 = vrot.slane %v3435, %v3442
        %v3445 = vunpack.c.l.s4 1983009808
        %v3446 = vunpack.c.0.s8 %v3445
        %v3447 = vlaneseq
        %v3448 = vshrl.u32 %v3447, 7
        %v3449 = vsub.s32 %v3446, %v3448
        %v3450 = vrot.slane %v3436, %v3449
        %v3451 = vcombine.low %v1238, %v1246
        %v3452 = vcombine.high %v1238, %v1246
        %v3454 = vunpack.c.l.s4 1983009808
        %v3455 = vunpack.c.0.s8 %v3454
        %v3456 = vlaneseq
        %v3457 = vshrl.u32 %v3456, 7
        %v3458 = vsub.s32 %v3455, %v3457
        %v3459 = vrot.slane %v3451, %v3458
        %v3461 = vunpack.c.l.s4 1983009808
        %v3462 = vunpack.c.0.s8 %v3461
        %v3463 = vlaneseq
        %v3464 = vshrl.u32 %v3463, 7
        %v3465 = vsub.s32 %v3462, %v3464
        %v3466 = vrot.slane %v3452, %v3465
        %v3467 = vcombine.low %v3411, %v3427
        %v3468 = vcombine.high %v3411, %v3427
        %v3470 = vunpack.c.l.s4 1934713408
        %v3471 = vunpack.c.0.s8 %v3470
        %v3472 = vlaneseq
        %v3473 = vshrl.u32 %v3472, 7
        %v3474 = vsub.s32 %v3471, %v3473
        %v3475 = vrot.slane %v3467, %v3474
        %v3477 = vunpack.c.l.s4 1934713408
        %v3478 = vunpack.c.0.s8 %v3477
        %v3479 = vlaneseq
        %v3480 = vshrl.u32 %v3479, 7
        %v3481 = vsub.s32 %v3478, %v3480
        %v3482 = vrot.slane %v3468, %v3481
        %v3483 = vcombine.low %v3418, %v3434
        %v3484 = vcombine.high %v3418, %v3434
        %v3486 = vunpack.c.l.s4 1934713408
        %v3487 = vunpack.c.0.s8 %v3486
        %v3488 = vlaneseq
        %v3489 = vshrl.u32 %v3488, 7
        %v3490 = vsub.s32 %v3487, %v3489
        %v3491 = vrot.slane %v3483, %v3490
        %v3493 = vunpack.c.l.s4 1934713408
        %v3494 = vunpack.c.0.s8 %v3493
        %v3495 = vlaneseq
        %v3496 = vshrl.u32 %v3495, 7
        %v3497 = vsub.s32 %v3494, %v3496
        %v3498 = vrot.slane %v3484, %v3497
        %v3499 = vcombine.low %v3443, %v3459
        %v3500 = vcombine.high %v3443, %v3459
        %v3502 = vunpack.c.l.s4 1934713408
        %v3503 = vunpack.c.0.s8 %v3502
        %v3504 = vlaneseq
        %v3505 = vshrl.u32 %v3504, 7
        %v3506 = vsub.s32 %v3503, %v3505
        %v3507 = vrot.slane %v3499, %v3506
        %v3509 = vunpack.c.l.s4 1934713408
        %v3510 = vunpack.c.0.s8 %v3509
        %v3511 = vlaneseq
        %v3512 = vshrl.u32 %v3511, 7
        %v3513 = vsub.s32 %v3510, %v3512
        %v3514 = vrot.slane %v3500, %v3513
        %v3515 = vcombine.low %v3450, %v3466
        %v3516 = vcombine.high %v3450, %v3466
        %v3518 = vunpack.c.l.s4 1934713408
        %v3519 = vunpack.c.0.s8 %v3518
        %v3520 = vlaneseq
        %v3521 = vshrl.u32 %v3520, 7
        %v3522 = vsub.s32 %v3519, %v3521
        %v3523 = vrot.slane %v3515, %v3522
        %v3525 = vunpack.c.l.s4 1934713408
        %v3526 = vunpack.c.0.s8 %v3525
        %v3527 = vlaneseq
        %v3528 = vshrl.u32 %v3527, 7
        %v3529 = vsub.s32 %v3526, %v3528
        %v3530 = vrot.slane %v3516, %v3529
        %v3531 = vcombine.low %v3475, %v3507
        %v3532 = vcombine.high %v3475, %v3507
        %v3533 = vcombine.low %v3482, %v3514
        %v3534 = vcombine.high %v3482, %v3514
        %v3535 = vcombine.low %v3491, %v3523
        %v3536 = vcombine.high %v3491, %v3523
        %v3537 = vcombine.low %v3498, %v3530
        %v3538 = vcombine.high %v3498, %v3530
        %v3539 = vcombine.low %v1250, %v1258
        %v3540 = vcombine.high %v1250, %v1258
        %v3542 = vunpack.c.l.s4 1983009808
        %v3543 = vunpack.c.0.s8 %v3542
        %v3544 = vlaneseq
        %v3545 = vshrl.u32 %v3544, 7
        %v3546 = vsub.s32 %v3543, %v3545
        %v3547 = vrot.slane %v3539, %v3546
        %v3549 = vunpack.c.l.s4 1983009808
        %v3550 = vunpack.c.0.s8 %v3549
        %v3551 = vlaneseq
        %v3552 = vshrl.u32 %v3551, 7
        %v3553 = vsub.s32 %v3550, %v3552
        %v3554 = vrot.slane %v3540, %v3553
        %v3555 = vcombine.low %v1254, %v1262
        %v3556 = vcombine.high %v1254, %v1262
        %v3558 = vunpack.c.l.s4 1983009808
        %v3559 = vunpack.c.0.s8 %v3558
        %v3560 = vlaneseq
        %v3561 = vshrl.u32 %v3560, 7
        %v3562 = vsub.s32 %v3559, %v3561
        %v3563 = vrot.slane %v3555, %v3562
        %v3565 = vunpack.c.l.s4 1983009808
        %v3566 = vunpack.c.0.s8 %v3565
        %v3567 = vlaneseq
        %v3568 = vshrl.u32 %v3567, 7
        %v3569 = vsub.s32 %v3566, %v3568
        %v3570 = vrot.slane %v3556, %v3569
        %v3571 = vcombine.low %v1266, %v1274
        %v3572 = vcombine.high %v1266, %v1274
        %v3574 = vunpack.c.l.s4 1983009808
        %v3575 = vunpack.c.0.s8 %v3574
        %v3576 = vlaneseq
        %v3577 = vshrl.u32 %v3576, 7
        %v3578 = vsub.s32 %v3575, %v3577
        %v3579 = vrot.slane %v3571, %v3578
        %v3581 = vunpack.c.l.s4 1983009808
        %v3582 = vunpack.c.0.s8 %v3581
        %v3583 = vlaneseq
        %v3584 = vshrl.u32 %v3583, 7
        %v3585 = vsub.s32 %v3582, %v3584
        %v3586 = vrot.slane %v3572, %v3585
        %v3587 = vcombine.low %v1270, %v1278
        %v3588 = vcombine.high %v1270, %v1278
        %v3590 = vunpack.c.l.s4 1983009808
        %v3591 = vunpack.c.0.s8 %v3590
        %v3592 = vlaneseq
        %v3593 = vshrl.u32 %v3592, 7
        %v3594 = vsub.s32 %v3591, %v3593
        %v3595 = vrot.slane %v3587, %v3594
        %v3597 = vunpack.c.l.s4 1983009808
        %v3598 = vunpack.c.0.s8 %v3597
        %v3599 = vlaneseq
        %v3600 = vshrl.u32 %v3599, 7
        %v3601 = vsub.s32 %v3598, %v3600
        %v3602 = vrot.slane %v3588, %v3601
        %v3603 = vcombine.low %v3547, %v3563
        %v3604 = vcombine.high %v3547, %v3563
        %v3606 = vunpack.c.l.s4 1934713408
        %v3607 = vunpack.c.0.s8 %v3606
        %v3608 = vlaneseq
        %v3609 = vshrl.u32 %v3608, 7
        %v3610 = vsub.s32 %v3607, %v3609
        %v3611 = vrot.slane %v3603, %v3610
        %v3613 = vunpack.c.l.s4 1934713408
        %v3614 = vunpack.c.0.s8 %v3613
        %v3615 = vlaneseq
        %v3616 = vshrl.u32 %v3615, 7
        %v3617 = vsub.s32 %v3614, %v3616
        %v3618 = vrot.slane %v3604, %v3617
        %v3619 = vcombine.low %v3554, %v3570
        %v3620 = vcombine.high %v3554, %v3570
        %v3622 = vunpack.c.l.s4 1934713408
        %v3623 = vunpack.c.0.s8 %v3622
        %v3624 = vlaneseq
        %v3625 = vshrl.u32 %v3624, 7
        %v3626 = vsub.s32 %v3623, %v3625
        %v3627 = vrot.slane %v3619, %v3626
        %v3629 = vunpack.c.l.s4 1934713408
        %v3630 = vunpack.c.0.s8 %v3629
        %v3631 = vlaneseq
        %v3632 = vshrl.u32 %v3631, 7
        %v3633 = vsub.s32 %v3630, %v3632
        %v3634 = vrot.slane %v3620, %v3633
        %v3635 = vcombine.low %v3579, %v3595
        %v3636 = vcombine.high %v3579, %v3595
        %v3638 = vunpack.c.l.s4 1934713408
        %v3639 = vunpack.c.0.s8 %v3638
        %v3640 = vlaneseq
        %v3641 = vshrl.u32 %v3640, 7
        %v3642 = vsub.s32 %v3639, %v3641
        %v3643 = vrot.slane %v3635, %v3642
        %v3645 = vunpack.c.l.s4 1934713408
        %v3646 = vunpack.c.0.s8 %v3645
        %v3647 = vlaneseq
        %v3648 = vshrl.u32 %v3647, 7
        %v3649 = vsub.s32 %v3646, %v3648
        %v3650 = vrot.slane %v3636, %v3649
        %v3651 = vcombine.low %v3586, %v3602
        %v3652 = vcombine.high %v3586, %v3602
        %v3654 = vunpack.c.l.s4 1934713408
        %v3655 = vunpack.c.0.s8 %v3654
        %v3656 = vlaneseq
        %v3657 = vshrl.u32 %v3656, 7
        %v3658 = vsub.s32 %v3655, %v3657
        %v3659 = vrot.slane %v3651, %v3658
        %v3661 = vunpack.c.l.s4 1934713408
        %v3662 = vunpack.c.0.s8 %v3661
        %v3663 = vlaneseq
        %v3664 = vshrl.u32 %v3663, 7
        %v3665 = vsub.s32 %v3662, %v3664
        %v3666 = vrot.slane %v3652, %v3665
        %v3667 = vcombine.low %v3611, %v3643
        %v3668 = vcombine.high %v3611, %v3643
        %v3669 = vcombine.low %v3618, %v3650
        %v3670 = vcombine.high %v3618, %v3650
        %v3671 = vcombine.low %v3627, %v3659
        %v3672 = vcombine.high %v3627, %v3659
        %v3673 = vcombine.low %v3634, %v3666
        %v3674 = vcombine.high %v3634, %v3666
        %v3675 = vcombine.low %v1282, %v1290
        %v3676 = vcombine.high %v1282, %v1290
        %v3678 = vunpack.c.l.s4 1983009808
        %v3679 = vunpack.c.0.s8 %v3678
        %v3680 = vlaneseq
        %v3681 = vshrl.u32 %v3680, 7
        %v3682 = vsub.s32 %v3679, %v3681
        %v3683 = vrot.slane %v3675, %v3682
        %v3685 = vunpack.c.l.s4 1983009808
        %v3686 = vunpack.c.0.s8 %v3685
        %v3687 = vlaneseq
        %v3688 = vshrl.u32 %v3687, 7
        %v3689 = vsub.s32 %v3686, %v3688
        %v3690 = vrot.slane %v3676, %v3689
        %v3691 = vcombine.low %v1286, %v1294
        %v3692 = vcombine.high %v1286, %v1294
        %v3694 = vunpack.c.l.s4 1983009808
        %v3695 = vunpack.c.0.s8 %v3694
        %v3696 = vlaneseq
        %v3697 = vshrl.u32 %v3696, 7
        %v3698 = vsub.s32 %v3695, %v3697
        %v3699 = vrot.slane %v3691, %v3698
        %v3701 = vunpack.c.l.s4 1983009808
        %v3702 = vunpack.c.0.s8 %v3701
        %v3703 = vlaneseq
        %v3704 = vshrl.u32 %v3703, 7
        %v3705 = vsub.s32 %v3702, %v3704
        %v3706 = vrot.slane %v3692, %v3705
        %v3707 = vcombine.low %v3683, %v3699
        %v3708 = vcombine.high %v3683, %v3699
        %v3710 = vunpack.c.l.s4 1934713408
        %v3711 = vunpack.c.0.s8 %v3710
        %v3712 = vlaneseq
        %v3713 = vshrl.u32 %v3712, 7
        %v3714 = vsub.s32 %v3711, %v3713
        %v3715 = vrot.slane %v3707, %v3714
        %v3717 = vunpack.c.l.s4 1934713408
        %v3718 = vunpack.c.0.s8 %v3717
        %v3719 = vlaneseq
        %v3720 = vshrl.u32 %v3719, 7
        %v3721 = vsub.s32 %v3718, %v3720
        %v3722 = vrot.slane %v3708, %v3721
        %v3723 = vcombine.low %v3690, %v3706
        %v3724 = vcombine.high %v3690, %v3706
        %v3726 = vunpack.c.l.s4 1934713408
        %v3727 = vunpack.c.0.s8 %v3726
        %v3728 = vlaneseq
        %v3729 = vshrl.u32 %v3728, 7
        %v3730 = vsub.s32 %v3727, %v3729
        %v3731 = vrot.slane %v3723, %v3730
        %v3733 = vunpack.c.l.s4 1934713408
        %v3734 = vunpack.c.0.s8 %v3733
        %v3735 = vlaneseq
        %v3736 = vshrl.u32 %v3735, 7
        %v3737 = vsub.s32 %v3734, %v3736
        %v3738 = vrot.slane %v3724, %v3737
        %v3739 = vcombine.high %v3715, 0.0
        %v3740 = vcombine.high %v3722, 0.0
        %v3741 = vcombine.high %v3731, 0.0
        %v3742 = vcombine.high %v3738, 0.0
        %3752 = vrot.lane.b32.xlu0 %v1560, 16
        %v3753 = vpop.permute.xlu0 %3752
        %3754 = vrot.lane.b32.xlu0 %v1696, 16
        %v3755 = vpop.permute.xlu0 %3754
        %3756 = vrot.lane.b32.xlu0 %v1832, 16
        %v3757 = vpop.permute.xlu0 %3756
        %3758 = vrot.lane.b32.xlu0 %v1968, 16
        %v3759 = vpop.permute.xlu0 %3758
        %3760 = vrot.lane.b32.xlu0 %v2104, 16
        %v3761 = vpop.permute.xlu0 %3760
        %3762 = vrot.lane.b32.xlu0 %v2240, 16
        %v3763 = vpop.permute.xlu0 %3762
        %3764 = vrot.lane.b32.xlu0 %v2376, 16
        %v3765 = vpop.permute.xlu0 %3764
        %3766 = vrot.lane.b32.xlu0 %v2512, 16
        %v3767 = vpop.permute.xlu0 %3766
        %3768 = vrot.lane.b32.xlu0 %v2583, 16
        %v3769 = vpop.permute.xlu0 %3768
        %3788 = vrot.lane.b32.xlu0 %v1561, 32
        %v3789 = vpop.permute.xlu0 %3788
        %3790 = vrot.lane.b32.xlu0 %v1697, 32
        %v3791 = vpop.permute.xlu0 %3790
        %3792 = vrot.lane.b32.xlu0 %v1833, 32
        %v3793 = vpop.permute.xlu0 %3792
        %3794 = vrot.lane.b32.xlu0 %v1969, 32
        %v3795 = vpop.permute.xlu0 %3794
        %3796 = vrot.lane.b32.xlu0 %v2105, 32
        %v3797 = vpop.permute.xlu0 %3796
        %3798 = vrot.lane.b32.xlu0 %v2241, 32
        %v3799 = vpop.permute.xlu0 %3798
        %3800 = vrot.lane.b32.xlu0 %v2377, 32
        %v3801 = vpop.permute.xlu0 %3800
        %3802 = vrot.lane.b32.xlu0 %v2513, 32
        %v3803 = vpop.permute.xlu0 %3802
        %3804 = vrot.lane.b32.xlu0 %v2566, 32
        %v3805 = vpop.permute.xlu0 %3804
        %3824 = vrot.lane.b32.xlu0 %v1562, 48
        %v3825 = vpop.permute.xlu0 %3824
        %3826 = vrot.lane.b32.xlu0 %v1698, 48
        %v3827 = vpop.permute.xlu0 %3826
        %3828 = vrot.lane.b32.xlu0 %v1834, 48
        %v3829 = vpop.permute.xlu0 %3828
        %3830 = vrot.lane.b32.xlu0 %v1970, 48
        %v3831 = vpop.permute.xlu0 %3830
        %3832 = vrot.lane.b32.xlu0 %v2106, 48
        %v3833 = vpop.permute.xlu0 %3832
        %3834 = vrot.lane.b32.xlu0 %v2242, 48
        %v3835 = vpop.permute.xlu0 %3834
        %3836 = vrot.lane.b32.xlu0 %v2378, 48
        %v3837 = vpop.permute.xlu0 %3836
        %3838 = vrot.lane.b32.xlu0 %v2514, 48
        %v3839 = vpop.permute.xlu0 %3838
        %3840 = vrot.lane.b32.xlu0 %v2584, 48
        %v3841 = vpop.permute.xlu0 %3840
        %3860 = vrot.lane.b32.xlu0 %v1563, 64
        %v3861 = vpop.permute.xlu0 %3860
        %3862 = vrot.lane.b32.xlu0 %v1699, 64
        %v3863 = vpop.permute.xlu0 %3862
        %3864 = vrot.lane.b32.xlu0 %v1835, 64
        %v3865 = vpop.permute.xlu0 %3864
        %3866 = vrot.lane.b32.xlu0 %v1971, 64
        %v3867 = vpop.permute.xlu0 %3866
        %3868 = vrot.lane.b32.xlu0 %v2107, 64
        %v3869 = vpop.permute.xlu0 %3868
        %3870 = vrot.lane.b32.xlu0 %v2243, 64
        %v3871 = vpop.permute.xlu0 %3870
        %3872 = vrot.lane.b32.xlu0 %v2379, 64
        %v3873 = vpop.permute.xlu0 %3872
        %3874 = vrot.lane.b32.xlu0 %v2515, 64
        %v3875 = vpop.permute.xlu0 %3874
        %3876 = vrot.lane.b32.xlu0 %v2575, 64
        %v3877 = vpop.permute.xlu0 %3876
        %3896 = vrot.lane.b32.xlu0 %v1564, 80
        %v3897 = vpop.permute.xlu0 %3896
        %3898 = vrot.lane.b32.xlu0 %v1700, 80
        %v3899 = vpop.permute.xlu0 %3898
        %3900 = vrot.lane.b32.xlu0 %v1836, 80
        %v3901 = vpop.permute.xlu0 %3900
        %3902 = vrot.lane.b32.xlu0 %v1972, 80
        %v3903 = vpop.permute.xlu0 %3902
        %3904 = vrot.lane.b32.xlu0 %v2108, 80
        %v3905 = vpop.permute.xlu0 %3904
        %3906 = vrot.lane.b32.xlu0 %v2244, 80
        %v3907 = vpop.permute.xlu0 %3906
        %3908 = vrot.lane.b32.xlu0 %v2380, 80
        %v3909 = vpop.permute.xlu0 %3908
        %3910 = vrot.lane.b32.xlu0 %v2516, 80
        %v3911 = vpop.permute.xlu0 %3910
        %3912 = vrot.lane.b32.xlu0 %v2585, 80
        %v3913 = vpop.permute.xlu0 %3912
        %3932 = vrot.lane.b32.xlu0 %v1565, 96
        %v3933 = vpop.permute.xlu0 %3932
        %3934 = vrot.lane.b32.xlu0 %v1701, 96
        %v3935 = vpop.permute.xlu0 %3934
        %3936 = vrot.lane.b32.xlu0 %v1837, 96
        %v3937 = vpop.permute.xlu0 %3936
        %3938 = vrot.lane.b32.xlu0 %v1973, 96
        %v3939 = vpop.permute.xlu0 %3938
        %3940 = vrot.lane.b32.xlu0 %v2109, 96
        %v3941 = vpop.permute.xlu0 %3940
        %3942 = vrot.lane.b32.xlu0 %v2245, 96
        %v3943 = vpop.permute.xlu0 %3942
        %3944 = vrot.lane.b32.xlu0 %v2381, 96
        %v3945 = vpop.permute.xlu0 %3944
        %3946 = vrot.lane.b32.xlu0 %v2517, 96
        %v3947 = vpop.permute.xlu0 %3946
        %3948 = vrot.lane.b32.xlu0 %v2582, 96
        %v3949 = vpop.permute.xlu0 %3948
        %3968 = vrot.lane.b32.xlu0 %v1566, 112
        %v3969 = vpop.permute.xlu0 %3968
        %3970 = vrot.lane.b32.xlu0 %v1702, 112
        %v3971 = vpop.permute.xlu0 %3970
        %3972 = vrot.lane.b32.xlu0 %v1838, 112
        %v3973 = vpop.permute.xlu0 %3972
        %3974 = vrot.lane.b32.xlu0 %v1974, 112
        %v3975 = vpop.permute.xlu0 %3974
        %3976 = vrot.lane.b32.xlu0 %v2110, 112
        %v3977 = vpop.permute.xlu0 %3976
        %3978 = vrot.lane.b32.xlu0 %v2246, 112
        %v3979 = vpop.permute.xlu0 %3978
        %3980 = vrot.lane.b32.xlu0 %v2382, 112
        %v3981 = vpop.permute.xlu0 %3980
        %3982 = vrot.lane.b32.xlu0 %v2518, 112
        %v3983 = vpop.permute.xlu0 %3982
        %3984 = vrot.lane.b32.xlu0 %v2586, 112
        %v3985 = vpop.permute.xlu0 %3984
        %4004 = vrot.lane.b32.xlu0 %v2716, 16
        %v4005 = vpop.permute.xlu0 %4004
        %4006 = vrot.lane.b32.xlu0 %v2852, 16
        %v4007 = vpop.permute.xlu0 %4006
        %4008 = vrot.lane.b32.xlu0 %v2988, 16
        %v4009 = vpop.permute.xlu0 %4008
        %4010 = vrot.lane.b32.xlu0 %v3124, 16
        %v4011 = vpop.permute.xlu0 %4010
        %4012 = vrot.lane.b32.xlu0 %v3260, 16
        %v4013 = vpop.permute.xlu0 %4012
        %4014 = vrot.lane.b32.xlu0 %v3396, 16
        %v4015 = vpop.permute.xlu0 %4014
        %4016 = vrot.lane.b32.xlu0 %v3532, 16
        %v4017 = vpop.permute.xlu0 %4016
        %4018 = vrot.lane.b32.xlu0 %v3668, 16
        %v4019 = vpop.permute.xlu0 %4018
        %4020 = vrot.lane.b32.xlu0 %v3739, 16
        %v4021 = vpop.permute.xlu0 %4020
        %4040 = vrot.lane.b32.xlu0 %v2717, 32
        %v4041 = vpop.permute.xlu0 %4040
        %4042 = vrot.lane.b32.xlu0 %v2853, 32
        %v4043 = vpop.permute.xlu0 %4042
        %4044 = vrot.lane.b32.xlu0 %v2989, 32
        %v4045 = vpop.permute.xlu0 %4044
        %4046 = vrot.lane.b32.xlu0 %v3125, 32
        %v4047 = vpop.permute.xlu0 %4046
        %4048 = vrot.lane.b32.xlu0 %v3261, 32
        %v4049 = vpop.permute.xlu0 %4048
        %4050 = vrot.lane.b32.xlu0 %v3397, 32
        %v4051 = vpop.permute.xlu0 %4050
        %4052 = vrot.lane.b32.xlu0 %v3533, 32
        %v4053 = vpop.permute.xlu0 %4052
        %4054 = vrot.lane.b32.xlu0 %v3669, 32
        %v4055 = vpop.permute.xlu0 %4054
        %4056 = vrot.lane.b32.xlu0 %v3722, 32
        %v4057 = vpop.permute.xlu0 %4056
        %4076 = vrot.lane.b32.xlu0 %v2718, 48
        %v4077 = vpop.permute.xlu0 %4076
        %4078 = vrot.lane.b32.xlu0 %v2854, 48
        %v4079 = vpop.permute.xlu0 %4078
        %4080 = vrot.lane.b32.xlu0 %v2990, 48
        %v4081 = vpop.permute.xlu0 %4080
        %4082 = vrot.lane.b32.xlu0 %v3126, 48
        %v4083 = vpop.permute.xlu0 %4082
        %4084 = vrot.lane.b32.xlu0 %v3262, 48
        %v4085 = vpop.permute.xlu0 %4084
        %4086 = vrot.lane.b32.xlu0 %v3398, 48
        %v4087 = vpop.permute.xlu0 %4086
        %4088 = vrot.lane.b32.xlu0 %v3534, 48
        %v4089 = vpop.permute.xlu0 %4088
        %4090 = vrot.lane.b32.xlu0 %v3670, 48
        %v4091 = vpop.permute.xlu0 %4090
        %4092 = vrot.lane.b32.xlu0 %v3740, 48
        %v4093 = vpop.permute.xlu0 %4092
        %4112 = vrot.lane.b32.xlu0 %v2719, 64
        %v4113 = vpop.permute.xlu0 %4112
        %4114 = vrot.lane.b32.xlu0 %v2855, 64
        %v4115 = vpop.permute.xlu0 %4114
        %4116 = vrot.lane.b32.xlu0 %v2991, 64
        %v4117 = vpop.permute.xlu0 %4116
        %4118 = vrot.lane.b32.xlu0 %v3127, 64
        %v4119 = vpop.permute.xlu0 %4118
        %4120 = vrot.lane.b32.xlu0 %v3263, 64
        %v4121 = vpop.permute.xlu0 %4120
        %4122 = vrot.lane.b32.xlu0 %v3399, 64
        %v4123 = vpop.permute.xlu0 %4122
        %4124 = vrot.lane.b32.xlu0 %v3535, 64
        %v4125 = vpop.permute.xlu0 %4124
        %4126 = vrot.lane.b32.xlu0 %v3671, 64
        %v4127 = vpop.permute.xlu0 %4126
        %4128 = vrot.lane.b32.xlu0 %v3731, 64
        %v4129 = vpop.permute.xlu0 %4128
        %4148 = vrot.lane.b32.xlu0 %v2720, 80
        %v4149 = vpop.permute.xlu0 %4148
        %4150 = vrot.lane.b32.xlu0 %v2856, 80
        %v4151 = vpop.permute.xlu0 %4150
        %4152 = vrot.lane.b32.xlu0 %v2992, 80
        %v4153 = vpop.permute.xlu0 %4152
        %4154 = vrot.lane.b32.xlu0 %v3128, 80
        %v4155 = vpop.permute.xlu0 %4154
        %4156 = vrot.lane.b32.xlu0 %v3264, 80
        %v4157 = vpop.permute.xlu0 %4156
        %4158 = vrot.lane.b32.xlu0 %v3400, 80
        %v4159 = vpop.permute.xlu0 %4158
        %4160 = vrot.lane.b32.xlu0 %v3536, 80
        %v4161 = vpop.permute.xlu0 %4160
        %4162 = vrot.lane.b32.xlu0 %v3672, 80
        %v4163 = vpop.permute.xlu0 %4162
        %4164 = vrot.lane.b32.xlu0 %v3741, 80
        %v4165 = vpop.permute.xlu0 %4164
        %4184 = vrot.lane.b32.xlu0 %v2721, 96
        %v4185 = vpop.permute.xlu0 %4184
        %4186 = vrot.lane.b32.xlu0 %v2857, 96
        %v4187 = vpop.permute.xlu0 %4186
        %4188 = vrot.lane.b32.xlu0 %v2993, 96
        %v4189 = vpop.permute.xlu0 %4188
        %4190 = vrot.lane.b32.xlu0 %v3129, 96
        %v4191 = vpop.permute.xlu0 %4190
        %4192 = vrot.lane.b32.xlu0 %v3265, 96
        %v4193 = vpop.permute.xlu0 %4192
        %4194 = vrot.lane.b32.xlu0 %v3401, 96
        %v4195 = vpop.permute.xlu0 %4194
        %4196 = vrot.lane.b32.xlu0 %v3537, 96
        %v4197 = vpop.permute.xlu0 %4196
        %4198 = vrot.lane.b32.xlu0 %v3673, 96
        %v4199 = vpop.permute.xlu0 %4198
        %4200 = vrot.lane.b32.xlu0 %v3738, 96
        %v4201 = vpop.permute.xlu0 %4200
        %4220 = vrot.lane.b32.xlu0 %v2722, 112
        %v4221 = vpop.permute.xlu0 %4220
        %4222 = vrot.lane.b32.xlu0 %v2858, 112
        %v4223 = vpop.permute.xlu0 %4222
        %4224 = vrot.lane.b32.xlu0 %v2994, 112
        %v4225 = vpop.permute.xlu0 %4224
        %4226 = vrot.lane.b32.xlu0 %v3130, 112
        %v4227 = vpop.permute.xlu0 %4226
        %4228 = vrot.lane.b32.xlu0 %v3266, 112
        %v4229 = vpop.permute.xlu0 %4228
        %4230 = vrot.lane.b32.xlu0 %v3402, 112
        %v4231 = vpop.permute.xlu0 %4230
        %4232 = vrot.lane.b32.xlu0 %v3538, 112
        %v4233 = vpop.permute.xlu0 %4232
        %4234 = vrot.lane.b32.xlu0 %v3674, 112
        %v4235 = vpop.permute.xlu0 %4234
        %4236 = vrot.lane.b32.xlu0 %v3742, 112
        %v4237 = vpop.permute.xlu0 %4236
        %vm4247 = vcmask 130048
        %v4248 = vsel %vm4247, %v1559, %v3753
        %v4249 = vsel %vm4247, %v1695, %v3755
        %v4250 = vsel %vm4247, %v1831, %v3757
        %v4251 = vsel %vm4247, %v1967, %v3759
        %v4252 = vsel %vm4247, %v2103, %v3761
        %v4253 = vsel %vm4247, %v2239, %v3763
        %v4254 = vsel %vm4247, %v2375, %v3765
        %v4255 = vsel %vm4247, %v2511, %v3767
        %v4256 = vsel %vm4247, %v2559, %v3769
        %vm4257 = vcmask 261120
        %v4258 = vsel %vm4257, %v4248, %v3789
        %v4259 = vsel %vm4257, %v4249, %v3791
        %v4260 = vsel %vm4257, %v4250, %v3793
        %v4261 = vsel %vm4257, %v4251, %v3795
        %v4262 = vsel %vm4257, %v4252, %v3797
        %v4263 = vsel %vm4257, %v4253, %v3799
        %v4264 = vsel %vm4257, %v4254, %v3801
        %v4265 = vsel %vm4257, %v4255, %v3803
        %v4266 = vsel %vm4257, %v4256, %v3805
        %vm4267 = vcmask 392192
        %v4268 = vsel %vm4267, %v4258, %v3825
        %v4269 = vsel %vm4267, %v4259, %v3827
        %v4270 = vsel %vm4267, %v4260, %v3829
        %v4271 = vsel %vm4267, %v4261, %v3831
        %v4272 = vsel %vm4267, %v4262, %v3833
        %v4273 = vsel %vm4267, %v4263, %v3835
        %v4274 = vsel %vm4267, %v4264, %v3837
        %v4275 = vsel %vm4267, %v4265, %v3839
        %v4276 = vsel %vm4267, %v4266, %v3841
        %vm4277 = vcmask 523264
        %v4278 = vsel %vm4277, %v4268, %v3861
        %v4279 = vsel %vm4277, %v4269, %v3863
        %v4280 = vsel %vm4277, %v4270, %v3865
        %v4281 = vsel %vm4277, %v4271, %v3867
        %v4282 = vsel %vm4277, %v4272, %v3869
        %v4283 = vsel %vm4277, %v4273, %v3871
        %v4284 = vsel %vm4277, %v4274, %v3873
        %v4285 = vsel %vm4277, %v4275, %v3875
        %v4286 = vsel %vm4277, %v4276, %v3877
        %vm4287 = vcmask 654336
        %v4288 = vsel %vm4287, %v4278, %v3897
        %v4289 = vsel %vm4287, %v4279, %v3899
        %v4290 = vsel %vm4287, %v4280, %v3901
        %v4291 = vsel %vm4287, %v4281, %v3903
        %v4292 = vsel %vm4287, %v4282, %v3905
        %v4293 = vsel %vm4287, %v4283, %v3907
        %v4294 = vsel %vm4287, %v4284, %v3909
        %v4295 = vsel %vm4287, %v4285, %v3911
        %v4296 = vsel %vm4287, %v4286, %v3913
        %vm4297 = vcmask 785408
        %v4298 = vsel %vm4297, %v4288, %v3933
        %v4299 = vsel %vm4297, %v4289, %v3935
        %v4300 = vsel %vm4297, %v4290, %v3937
        %v4301 = vsel %vm4297, %v4291, %v3939
        %v4302 = vsel %vm4297, %v4292, %v3941
        %v4303 = vsel %vm4297, %v4293, %v3943
        %v4304 = vsel %vm4297, %v4294, %v3945
        %v4305 = vsel %vm4297, %v4295, %v3947
        %v4306 = vsel %vm4297, %v4296, %v3949
        %vm4307 = vcmask 916480
        %v4308 = vsel %vm4307, %v4298, %v3969
        %v4309 = vsel %vm4307, %v4299, %v3971
        %v4310 = vsel %vm4307, %v4300, %v3973
        %v4311 = vsel %vm4307, %v4301, %v3975
        %v4312 = vsel %vm4307, %v4302, %v3977
        %v4313 = vsel %vm4307, %v4303, %v3979
        %v4314 = vsel %vm4307, %v4304, %v3981
        %v4315 = vsel %vm4307, %v4305, %v3983
        %v4316 = vsel %vm4307, %v4306, %v3985
        %v4317 = vsel %vm4247, %v2715, %v4005
        %v4318 = vsel %vm4247, %v2851, %v4007
        %v4319 = vsel %vm4247, %v2987, %v4009
        %v4320 = vsel %vm4247, %v3123, %v4011
        %v4321 = vsel %vm4247, %v3259, %v4013
        %v4322 = vsel %vm4247, %v3395, %v4015
        %v4323 = vsel %vm4247, %v3531, %v4017
        %v4324 = vsel %vm4247, %v3667, %v4019
        %v4325 = vsel %vm4247, %v3715, %v4021
        %v4326 = vsel %vm4257, %v4317, %v4041
        %v4327 = vsel %vm4257, %v4318, %v4043
        %v4328 = vsel %vm4257, %v4319, %v4045
        %v4329 = vsel %vm4257, %v4320, %v4047
        %v4330 = vsel %vm4257, %v4321, %v4049
        %v4331 = vsel %vm4257, %v4322, %v4051
        %v4332 = vsel %vm4257, %v4323, %v4053
        %v4333 = vsel %vm4257, %v4324, %v4055
        %v4334 = vsel %vm4257, %v4325, %v4057
        %v4335 = vsel %vm4267, %v4326, %v4077
        %v4336 = vsel %vm4267, %v4327, %v4079
        %v4337 = vsel %vm4267, %v4328, %v4081
        %v4338 = vsel %vm4267, %v4329, %v4083
        %v4339 = vsel %vm4267, %v4330, %v4085
        %v4340 = vsel %vm4267, %v4331, %v4087
        %v4341 = vsel %vm4267, %v4332, %v4089
        %v4342 = vsel %vm4267, %v4333, %v4091
        %v4343 = vsel %vm4267, %v4334, %v4093
        %v4344 = vsel %vm4277, %v4335, %v4113
        %v4345 = vsel %vm4277, %v4336, %v4115
        %v4346 = vsel %vm4277, %v4337, %v4117
        %v4347 = vsel %vm4277, %v4338, %v4119
        %v4348 = vsel %vm4277, %v4339, %v4121
        %v4349 = vsel %vm4277, %v4340, %v4123
        %v4350 = vsel %vm4277, %v4341, %v4125
        %v4351 = vsel %vm4277, %v4342, %v4127
        %v4352 = vsel %vm4277, %v4343, %v4129
        %v4353 = vsel %vm4287, %v4344, %v4149
        %v4354 = vsel %vm4287, %v4345, %v4151
        %v4355 = vsel %vm4287, %v4346, %v4153
        %v4356 = vsel %vm4287, %v4347, %v4155
        %v4357 = vsel %vm4287, %v4348, %v4157
        %v4358 = vsel %vm4287, %v4349, %v4159
        %v4359 = vsel %vm4287, %v4350, %v4161
        %v4360 = vsel %vm4287, %v4351, %v4163
        %v4361 = vsel %vm4287, %v4352, %v4165
        %v4362 = vsel %vm4297, %v4353, %v4185
        %v4363 = vsel %vm4297, %v4354, %v4187
        %v4364 = vsel %vm4297, %v4355, %v4189
        %v4365 = vsel %vm4297, %v4356, %v4191
        %v4366 = vsel %vm4297, %v4357, %v4193
        %v4367 = vsel %vm4297, %v4358, %v4195
        %v4368 = vsel %vm4297, %v4359, %v4197
        %v4369 = vsel %vm4297, %v4360, %v4199
        %v4370 = vsel %vm4297, %v4361, %v4201
        %v4371 = vsel %vm4307, %v4362, %v4221
        %v4372 = vsel %vm4307, %v4363, %v4223
        %v4373 = vsel %vm4307, %v4364, %v4225
        %v4374 = vsel %vm4307, %v4365, %v4227
        %v4375 = vsel %vm4307, %v4366, %v4229
        %v4376 = vsel %vm4307, %v4367, %v4231
        %v4377 = vsel %vm4307, %v4368, %v4233
        %v4378 = vsel %vm4307, %v4369, %v4235
        %v4379 = vsel %vm4307, %v4370, %v4237
        %v4380 = vld [vmem:[%s1] sm:$0xff]
        %v4381 = vld [vmem:[%s2] sm:$0xff]
        %4383 = vset.pattern.permute.xlu0 0
        %4384 = vperm.xlu0 %4383, %v4381
        %v4385 = vpop.permute.xlu0 %4384
        %vm4387 = vcmask 556032
        %v4389 = vsel %vm4387, %v4380, 0
        %vm4391 = vcmask 1043456
        %v4393 = vsel %vm4391, %v4316, 0
        %v4396 = vsel %vm4391, %v4379, 0
        %4398 = vmatprep.subr.mxu0 %v4371
        %4399 = vmatpush1.msra.mxu0 %v4308
        %4400 = vmatprep.subr.mxu0 %v4372
        %4401 = vmatpush1.msra.mxu0 %v4309
        %4402 = vmatprep.subr.mxu0 %v4373
        %4403 = vmatpush1.msra.mxu0 %v4310
        %4404 = vmatprep.subr.mxu0 %v4374
        %4405 = vmatpush1.msra.mxu0 %v4311
        %4406 = vmatprep.subr.mxu0 %v4375
        %4407 = vmatpush1.msra.mxu0 %v4312
        %4408 = vmatprep.subr.mxu0 %v4376
        %4409 = vmatpush1.msra.mxu0 %v4313
        %4410 = vmatprep.subr.mxu0 %v4377
        %4411 = vmatpush1.msra.mxu0 %v4314
        %4412 = vmatprep.subr.mxu0 %v4378
        %4413 = vmatpush1.msra.mxu0 %v4315
        %4414 = vmatprep.subr.mxu0 %v4396
        %4415 = vmatpush1.msra.mxu0 %v4393
        %4416 = vmatprep.subr.mxu0 0.0
        %4417 = vmatpush1.msra.mxu0 0.0
        %4418 = vmatprep.subr.mxu0 0.0
        %4419 = vmatpush1.msra.mxu0 0.0
        %4420 = vmatprep.subr.mxu0 0.0
        %4421 = vmatpush1.msra.mxu0 0.0
        %4422 = vmatprep.subr.mxu0 0.0
        %4423 = vmatpush1.msra.mxu0 0.0
        %4424 = vmatprep.subr.mxu0 0.0
        %4425 = vmatpush1.msra.mxu0 0.0
        %4426 = vmatprep.subr.mxu0 0.0
        %4427 = vmatpush1.msra.mxu0 0.0
        %4428 = vmatprep.subr.mxu0 0.0
        %4429 = vmatpush1.msra.mxu0 0.0
        %4430 = vmatprep.subr.mxu0 0.0
        %4431 = vmatpush1.msra.mxu0 0.0
        %4432 = vmatprep.subr.mxu0 0.0
        %4433 = vmatpush1.msra.mxu0 0.0
        %4434 = vmatprep.subr.mxu0 0.0
        %4435 = vmatpush1.msra.mxu0 0.0
        %4436 = vmatprep.subr.mxu0 0.0
        %4437 = vmatpush1.msra.mxu0 0.0
        %4438 = vmatprep.subr.mxu0 0.0
        %4439 = vmatpush1.msra.mxu0 0.0
        %4440 = vmatprep.subr.mxu0 0.0
        %4441 = vmatpush1.msra.mxu0 0.0
        %4442 = vmatprep.subr.mxu0 0.0
        %4443 = vmatpush1.msra.mxu0 0.0
        %4444 = vmatprep.subr.mxu0 0.0
        %4445 = vmatpush1.msra.mxu0 0.0
        %4446 = vmatprep.subr.mxu0 0.0
        %4447 = vmatpush1.msra.mxu0 0.0
        %4448 = vmatprep.subr.mxu0 0.0
        %4449 = vmatpush1.msra.mxu0 0.0
        %4450 = vmatprep.subr.mxu0 0.0
        %4451 = vmatpush1.msra.mxu0 0.0
        %4452 = vmatprep.subr.mxu0 0.0
        %4453 = vmatpush1.msra.mxu0 0.0
        %4454 = vmatprep.subr.mxu0 0.0
        %4455 = vmatpush1.msra.mxu0 0.0
        %4456 = vmatprep.subr.mxu0 0.0
        %4457 = vmatpush1.msra.mxu0 0.0
        %4458 = vmatprep.subr.mxu0 0.0
        %4459 = vmatpush1.msra.mxu0 0.0
        %4460 = vmatprep.subr.mxu0 0.0
        %4461 = vmatpush1.msra.mxu0 0.0
        %4462 = vmatprep.mubr.f32.mxu0 0.0
        %4463 = vmatmul.mubr.f32.gmra.mrb[0].mxu0 %v4389
        %v4464 = vpop.f32.mrb[0].mxu0
        %v4465 = vadd.f32 %v4385, %v4464
        %v4466 = vpop.f32.mrb[0].mxu0
        %v4467 = vadd.f32 %v4385, %v4466
        %4468 = vdwg.mxu0
        %4469 = vst [vmem:[%s163] sm:$0xff] %v4465
        %4470 = vst [vmem:[%s163 + $0x8] sm:$0xff] %v4467
        %s4471 = sand.u32 %s93, 1
        %s4472 = scalar_lea.sflag [#allocation3], %s4471
        %s4473 = sand.u32 %s93, 1
        %s4474 = smul.addr %s4473, 16
        %s4475 = scalar_lea.vmem [#allocation2], %s4474
        // Predicated region
        $region33: #{tpu_custom_call.1} parent=31 // pred_check
          %p4476 = pneg %p103
        $region34: #{tpu_custom_call.1} parent=31 // pred_check_branch
          %4478 = sbr.rel (%p4476) target = $region36
        $region35: #{tpu_custom_call.1} parent=31 // pred_region
          %s4480 = ssub.s32 256, 256
          %4481 = vsyncadd %s4472, %s4480
          %s4482 = smul.addr %s17, 2
          %s4483 = smul.addr %s4482, 128
          %s4484 = scalar_lea.hbm %s3, %s4483
          %s4486 = sshll.u32 %s4475, 4
          %s4487 = int_to_ptr.vmem [resolvable:$true] %s4486
          %4489 = dma.vmem_to_hbm [thread:$0]  %s4487, 256, %s4484, %s4472
        $region36: #{tpu_custom_call.1} parent=31 // pred_fallthru
          _
      $region32: #{tpu_custom_call.1} parent=5 // pred_fallthru
        _
      %p4490 = scmp.le.s32.totalorder 2, %s12
      // Predicated region
      $region37: #{tpu_custom_call.1} parent=5 // pred_check
        %p4491 = pneg %p4490
      $region38: #{tpu_custom_call.1} parent=5 // pred_check_branch
        %4493 = sbr.rel (%p4491) target = $region40
      $region39: #{tpu_custom_call.1} parent=5 // pred_region
        %s4494 = ssub.s32 %s12, 2
        // Predicated region
        $region41: #{tpu_custom_call.1} parent=39 // pred_check
          %p4495 = pneg %p109
        $region42: #{tpu_custom_call.1} parent=39 // pred_check_branch
          %4497 = sbr.rel (%p4495) target = $region44
        $region43: #{tpu_custom_call.1} parent=39 // pred_region
          %s4498 = sand.u32 %s94, 1
          %s4499 = scalar_lea.sflag [#allocation3], %s4498
          %s4500 = sand.u32 %s94, 1
          %s4501 = smul.addr %s4500, 16
          %s4502 = scalar_lea.vmem [#allocation2], %s4501
          %4503 = dma.done %s4499, 256
        $region44: #{tpu_custom_call.1} parent=39 // pred_fallthru
          _
      $region40: #{tpu_custom_call.1} parent=5 // pred_fallthru
        _
    $region6: #{tpu_custom_call.1} parent=1 // loop_footer
      %s16 = sadd.s32 1, %s12
    $region7: #{tpu_custom_call.1} parent=1 // loop_footer_branch
      %11 = sbr.rel target = $region3
    $region8: #{tpu_custom_call.1} parent=1 // loop_exit
      _
    %4504 = vsyncpa [#allocation3], 1
    %s4505 = scalar_lea.sflag [#allocation3], 1
    %4506 = vsyncpa %s4505, 1

</llo_original>
